<compile_context>
chip_gen: v7x
topology: tpu7x:2x2x1
jax: 0.10.0
libtpu: 0.0.40
codegen_flags: <defaults>
</compile_context>

<pallas_src>
import functools

import jax
import jax.numpy as jnp
from jax.experimental import pallas as pl
from jax.experimental.pallas import tpu as pltpu


# ----------------------------------------------------------------------------
# Pallas kernel: fused 3x3 conv (halo handled in-kernel) + shift + ReLU,
# accumulated over Cin tiles into a VMEM f32 scratch.
# ----------------------------------------------------------------------------
def _conv3x3_kernel(x_ref, w_ref, shift_ref, o_ref, acc_ref, *,
                    H, W, W_valid, apply_relu):
    # x_ref    : (1, H, W, TK)   input channel tile; W % 8 == 0 and padded
    #                            columns [W_valid, W) are exactly zero
    # w_ref    : (3, 3, TK, TN)  HWIO weights (BN scale folded in)
    # shift_ref: (1, TN) f32     conv bias + folded BN shift
    # o_ref    : (1, H, W, TN)
    # acc_ref  : (H*W, TN) f32   persistent accumulator across the Cin axis
    k = pl.program_id(2)

    # Column-index masks for the +/-1 column shifts (computed once per step).
    col = jax.lax.broadcasted_iota(jnp.int32, (H * W, 1), 0) % W
    not_first = col != 0           # dx=0: left edge / row wrap of the roll
    not_last = col != (W - 1)      # dx=2: wrap into next row's column 0
    zero = jnp.zeros((), x_ref.dtype)

    # dy = 1 first: its slab covers every output row, so under k==0 it can be
    # written with `=` (no memset + first RMW on the f32 scratch).
    for dy in (1, 0, 2):                       # statically unrolled
        oy = dy - 1
        ylo = max(0, -oy)                      # first output row for this tap
        nrows = H - abs(oy)
        L = nrows * W
        # Contiguous row slab of the input feeding those output rows; the
        # reshape is layout-free because W % 8 == 0.
        lhs = x_ref[0, pl.ds(ylo + oy, nrows), :, :].reshape(L, -1)
        # Shift/mask the (narrow, bf16) lhs instead of the f32 matmul output.
        lhs0 = jnp.where(not_first[:L], pltpu.roll(lhs, shift=1, axis=0), zero)
        lhs2 = jnp.where(not_last[:L], pltpu.roll(lhs, shift=L - 1, axis=0), zero)
        # Sum the three dx taps locally: one accumulator RMW per dy.
        m = jnp.dot(lhs0, w_ref[dy, 0, :, :], preferred_element_type=jnp.float32)
        m += jnp.dot(lhs, w_ref[dy, 1, :, :], preferred_element_type=jnp.float32)
        m += jnp.dot(lhs2, w_ref[dy, 2, :, :], preferred_element_type=jnp.float32)
        if dy == 1:
            @pl.when(k == 0)
            def _():
                acc_ref[...] = m

            @pl.when(k != 0)
            def _():
                acc_ref[...] += m
        else:
            acc_ref[pl.ds(ylo * W, L), :] += m

    @pl.when(k == pl.num_programs(2) - 1)
    def _finalize():
        r = acc_ref[...] + shift_ref[...]      # bias + folded BN affine
        if apply_relu:
            r = jnp.maximum(r, 0.0)
        if W_valid != W:
            # Padded columns must stay exactly zero so the next layer's conv
            # sees true "same" zero padding at its right edge.
            r = jnp.where(col < W_valid, r, 0.0)
        o_ref[0] = r.reshape(H, W, -1).astype(o_ref.dtype)


# ----------------------------------------------------------------------------
# Tile selection + per-layer VMEM sizing
# ----------------------------------------------------------------------------
_VMEM_BUDGET = 40 * 1024 * 1024   # conservative for v7x's 64 MiB/TC


def _vmem_need(H, W, tk, tn, xb, wb, ob):
    acc = H * W * tn * 4                      # f32 accumulator scratch
    out_db = 2 * H * W * tn * ob              # double-buffered output block
    x_db = 2 * H * W * tk * xb                # double-buffered input block
    w_db = 2 * 9 * tk * tn * wb               # double-buffered weight block
    tmp = 2 * H * W * tk * xb + 2 * H * W * tn * 4   # rolled slabs + f32 partials
    return acc + out_db + x_db + w_db + tmp


def _pick_tiles(H, W, Cin, Coutp, xb, wb, ob):
    tn_cands = [c for c in (Coutp, 512, 384, 256, 128)
                if c <= Coutp and Coutp % c == 0]
    tk_cands = [c for c in (Cin, 512, 256, 128)
                if c <= Cin and Cin % c == 0]
    tn_cands = list(dict.fromkeys(tn_cands))
    tk_cands = list(dict.fromkeys(tk_cands))
    # Prefer the widest Cout tile (avoids re-fetching the activation block per
    # j tile -> matters most on HBM-bound v5e), then the widest Cin tile.
    for tn in tn_cands:
        for tk in tk_cands:
            need = _vmem_need(H, W, tk, tn, xb, wb, ob)
            if need <= _VMEM_BUDGET:
                return tn, tk, need
    tn, tk = tn_cands[-1], tk_cands[-1]
    return tn, tk, _vmem_need(H, W, tk, tn, xb, wb, ob)


def conv3x3_fused(x_nhwc, w_hwio, shift, apply_relu, W_valid, out_dtype):
    """x: (N,H,Wp,Cin), w: (3,3,Cin,Coutp), shift: (1,Coutp) f32 -> (N,H,Wp,Coutp)."""
    N, H, W, Cin = x_nhwc.shape
    Coutp = w_hwio.shape[-1]
    xb = jnp.dtype(x_nhwc.dtype).itemsize
    wb = jnp.dtype(w_hwio.dtype).itemsize
    ob = jnp.dtype(out_dtype).itemsize
    tn, tk, need = _pick_tiles(H, W, Cin, Coutp, xb, wb, ob)
    grid = (N, Coutp // tn, Cin // tk)
    # Per-layer VMEM request from actual block sizes (+ headroom), not a
    # blanket constant.
    vmem_limit = int(max(32 * 1024 * 1024,
                         min(need + 8 * 1024 * 1024, 96 * 1024 * 1024)))

    kernel = functools.partial(_conv3x3_kernel, H=H, W=W, W_valid=W_valid,
                               apply_relu=apply_relu)
    return pl.pallas_call(
        kernel,
        out_shape=jax.ShapeDtypeStruct((N, H, W, Coutp), out_dtype),
        grid_spec=pltpu.PrefetchScalarGridSpec(
            num_scalar_prefetch=0,
            grid=grid,
            in_specs=[
                pl.BlockSpec((1, H, W, tk), lambda n, j, k: (n, 0, 0, k)),
                pl.BlockSpec((3, 3, tk, tn), lambda n, j, k: (0, 0, k, j)),
                pl.BlockSpec((1, tn), lambda n, j, k: (0, j)),
            ],
            out_specs=pl.BlockSpec((1, H, W, tn), lambda n, j, k: (n, 0, 0, j)),
            scratch_shapes=[pltpu.VMEM((H * W, tn), jnp.float32)],
        ),
        compiler_params=pltpu.CompilerParams(
            dimension_semantics=("parallel", "parallel", "arbitrary"),
            vmem_limit_bytes=vmem_limit,
        ),
    )(x_nhwc, w_hwio, shift)


# ----------------------------------------------------------------------------
# Parameter construction (deterministic, PyTorch-shaped) + forward
# ----------------------------------------------------------------------------
def init_params(key, in_channels, num_classes, eps=1e-5):
    c0, c1, c2 = in_channels, in_channels // 2, in_channels // 4
    dims = [(c1, c0), (c2, c1), (num_classes, c2)]
    params = []
    for i, (cout, cin) in enumerate(dims):
        key, kw, kb, kg, kbt, km, kv = jax.random.split(key, 7)
        w = 0.1 * jax.random.normal(kw, (cout, cin, 3, 3), jnp.float32)  # OIHW
        b = 0.1 * jax.random.normal(kb, (cout,), jnp.float32)
        layer = {"w": w, "b": b}
        if i < 2:  # first two convs are followed by BatchNorm + ReLU
            gamma = 1.0 + 0.1 * jax.random.normal(kg, (cout,), jnp.float32)
            beta = 0.05 * jax.random.normal(kbt, (cout,), jnp.float32)
            mean = 0.1 * jax.random.normal(km, (cout,), jnp.float32)
            var = 1.0 + 0.1 * jax.random.uniform(kv, (cout,), jnp.float32)
            layer.update(gamma=gamma, beta=beta, mean=mean, var=var, eps=eps)
        params.append(layer)
    return params


def aux_head_forward(x_nchw, params, compute_dtype=jnp.bfloat16):
    """Pallas forward. x_nchw: (N, C, H, W) -> (N, num_classes, H, W) float32."""
    N, C, H, W = x_nchw.shape
    Wp = ((W + 7) // 8) * 8
    x = jnp.transpose(x_nchw, (0, 2, 3, 1)).astype(compute_dtype)   # NCHW -> NHWC
    if Wp != W:
        # Zero-pad width to a sublane multiple; padded columns act as the
        # right-hand "same" zero padding and are kept exactly zero per layer.
        x = jnp.pad(x, ((0, 0), (0, 0), (0, Wp - W), (0, 0)))
    num_out = None
    for p in params:
        w = jnp.transpose(p["w"], (2, 3, 1, 0)).astype(jnp.float32)  # OIHW -> HWIO
        cout = w.shape[-1]
        if "gamma" in p:
            # Fold eval-mode BN: y = conv(x, w*inv) + ((b - mean)*inv + beta)
            inv = p["gamma"] / jnp.sqrt(p["var"] + p["eps"])
            w = w * inv
            shift = (p["b"] - p["mean"]) * inv + p["beta"]
            relu = True
        else:
            shift = p["b"]
            relu = False
        # Lane-dense output channels: pad Cout up to a multiple of 128.
        coutp = ((cout + 127) // 128) * 128
        if coutp != cout:
            w = jnp.pad(w, ((0, 0), (0, 0), (0, 0), (0, coutp - cout)))
            shift = jnp.pad(shift, (0, coutp - cout))
        # Previous layer may have produced padded (exactly-zero) channels.
        cin_x = x.shape[-1]
        if w.shape[2] != cin_x:
            w = jnp.pad(w, ((0, 0), (0, 0), (0, cin_x - w.shape[2]), (0, 0)))
        x = conv3x3_fused(x, w.astype(compute_dtype),
                          shift.reshape(1, coutp).astype(jnp.float32),
                          relu, W_valid=W, out_dtype=compute_dtype)
        num_out = cout
    x = x[:, :, :W, :num_out].astype(jnp.float32)
    return jnp.transpose(x, (0, 3, 1, 2))                            # NHWC -> NCHW


# ----------------------------------------------------------------------------
# Pure-JAX reference (same semantics) for verification
# ----------------------------------------------------------------------------
def aux_head_reference(x_nchw, params):
    x = x_nchw
    for p in params:
        x = jax.lax.conv_general_dilated(
            x, p["w"], window_strides=(1, 1), padding=((1, 1), (1, 1)),
            dimension_numbers=("NCHW", "OIHW", "NCHW"),
            precision=jax.lax.Precision.HIGHEST)
        x = x + p["b"][None, :, None, None]
        if "gamma" in p:
            inv = p["gamma"] / jnp.sqrt(p["var"] + p["eps"])
            x = (x - p["mean"][None, :, None, None]) * inv[None, :, None, None] \
                + p["beta"][None, :, None, None]
            x = jnp.maximum(x, 0.0)
    return x


if __name__ == "__main__":
    # ---- Primary check: aligned width (small stand-in for in_channels=1024)
    N, C, H, W = 2, 16, 16, 16
    num_classes = 3

    key = jax.random.PRNGKey(0)
    kx, kp, kx2, kp2 = jax.random.split(key, 4)
    x = jax.random.normal(kx, (N, C, H, W), jnp.float32)   # NCHW, like PyTorch
    params = init_params(kp, in_channels=C, num_classes=num_classes)

    ref = jax.block_until_ready(aux_head_reference(x, params))

    # Exact path (f32 matmuls) — tight tolerance.
    out_f32 = jax.block_until_ready(
        aux_head_forward(x, params, compute_dtype=jnp.float32))
    assert out_f32.shape == (N, num_classes, H, W), out_f32.shape
    assert jnp.allclose(out_f32, ref, atol=5e-4, rtol=5e-4), \
        float(jnp.max(jnp.abs(out_f32 - ref)))

    # Default fast path (bf16 matmul inputs, f32 accumulate) — loose tolerance.
    out_bf16 = jax.block_until_ready(aux_head_forward(x, params))
    assert out_bf16.shape == (N, num_classes, H, W), out_bf16.shape
    err = float(jnp.max(jnp.abs(out_bf16 - ref)))
    assert err < 0.15, err

    # ---- Secondary check: W % 8 != 0 exercises the padded-width path.
    N2, C2, H2, W2 = 1, 8, 8, 12
    x2 = jax.random.normal(kx2, (N2, C2, H2, W2), jnp.float32)
    params2 = init_params(kp2, in_channels=C2, num_classes=num_classes)
    ref2 = jax.block_until_ready(aux_head_reference(x2, params2))
    out2 = jax.block_until_ready(
        aux_head_forward(x2, params2, compute_dtype=jnp.float32))
    assert out2.shape == (N2, num_classes, H2, W2), out2.shape
    assert jnp.allclose(out2, ref2, atol=1e-3, rtol=1e-3), \
        float(jnp.max(jnp.abs(out2 - ref2)))

    print("KERNEL_OK")
</pallas_src>

<mosaic_0001>
module attributes {stable_mosaic.version = 11 : i64} {
  func.func @_conv3x3_kernel(%arg0: i32, %arg1: i32, %arg2: i32, %arg3: memref<1x16x16x16xf32, #tpu.memory_space<vmem>>, %arg4: memref<3x3x16x128xf32, #tpu.memory_space<vmem>>, %arg5: memref<1x128xf32, #tpu.memory_space<vmem>>, %arg6: memref<1x16x16x128xf32, #tpu.memory_space<vmem>>, %arg7: memref<256x128xf32, #tpu.memory_space<vmem>>) attributes {dimension_semantics = [#tpu.dimension_semantics<parallel>, #tpu.dimension_semantics<parallel>, #tpu.dimension_semantics<arbitrary>], iteration_bounds = array<i64: 2, 1, 1>, scalar_prefetch = 0 : i64, scratch_operands = 1 : i64, tpu.core_type = #tpu.core_type<tc>, window_params = [{transform_indices = @transform_0, window_bounds = array<i64: 1, 16, 16, 16>}, {transform_indices = @transform_1, window_bounds = array<i64: 3, 3, 16, 128>}, {transform_indices = @transform_2, window_bounds = array<i64: 1, 128>}, {transform_indices = @transform_3, window_bounds = array<i64: 1, 16, 16, 128>}]} {
    %0 = tpu.iota {dimensions = array<i32: 0>} : vector<256x1xi32>
    %c16_i32 = arith.constant 16 : i32
    %c0_i32 = arith.constant 0 : i32
    %1 = arith.cmpi eq, %c16_i32, %c0_i32 : i32
    %c1_i32 = arith.constant 1 : i32
    %2 = arith.select %1, %c1_i32, %c16_i32 : i32
    %3 = vector.broadcast %2 : i32 to vector<256x1xi32>
    %4 = arith.remsi %0, %3 : vector<256x1xi32>
    %c0_i32_0 = arith.constant 0 : i32
    %5 = vector.broadcast %c0_i32_0 : i32 to vector<256x1xi32>
    %6 = arith.cmpi ne, %4, %5 : vector<256x1xi32>
    %c0_i32_1 = arith.constant 0 : i32
    %7 = vector.broadcast %c0_i32_1 : i32 to vector<256x1xi32>
    %8 = arith.cmpi slt, %4, %7 : vector<256x1xi32>
    %c0_i32_2 = arith.constant 0 : i32
    %9 = arith.cmpi slt, %2, %c0_i32_2 : i32
    %10 = vector.broadcast %9 : i1 to vector<256x1xi1>
    %11 = vector.broadcast %10 : vector<256x1xi1> to vector<256x1xi1>
    %12 = arith.xori %8, %11 : vector<256x1xi1>
    %13 = arith.andi %12, %6 : vector<256x1xi1>
    %14 = vector.broadcast %2 : i32 to vector<256x1xi32>
    %15 = arith.addi %4, %14 : vector<256x1xi32>
    %16 = arith.select %13, %15, %4 : vector<256x1xi1>, vector<256x1xi32>
    %c0_i32_3 = arith.constant 0 : i32
    %17 = vector.broadcast %c0_i32_3 : i32 to vector<256x1xi32>
    %18 = arith.cmpi ne, %16, %17 : vector<256x1xi32>
    %c15_i32 = arith.constant 15 : i32
    %19 = vector.broadcast %c15_i32 : i32 to vector<256x1xi32>
    %20 = arith.cmpi ne, %16, %19 : vector<256x1xi32>
    %c0 = arith.constant 0 : index
    %c0_4 = arith.constant 0 : index
    %c0_5 = arith.constant 0 : index
    %c0_6 = arith.constant 0 : index
    %21 = vector.load %arg3[%c0, %c0_4, %c0_5, %c0_6] : memref<1x16x16x16xf32, #tpu.memory_space<vmem>>, vector<1x16x16x16xf32>
    %22 = vector.shape_cast %21 : vector<1x16x16x16xf32> to vector<16x16x16xf32>
    %23 = vector.shape_cast %22 : vector<16x16x16xf32> to vector<256x16xf32>
    %c1_i32_7 = arith.constant 1 : i32
    %24 = tpu.dynamic_rotate %23 by %c1_i32_7 dim 0 : vector<256x16xf32>, i32 -> vector<256x16xf32>
    %cst = arith.constant 0.000000e+00 : f32
    %25 = vector.shape_cast %18 : vector<256x1xi1> to vector<256x1xi1>
    %26 = vector.broadcast %25 : vector<256x1xi1> to vector<256x16xi1>
    %27 = vector.broadcast %cst : f32 to vector<256x16xf32>
    %28 = arith.select %26, %24, %27 : vector<256x16xi1>, vector<256x16xf32>
    %c255_i32 = arith.constant 255 : i32
    %29 = tpu.dynamic_rotate %23 by %c255_i32 dim 0 : vector<256x16xf32>, i32 -> vector<256x16xf32>
    %cst_8 = arith.constant 0.000000e+00 : f32
    %30 = vector.shape_cast %20 : vector<256x1xi1> to vector<256x1xi1>
    %31 = vector.broadcast %30 : vector<256x1xi1> to vector<256x16xi1>
    %32 = vector.broadcast %cst_8 : f32 to vector<256x16xf32>
    %33 = arith.select %31, %29, %32 : vector<256x16xi1>, vector<256x16xf32>
    %c1 = arith.constant 1 : index
    %c0_9 = arith.constant 0 : index
    %c0_10 = arith.constant 0 : index
    %c0_11 = arith.constant 0 : index
    %34 = vector.load %arg4[%c1, %c0_9, %c0_10, %c0_11] : memref<3x3x16x128xf32, #tpu.memory_space<vmem>>, vector<1x1x16x128xf32>
    %35 = vector.shape_cast %34 : vector<1x1x16x128xf32> to vector<16x128xf32>
    %cst_12 = arith.constant dense<0.000000e+00> : vector<256x128xf32>
    %36 = tpu.matmul %28, %35, %cst_12 {dimension_numbers = #tpu.dot_dimension_numbers<[1], [0], [0], [1], [0, 0, 1, 1], [], []>} : vector<256x16xf32>, vector<16x128xf32>, vector<256x128xf32> -> vector<256x128xf32>
    %c1_13 = arith.constant 1 : index
    %c1_14 = arith.constant 1 : index
    %c0_15 = arith.constant 0 : index
    %c0_16 = arith.constant 0 : index
    %37 = vector.load %arg4[%c1_13, %c1_14, %c0_15, %c0_16] : memref<3x3x16x128xf32, #tpu.memory_space<vmem>>, vector<1x1x16x128xf32>
    %38 = vector.shape_cast %37 : vector<1x1x16x128xf32> to vector<16x128xf32>
    %cst_17 = arith.constant dense<0.000000e+00> : vector<256x128xf32>
    %39 = tpu.matmul %23, %38, %cst_17 {dimension_numbers = #tpu.dot_dimension_numbers<[1], [0], [0], [1], [0, 0, 1, 1], [], []>} : vector<256x16xf32>, vector<16x128xf32>, vector<256x128xf32> -> vector<256x128xf32>
    %40 = arith.addf %36, %39 : vector<256x128xf32>
    %c1_18 = arith.constant 1 : index
    %c2 = arith.constant 2 : index
    %c0_19 = arith.constant 0 : index
    %c0_20 = arith.constant 0 : index
    %41 = vector.load %arg4[%c1_18, %c2, %c0_19, %c0_20] : memref<3x3x16x128xf32, #tpu.memory_space<vmem>>, vector<1x1x16x128xf32>
    %42 = vector.shape_cast %41 : vector<1x1x16x128xf32> to vector<16x128xf32>
    %cst_21 = arith.constant dense<0.000000e+00> : vector<256x128xf32>
    %43 = tpu.matmul %33, %42, %cst_21 {dimension_numbers = #tpu.dot_dimension_numbers<[1], [0], [0], [1], [0, 0, 1, 1], [], []>} : vector<256x16xf32>, vector<16x128xf32>, vector<256x128xf32> -> vector<256x128xf32>
    %44 = arith.addf %40, %43 : vector<256x128xf32>
    %c0_i32_22 = arith.constant 0 : i32
    %45 = arith.cmpi eq, %arg2, %c0_i32_22 : i32
    %46 = arith.extui %45 : i1 to i32
    %c0_i32_23 = arith.constant 0 : i32
    %47 = arith.cmpi ne, %46, %c0_i32_23 : i32
    scf.if %47 {
      %c0_80 = arith.constant 0 : index
      %c0_81 = arith.constant 0 : index
      %112 = vector.load %arg7[%c0_80, %c0_81] : memref<256x128xf32, #tpu.memory_space<vmem>>, vector<256x128xf32>
      tpu.vector_store %arg7[%c0_80, %c0_81], %44 {strides = array<i32>} : memref<256x128xf32, #tpu.memory_space<vmem>>, vector<256x128xf32>,
    } else {
    }
    %c0_i32_24 = arith.constant 0 : i32
    %48 = arith.cmpi ne, %arg2, %c0_i32_24 : i32
    %49 = arith.extui %48 : i1 to i32
    %c0_i32_25 = arith.constant 0 : i32
    %50 = arith.cmpi ne, %49, %c0_i32_25 : i32
    scf.if %50 {
      %c0_80 = arith.constant 0 : index
      %c0_81 = arith.constant 0 : index
      %112 = vector.load %arg7[%c0_80, %c0_81] : memref<256x128xf32, #tpu.memory_space<vmem>>, vector<256x128xf32>
      %113 = arith.addf %112, %44 : vector<256x128xf32>
      %c0_82 = arith.constant 0 : index
      %c0_83 = arith.constant 0 : index
      %114 = vector.load %arg7[%c0_82, %c0_83] : memref<256x128xf32, #tpu.memory_space<vmem>>, vector<256x128xf32>
      tpu.vector_store %arg7[%c0_82, %c0_83], %113 {strides = array<i32>} : memref<256x128xf32, #tpu.memory_space<vmem>>, vector<256x128xf32>,
    } else {
    }
    %c0_26 = arith.constant 0 : index
    %c0_27 = arith.constant 0 : index
    %c0_28 = arith.constant 0 : index
    %c0_29 = arith.constant 0 : index
    %51 = vector.load %arg3[%c0_26, %c0_27, %c0_28, %c0_29] : memref<1x16x16x16xf32, #tpu.memory_space<vmem>>, vector<1x15x16x16xf32>
    %52 = vector.shape_cast %51 : vector<1x15x16x16xf32> to vector<15x16x16xf32>
    %53 = vector.shape_cast %52 : vector<15x16x16xf32> to vector<240x16xf32>
    %54 = vector.extract_strided_slice %18 {offsets = [0, 0], sizes = [240, 1], strides = [1, 1]} : vector<256x1xi1> to vector<240x1xi1>
    %c1_i32_30 = arith.constant 1 : i32
    %55 = tpu.dynamic_rotate %53 by %c1_i32_30 dim 0 : vector<240x16xf32>, i32 -> vector<240x16xf32>
    %cst_31 = arith.constant 0.000000e+00 : f32
    %56 = vector.shape_cast %54 : vector<240x1xi1> to vector<240x1xi1>
    %57 = vector.broadcast %56 : vector<240x1xi1> to vector<240x16xi1>
    %58 = vector.broadcast %cst_31 : f32 to vector<240x16xf32>
    %59 = arith.select %57, %55, %58 : vector<240x16xi1>, vector<240x16xf32>
    %60 = vector.extract_strided_slice %20 {offsets = [0, 0], sizes = [240, 1], strides = [1, 1]} : vector<256x1xi1> to vector<240x1xi1>
    %c239_i32 = arith.constant 239 : i32
    %61 = tpu.dynamic_rotate %53 by %c239_i32 dim 0 : vector<240x16xf32>, i32 -> vector<240x16xf32>
    %cst_32 = arith.constant 0.000000e+00 : f32
    %62 = vector.shape_cast %60 : vector<240x1xi1> to vector<240x1xi1>
    %63 = vector.broadcast %62 : vector<240x1xi1> to vector<240x16xi1>
    %64 = vector.broadcast %cst_32 : f32 to vector<240x16xf32>
    %65 = arith.select %63, %61, %64 : vector<240x16xi1>, vector<240x16xf32>
    %c0_33 = arith.constant 0 : index
    %c0_34 = arith.constant 0 : index
    %c0_35 = arith.constant 0 : index
    %c0_36 = arith.constant 0 : index
    %66 = vector.load %arg4[%c0_33, %c0_34, %c0_35, %c0_36] : memref<3x3x16x128xf32, #tpu.memory_space<vmem>>, vector<1x1x16x128xf32>
    %67 = vector.shape_cast %66 : vector<1x1x16x128xf32> to vector<16x128xf32>
    %cst_37 = arith.constant dense<0.000000e+00> : vector<240x128xf32>
    %68 = tpu.matmul %59, %67, %cst_37 {dimension_numbers = #tpu.dot_dimension_numbers<[1], [0], [0], [1], [0, 0, 1, 1], [], []>} : vector<240x16xf32>, vector<16x128xf32>, vector<240x128xf32> -> vector<240x128xf32>
    %c0_38 = arith.constant 0 : index
    %c1_39 = arith.constant 1 : index
    %c0_40 = arith.constant 0 : index
    %c0_41 = arith.constant 0 : index
    %69 = vector.load %arg4[%c0_38, %c1_39, %c0_40, %c0_41] : memref<3x3x16x128xf32, #tpu.memory_space<vmem>>, vector<1x1x16x128xf32>
    %70 = vector.shape_cast %69 : vector<1x1x16x128xf32> to vector<16x128xf32>
    %cst_42 = arith.constant dense<0.000000e+00> : vector<240x128xf32>
    %71 = tpu.matmul %53, %70, %cst_42 {dimension_numbers = #tpu.dot_dimension_numbers<[1], [0], [0], [1], [0, 0, 1, 1], [], []>} : vector<240x16xf32>, vector<16x128xf32>, vector<240x128xf32> -> vector<240x128xf32>
    %72 = arith.addf %68, %71 : vector<240x128xf32>
    %c0_43 = arith.constant 0 : index
    %c2_44 = arith.constant 2 : index
    %c0_45 = arith.constant 0 : index
    %c0_46 = arith.constant 0 : index
    %73 = vector.load %arg4[%c0_43, %c2_44, %c0_45, %c0_46] : memref<3x3x16x128xf32, #tpu.memory_space<vmem>>, vector<1x1x16x128xf32>
    %74 = vector.shape_cast %73 : vector<1x1x16x128xf32> to vector<16x128xf32>
    %cst_47 = arith.constant dense<0.000000e+00> : vector<240x128xf32>
    %75 = tpu.matmul %65, %74, %cst_47 {dimension_numbers = #tpu.dot_dimension_numbers<[1], [0], [0], [1], [0, 0, 1, 1], [], []>} : vector<240x16xf32>, vector<16x128xf32>, vector<240x128xf32> -> vector<240x128xf32>
    %76 = arith.addf %72, %75 : vector<240x128xf32>
    %c16 = arith.constant 16 : index
    %c0_48 = arith.constant 0 : index
    %77 = vector.load %arg7[%c16, %c0_48] : memref<256x128xf32, #tpu.memory_space<vmem>>, vector<240x128xf32>
    %78 = arith.addf %77, %76 : vector<240x128xf32>
    %c16_49 = arith.constant 16 : index
    %c0_50 = arith.constant 0 : index
    %79 = vector.load %arg7[%c16_49, %c0_50] : memref<256x128xf32, #tpu.memory_space<vmem>>, vector<240x128xf32>
    tpu.vector_store %arg7[%c16_49, %c0_50], %78 {strides = array<i32>} : memref<256x128xf32, #tpu.memory_space<vmem>>, vector<240x128xf32>,
    %c0_51 = arith.constant 0 : index
    %c1_52 = arith.constant 1 : index
    %c0_53 = arith.constant 0 : index
    %c0_54 = arith.constant 0 : index
    %80 = vector.load %arg3[%c0_51, %c1_52, %c0_53, %c0_54] : memref<1x16x16x16xf32, #tpu.memory_space<vmem>>, vector<1x15x16x16xf32>
    %81 = vector.shape_cast %80 : vector<1x15x16x16xf32> to vector<15x16x16xf32>
    %82 = vector.shape_cast %81 : vector<15x16x16xf32> to vector<240x16xf32>
    %83 = vector.extract_strided_slice %18 {offsets = [0, 0], sizes = [240, 1], strides = [1, 1]} : vector<256x1xi1> to vector<240x1xi1>
    %c1_i32_55 = arith.constant 1 : i32
    %84 = tpu.dynamic_rotate %82 by %c1_i32_55 dim 0 : vector<240x16xf32>, i32 -> vector<240x16xf32>
    %cst_56 = arith.constant 0.000000e+00 : f32
    %85 = vector.shape_cast %83 : vector<240x1xi1> to vector<240x1xi1>
    %86 = vector.broadcast %85 : vector<240x1xi1> to vector<240x16xi1>
    %87 = vector.broadcast %cst_56 : f32 to vector<240x16xf32>
    %88 = arith.select %86, %84, %87 : vector<240x16xi1>, vector<240x16xf32>
    %89 = vector.extract_strided_slice %20 {offsets = [0, 0], sizes = [240, 1], strides = [1, 1]} : vector<256x1xi1> to vector<240x1xi1>
    %c239_i32_57 = arith.constant 239 : i32
    %90 = tpu.dynamic_rotate %82 by %c239_i32_57 dim 0 : vector<240x16xf32>, i32 -> vector<240x16xf32>
    %cst_58 = arith.constant 0.000000e+00 : f32
    %91 = vector.shape_cast %89 : vector<240x1xi1> to vector<240x1xi1>
    %92 = vector.broadcast %91 : vector<240x1xi1> to vector<240x16xi1>
    %93 = vector.broadcast %cst_58 : f32 to vector<240x16xf32>
    %94 = arith.select %92, %90, %93 : vector<240x16xi1>, vector<240x16xf32>
    %c2_59 = arith.constant 2 : index
    %c0_60 = arith.constant 0 : index
    %c0_61 = arith.constant 0 : index
    %c0_62 = arith.constant 0 : index
    %95 = vector.load %arg4[%c2_59, %c0_60, %c0_61, %c0_62] : memref<3x3x16x128xf32, #tpu.memory_space<vmem>>, vector<1x1x16x128xf32>
    %96 = vector.shape_cast %95 : vector<1x1x16x128xf32> to vector<16x128xf32>
    %cst_63 = arith.constant dense<0.000000e+00> : vector<240x128xf32>
    %97 = tpu.matmul %88, %96, %cst_63 {dimension_numbers = #tpu.dot_dimension_numbers<[1], [0], [0], [1], [0, 0, 1, 1], [], []>} : vector<240x16xf32>, vector<16x128xf32>, vector<240x128xf32> -> vector<240x128xf32>
    %c2_64 = arith.constant 2 : index
    %c1_65 = arith.constant 1 : index
    %c0_66 = arith.constant 0 : index
    %c0_67 = arith.constant 0 : index
    %98 = vector.load %arg4[%c2_64, %c1_65, %c0_66, %c0_67] : memref<3x3x16x128xf32, #tpu.memory_space<vmem>>, vector<1x1x16x128xf32>
    %99 = vector.shape_cast %98 : vector<1x1x16x128xf32> to vector<16x128xf32>
    %cst_68 = arith.constant dense<0.000000e+00> : vector<240x128xf32>
    %100 = tpu.matmul %82, %99, %cst_68 {dimension_numbers = #tpu.dot_dimension_numbers<[1], [0], [0], [1], [0, 0, 1, 1], [], []>} : vector<240x16xf32>, vector<16x128xf32>, vector<240x128xf32> -> vector<240x128xf32>
    %101 = arith.addf %97, %100 : vector<240x128xf32>
    %c2_69 = arith.constant 2 : index
    %c2_70 = arith.constant 2 : index
    %c0_71 = arith.constant 0 : index
    %c0_72 = arith.constant 0 : index
    %102 = vector.load %arg4[%c2_69, %c2_70, %c0_71, %c0_72] : memref<3x3x16x128xf32, #tpu.memory_space<vmem>>, vector<1x1x16x128xf32>
    %103 = vector.shape_cast %102 : vector<1x1x16x128xf32> to vector<16x128xf32>
    %cst_73 = arith.constant dense<0.000000e+00> : vector<240x128xf32>
    %104 = tpu.matmul %94, %103, %cst_73 {dimension_numbers = #tpu.dot_dimension_numbers<[1], [0], [0], [1], [0, 0, 1, 1], [], []>} : vector<240x16xf32>, vector<16x128xf32>, vector<240x128xf32> -> vector<240x128xf32>
    %105 = arith.addf %101, %104 : vector<240x128xf32>
    %c0_74 = arith.constant 0 : index
    %c0_75 = arith.constant 0 : index
    %106 = vector.load %arg7[%c0_74, %c0_75] : memref<256x128xf32, #tpu.memory_space<vmem>>, vector<240x128xf32>
    %107 = arith.addf %106, %105 : vector<240x128xf32>
    %c0_76 = arith.constant 0 : index
    %c0_77 = arith.constant 0 : index
    %108 = vector.load %arg7[%c0_76, %c0_77] : memref<256x128xf32, #tpu.memory_space<vmem>>, vector<240x128xf32>
    tpu.vector_store %arg7[%c0_76, %c0_77], %107 {strides = array<i32>} : memref<256x128xf32, #tpu.memory_space<vmem>>, vector<240x128xf32>,
    %c0_i32_78 = arith.constant 0 : i32
    %109 = arith.cmpi eq, %arg2, %c0_i32_78 : i32
    %110 = arith.extui %109 : i1 to i32
    %c0_i32_79 = arith.constant 0 : i32
    %111 = arith.cmpi ne, %110, %c0_i32_79 : i32
    scf.if %111 {
      %c0_80 = arith.constant 0 : index
      %c0_81 = arith.constant 0 : index
      %112 = vector.load %arg7[%c0_80, %c0_81] : memref<256x128xf32, #tpu.memory_space<vmem>>, vector<256x128xf32>
      %c0_82 = arith.constant 0 : index
      %c0_83 = arith.constant 0 : index
      %113 = vector.load %arg5[%c0_82, %c0_83] : memref<1x128xf32, #tpu.memory_space<vmem>>, vector<1x128xf32>
      %114 = vector.broadcast %113 : vector<1x128xf32> to vector<256x128xf32>
      %115 = arith.addf %112, %114 : vector<256x128xf32>
      %cst_84 = arith.constant 0.000000e+00 : f32
      %116 = vector.broadcast %cst_84 : f32 to vector<256x128xf32>
      %117 = arith.maximumf %115, %116 : vector<256x128xf32>
      %118 = vector.shape_cast %117 : vector<256x128xf32> to vector<16x16x128xf32>
      %c0_85 = arith.constant 0 : index
      %c0_86 = arith.constant 0 : index
      %c0_87 = arith.constant 0 : index
      %c0_88 = arith.constant 0 : index
      %119 = vector.load %arg6[%c0_85, %c0_86, %c0_87, %c0_88] : memref<1x16x16x128xf32, #tpu.memory_space<vmem>>, vector<1x16x16x128xf32>
      %120 = vector.shape_cast %119 : vector<1x16x16x128xf32> to vector<16x16x128xf32>
      %121 = vector.shape_cast %118 : vector<16x16x128xf32> to vector<1x16x16x128xf32>
      tpu.vector_store %arg6[%c0_85, %c0_86, %c0_87, %c0_88], %121 {strides = array<i32>} : memref<1x16x16x128xf32, #tpu.memory_space<vmem>>, vector<1x16x16x128xf32>,
    } else {
    }
    return
  }
  func.func @transform_0(%arg0: i32, %arg1: i32, %arg2: i32) -> (i32, i32, i32, i32) {
    %c0_i32 = arith.constant 0 : i32
    %c0_i32_0 = arith.constant 0 : i32
    %c0_i32_1 = arith.constant 0 : i32
    return %arg0, %c0_i32, %c0_i32_0, %arg2 : i32, i32, i32, i32
  }
  func.func @transform_1(%arg0: i32, %arg1: i32, %arg2: i32) -> (i32, i32, i32, i32) {
    %c0_i32 = arith.constant 0 : i32
    %c0_i32_0 = arith.constant 0 : i32
    %c0_i32_1 = arith.constant 0 : i32
    return %c0_i32, %c0_i32_0, %arg2, %arg1 : i32, i32, i32, i32
  }
  func.func @transform_2(%arg0: i32, %arg1: i32, %arg2: i32) -> (i32, i32) {
    %c0_i32 = arith.constant 0 : i32
    %c0_i32_0 = arith.constant 0 : i32
    return %c0_i32, %arg1 : i32, i32
  }
  func.func @transform_3(%arg0: i32, %arg1: i32, %arg2: i32) -> (i32, i32, i32, i32) {
    %c0_i32 = arith.constant 0 : i32
    %c0_i32_0 = arith.constant 0 : i32
    %c0_i32_1 = arith.constant 0 : i32
    return %arg0, %c0_i32, %c0_i32_0, %arg1 : i32, i32, i32, i32
  }
}

</mosaic_0001>

<llo_original>
// kernel: tpu_custom_call.1
$region0: #{tpu_custom_call.1}
  #allocation0 [shape = 'u32[]', space=smem, size = 0x4, offset = 0x4, fixed_abs, tag = 'smem constant byte address 0x4 - core index']
  #allocation1 [shape = 'u32[144,128]{1,0:T(1,128)}', space=vmem, size = 0x12000, scoped, tag = 'internal scratch']
  #allocation2 [shape = 'f32[256,128]{1,0:T(8,128)}', space=vmem, size = 0x20000, scoped, tag = 'scratch operand']
  %s0 = inlined_call_operand.hbm [shape: f32[2,16,16,16], index: 0, kind: input, shape index: {}]
  %s1 = inlined_call_operand.hbm [shape: f32[3,3,16,128], index: 1, kind: input, shape index: {}]
  %s2 = inlined_call_operand.vmem [shape: f32[1,128], index: 2, kind: input, shape index: {}]
  %s3 = inlined_call_operand.hbm [shape: f32[2,16,16,128], index: 3, kind: output, shape index: {}]
  %s4 = sld [smem:[#allocation0]]
  $region65: #{tpu_custom_call.1} parent=0
    _
  %s6 = ssub.s32 1, %s4
  %s7 = scalar_select 0, %s6, %s4
  $region1: #{tpu_custom_call.1} parent=0
    #allocation3 [shape = 'u8[262144]{0}', space=vmem, size = 0x40000, scoped, tag = 'input window, operand 0']
    #allocation4 [shape = 's32[2]{0}', space=sflag, size = 0x8, scoped, tag = 'scoped memory for tpu_custom_call.1']
    #allocation5 [shape = 's32[2]{0}', space=sflag, size = 0x8, scoped, tag = 'scoped memory for tpu_custom_call.1']
    #allocation6 [shape = 'u8[73728]{0}', space=vmem, size = 0x12000, scoped, tag = 'input window, operand 1, single buffered']
    #allocation7 [shape = 's32[1]{0}', space=sflag, size = 0x4, scoped, tag = 'scoped memory for tpu_custom_call.1']
    #allocation8 [shape = 'u8[262144]{0}', space=vmem, size = 0x40000, scoped, tag = 'output window, operand 0']
    %8 = vsyncpa [#allocation4], 0
    %s9 = scalar_lea.sflag [#allocation4], 1
    %10 = vsyncpa %s9, 0
    %11 = vsyncpa [#allocation7], 0
    %12 = vsyncpa [#allocation5], 0
    %s13 = scalar_lea.sflag [#allocation5], 1
    %14 = vsyncpa %s13, 0
    loop: start=0, step=1, limit=4
    $region2: #{tpu_custom_call.1} parent=1 // loop_pre_header
      _
    $region3: #{tpu_custom_call.1} parent=1 // loop_header
      %s16 = sphi 0, %s20
      %p17 = scmp.ge.s32.totalorder %s16, 4
      %s23 = sphi 0, %s42
      %s24 = sphi 0, %s38
      %s25 = sphi 0, %s34
      %s26 = sphi 0, %s23
      %s27 = sphi 0, %s24
      %s28 = sphi 0, %s25
      %s29 = sphi 0, %s26
      %s30 = sphi 0, %s27
      %s31 = sphi 0, %s28
      %s47 = sphi 0, %s49
      %s50 = sphi 0, %s47
      %s51 = sphi 0, %s50
      %s67 = sphi 0, %s51
      %s75 = sphi 0, %s77
      %s78 = sphi 0, %s75
      %s79 = sphi 0, %s78
      %s95 = sphi 0, %s79
      %s101 = sphi 0, %s103
      %s104 = sphi 0, %s101
      %s105 = sphi 0, %s104
      %s121 = sphi 0, %s105
      %s129 = sphi 0, %s131
      %s132 = sphi 0, %s129
      %s133 = sphi 0, %s132
      %s149 = sphi 0, %s133
    $region4: #{tpu_custom_call.1} parent=1 // loop_header_branch
      %19 = sbr.rel (%p17) target = $region8
    $region5: #{tpu_custom_call.1} parent=1 // loop_body
      %s21 = ssub.s32 %s16, 1
      %s22 = ssub.s32 %s16, 2
      %s32 = sadd.s32 1, %s25
      %p33 = scmp.ge.s32.totalorder %s32, 1
      %s34 = scalar_select %p33, 0, %s32
      %s35 = sadd.s32 1, %s24
      %s36 = scalar_select %p33, %s35, %s24
      %p37 = scmp.ge.s32.totalorder %s36, 1
      %s38 = scalar_select %p37, 0, %s36
      %s39 = sadd.s32 1, %s23
      %s40 = scalar_select %p37, %s39, %s23
      %p41 = scmp.ge.s32.totalorder %s40, 2
      %s42 = scalar_select %p41, 0, %s40
      %s43 = ssub.s32 %s23, %s42
      %s44 = ssub.s32 %s25, %s34
      %s45 = sor.u32 %s43, %s44
      %p46 = scmp.eq.s32.totalorder %s45, 0
      %s48 = sadd.s32 %s47, 1
      %s49 = scalar_select %p46, %s47, %s48
      %p52 = pneg %p46
      %p53 = scmp.eq.s32.totalorder %s16, 1
      %p54 = por %p52, %p53
      %p55 = scmp.ne.s32.totalorder %s47, %s50
      %p56 = scmp.eq.s32.totalorder %s16, 0
      %p57 = por %p55, %p56
      %p58 = scmp.ne.s32.totalorder %s47, %s50
      %p59 = scmp.eq.s32.totalorder %s21, 1
      %p60 = por %p58, %p59
      %p61 = scmp.ne.s32.totalorder %s50, %s51
      %p62 = scmp.eq.s32.totalorder %s21, 0
      %p63 = por %p61, %p62
      %p64 = scmp.ne.s32.totalorder %s50, %s51
      %p65 = scmp.eq.s32.totalorder %s22, 1
      %p66 = por %p64, %p65
      %p68 = scmp.ne.s32.totalorder %s51, %s67
      %p69 = scmp.eq.s32.totalorder %s22, 0
      %p70 = por %p68, %p69
      %s71 = ssub.s32 %s25, %s34
      %s72 = ssub.s32 %s24, %s38
      %s73 = sor.u32 %s71, %s72
      %p74 = scmp.eq.s32.totalorder %s73, 0
      %s76 = sadd.s32 %s75, 1
      %s77 = scalar_select %p74, %s75, %s76
      %p80 = pneg %p74
      %p81 = scmp.eq.s32.totalorder %s16, 1
      %p82 = por %p80, %p81
      %p83 = scmp.ne.s32.totalorder %s75, %s78
      %p84 = scmp.eq.s32.totalorder %s16, 0
      %p85 = por %p83, %p84
      %p86 = scmp.ne.s32.totalorder %s75, %s78
      %p87 = scmp.eq.s32.totalorder %s21, 1
      %p88 = por %p86, %p87
      %p89 = scmp.ne.s32.totalorder %s78, %s79
      %p90 = scmp.eq.s32.totalorder %s21, 0
      %p91 = por %p89, %p90
      %p92 = scmp.ne.s32.totalorder %s78, %s79
      %p93 = scmp.eq.s32.totalorder %s22, 1
      %p94 = por %p92, %p93
      %p96 = scmp.ne.s32.totalorder %s79, %s95
      %p97 = scmp.eq.s32.totalorder %s22, 0
      %p98 = por %p96, %p97
      %s99 = ssub.s32 %s24, %s38
      %p100 = scmp.eq.s32.totalorder %s99, 0
      %s102 = sadd.s32 %s101, 1
      %s103 = scalar_select %p100, %s101, %s102
      %p106 = pneg %p100
      %p107 = scmp.eq.s32.totalorder %s16, 1
      %p108 = por %p106, %p107
      %p109 = scmp.ne.s32.totalorder %s101, %s104
      %p110 = scmp.eq.s32.totalorder %s16, 0
      %p111 = por %p109, %p110
      %p112 = scmp.ne.s32.totalorder %s101, %s104
      %p113 = scmp.eq.s32.totalorder %s21, 1
      %p114 = por %p112, %p113
      %p115 = scmp.ne.s32.totalorder %s104, %s105
      %p116 = scmp.eq.s32.totalorder %s21, 0
      %p117 = por %p115, %p116
      %p118 = scmp.ne.s32.totalorder %s104, %s105
      %p119 = scmp.eq.s32.totalorder %s22, 1
      %p120 = por %p118, %p119
      %p122 = scmp.ne.s32.totalorder %s105, %s121
      %p123 = scmp.eq.s32.totalorder %s22, 0
      %p124 = por %p122, %p123
      %s125 = ssub.s32 %s23, %s42
      %s126 = ssub.s32 %s24, %s38
      %s127 = sor.u32 %s125, %s126
      %p128 = scmp.eq.s32.totalorder %s127, 0
      %s130 = sadd.s32 %s129, 1
      %s131 = scalar_select %p128, %s129, %s130
      %p134 = pneg %p128
      %p135 = scmp.eq.s32.totalorder %s16, 1
      %p136 = por %p134, %p135
      %p137 = scmp.ne.s32.totalorder %s129, %s132
      %p138 = scmp.eq.s32.totalorder %s16, 0
      %p139 = por %p137, %p138
      %p140 = scmp.ne.s32.totalorder %s129, %s132
      %p141 = scmp.eq.s32.totalorder %s21, 1
      %p142 = por %p140, %p141
      %p143 = scmp.ne.s32.totalorder %s132, %s133
      %p144 = scmp.eq.s32.totalorder %s21, 0
      %p145 = por %p143, %p144
      %p146 = scmp.ne.s32.totalorder %s132, %s133
      %p147 = scmp.eq.s32.totalorder %s22, 1
      %p148 = por %p146, %p147
      %p150 = scmp.ne.s32.totalorder %s133, %s149
      %p151 = scmp.eq.s32.totalorder %s22, 0
      %p152 = por %p150, %p151
      %p153 = scmp.le.s32.totalorder 1, %s16
      %p154 = scmp.lt.s32.totalorder %s16, 3
      %p155 = pnand %p153, %p154
      %p156 = pneg %p155
      // Predicated region
      $region9: #{tpu_custom_call.1} parent=5 // pred_check
        _
      $region10: #{tpu_custom_call.1} parent=5 // pred_check_branch
        %158 = sbr.rel (%p155) target = $region12
      $region11: #{tpu_custom_call.1} parent=5 // pred_region
        %s159 = ssub.s32 %s16, 1
        // Predicated region
        $region13: #{tpu_custom_call.1} parent=11 // pred_check
          %p160 = pneg %p91
        $region14: #{tpu_custom_call.1} parent=11 // pred_check_branch
          %162 = sbr.rel (%p160) target = $region16
        $region15: #{tpu_custom_call.1} parent=11 // pred_region
          %s163 = smul.u32 2, %s28
          %s165 = ssub.s32 2304, 2304
          %166 = vsyncadd [#allocation7], %s165
          %s167 = sadd.s32 %s27, %s163
          %s168 = smul.addr %s167, 128
          %s169 = scalar_lea.hbm %s1, %s168
          %s170 = sshll.u32 [#allocation6], 4
          %s171 = int_to_ptr.vmem [resolvable:$true] %s170
          %176 = dma.hbm_to_vmem [thread:$0]  %s169, 2304, %s171, [#allocation7], 128, 128, 8
        $region16: #{tpu_custom_call.1} parent=11 // pred_fallthru
          _
        // Predicated region
        $region17: #{tpu_custom_call.1} parent=11 // pred_check
          %p177 = pneg %p117
        $region18: #{tpu_custom_call.1} parent=11 // pred_check_branch
          %179 = sbr.rel (%p177) target = $region20
        $region19: #{tpu_custom_call.1} parent=11 // pred_region
          %p180 = scmp.lt.s32.totalorder %s27, 0
          %s181 = scalar_select %p180, %s27, 0
          %s182 = scalar_lea.vmem %s2, %s181
        $region20: #{tpu_custom_call.1} parent=11 // pred_fallthru
          _
      $region12: #{tpu_custom_call.1} parent=5 // pred_fallthru
        _
      %p183 = scmp.lt.s32.totalorder %s16, 2
      // Predicated region
      $region21: #{tpu_custom_call.1} parent=5 // pred_check
        %p184 = pneg %p183
      $region22: #{tpu_custom_call.1} parent=5 // pred_check_branch
        %186 = sbr.rel (%p184) target = $region24
      $region23: #{tpu_custom_call.1} parent=5 // pred_region
        // Predicated region
        $region25: #{tpu_custom_call.1} parent=23 // pred_check
          %p187 = pneg %p57
        $region26: #{tpu_custom_call.1} parent=23 // pred_check_branch
          %189 = sbr.rel (%p187) target = $region28
        $region27: #{tpu_custom_call.1} parent=23 // pred_region
          %s190 = sand.u32 %s47, 1
          %s191 = scalar_lea.sflag [#allocation4], %s190
          %s192 = sand.u32 %s47, 1
          %s193 = smul.addr %s192, 256
          %s194 = scalar_lea.vmem [#allocation3], %s193
          %s196 = ssub.s32 4096, 4096
          %197 = vsyncadd %s191, %s196
          %s198 = smul.addr %s23, 32
          %s199 = sadd.s32 %s25, %s198
          %s200 = smul.addr %s199, 128
          %s201 = scalar_lea.hbm %s0, %s200
          %s202 = sshll.u32 %s194, 4
          %s203 = int_to_ptr.vmem [resolvable:$true] %s202
          %208 = dma.hbm_to_vmem [thread:$0]  %s201, 4096, %s203, %s191, 128, 128, 8
        $region28: #{tpu_custom_call.1} parent=23 // pred_fallthru
          _
      $region24: #{tpu_custom_call.1} parent=5 // pred_fallthru
        _
      %p209 = scmp.le.s32.totalorder 1, %s16
      %p210 = scmp.lt.s32.totalorder %s16, 3
      %p211 = pnand %p209, %p210
      %p212 = pneg %p211
      // Predicated region
      $region29: #{tpu_custom_call.1} parent=5 // pred_check
        _
      $region30: #{tpu_custom_call.1} parent=5 // pred_check_branch
        %214 = sbr.rel (%p211) target = $region32
      $region31: #{tpu_custom_call.1} parent=5 // pred_region
        %s215 = ssub.s32 %s16, 1
        %s216 = sand.u32 %s50, 1
        %s217 = scalar_lea.sflag [#allocation4], %s216
        %s218 = sand.u32 %s50, 1
        %s219 = smul.addr %s218, 256
        %s220 = scalar_lea.vmem [#allocation3], %s219
        // Predicated region
        $region33: #{tpu_custom_call.1} parent=31 // pred_check
          %p221 = pneg %p63
        $region34: #{tpu_custom_call.1} parent=31 // pred_check_branch
          %223 = sbr.rel (%p221) target = $region36
        $region35: #{tpu_custom_call.1} parent=31 // pred_region
          %224 = dma.done %s217, 4096
        $region36: #{tpu_custom_call.1} parent=31 // pred_fallthru
          _
        // Predicated region
        $region37: #{tpu_custom_call.1} parent=31 // pred_check
          %p225 = pneg %p91
        $region38: #{tpu_custom_call.1} parent=31 // pred_check_branch
          %227 = sbr.rel (%p225) target = $region40
        $region39: #{tpu_custom_call.1} parent=31 // pred_region
          %228 = dma.done [#allocation7], 2304
        $region40: #{tpu_custom_call.1} parent=31 // pred_fallthru
          _
        %s229 = sand.u32 %s50, 1
        %s230 = scalar_lea.sflag [#allocation4], %s229
        %s231 = sand.u32 %s50, 1
        %s232 = smul.addr %s231, 256
        %s233 = scalar_lea.vmem [#allocation3], %s232
        %p234 = pneg %p63
        %p235 = pneg %p60
        %p236 = pneg %p91
        %p237 = pneg %p88
        %p238 = scmp.lt.s32.totalorder %s27, 0
        %s239 = scalar_select %p238, %s27, 0
        %s240 = scalar_lea.vmem %s2, %s239
        %p241 = pneg %p117
        %p242 = pneg %p114
        %p243 = pneg %p145
        %p244 = pneg %p142
        %s245 = sand.u32 %s132, 1
        %s246 = scalar_lea.sflag [#allocation5], %s245
        %s247 = sand.u32 %s132, 1
        %s248 = smul.addr %s247, 256
        %s249 = scalar_lea.vmem [#allocation8], %s248
        %s250 = smul.u32 2, %s28
        %p251 = scmp.lt.s32.totalorder %s27, 0
        %s252 = scalar_select %p251, %s27, 0
        %s253 = scalar_lea.vmem %s2, %s252
        %v254 = vlaneseq
        %v255 = vshrl.u32 %v254, 7
        %v256 = vadd.s32 %v255, 8
        %v257 = vadd.s32 %v255, 16
        %v258 = vadd.s32 %v255, 24
        %v259 = vadd.s32 %v255, 32
        %v260 = vadd.s32 %v255, 40
        %v261 = vadd.s32 %v255, 48
        %v262 = vadd.s32 %v255, 56
        %v263 = vadd.s32 %v255, 64
        %v264 = vadd.s32 %v255, 72
        %v265 = vadd.s32 %v255, 80
        %v266 = vadd.s32 %v255, 88
        %v267 = vadd.s32 %v255, 96
        %v268 = vadd.s32 %v255, 104
        %v269 = vadd.s32 %v255, 112
        %v270 = vadd.s32 %v255, 120
        %v271 = vadd.s32 %v255, 128
        %v272 = vadd.s32 %v255, 136
        %v273 = vadd.s32 %v255, 144
        %v274 = vadd.s32 %v255, 152
        %v275 = vadd.s32 %v255, 160
        %v276 = vadd.s32 %v255, 168
        %v277 = vadd.s32 %v255, 176
        %v278 = vadd.s32 %v255, 184
        %v279 = vadd.s32 %v255, 192
        %v280 = vadd.s32 %v255, 200
        %v281 = vadd.s32 %v255, 208
        %v282 = vadd.s32 %v255, 216
        %v283 = vadd.s32 %v255, 224
        %v284 = vadd.s32 %v255, 232
        %v285 = vadd.s32 %v255, 240
        %v286 = vadd.s32 %v255, 248
        %vm287 = vcmp.lt.s32.totalorder %v255, 0
        %v288 = vsub.s32 0, %v255
        %v289 = vsel %vm287, %v288, %v255
        %v290 = vshrl.u32 %v289, 4
        %v291 = vand.u32 %v289, 15
        %v292 = vsub.s32 0, %v291
        %v293 = vsel %vm287, %v292, %v291
        %vm294 = vcmp.lt.s32.totalorder %v256, 0
        %v295 = vsub.s32 0, %v256
        %v296 = vsel %vm294, %v295, %v256
        %v297 = vshrl.u32 %v296, 4
        %v298 = vand.u32 %v296, 15
        %v299 = vsub.s32 0, %v298
        %v300 = vsel %vm294, %v299, %v298
        %vm301 = vcmp.lt.s32.totalorder %v257, 0
        %v302 = vsub.s32 0, %v257
        %v303 = vsel %vm301, %v302, %v257
        %v304 = vshrl.u32 %v303, 4
        %v305 = vand.u32 %v303, 15
        %v306 = vsub.s32 0, %v305
        %v307 = vsel %vm301, %v306, %v305
        %vm308 = vcmp.lt.s32.totalorder %v258, 0
        %v309 = vsub.s32 0, %v258
        %v310 = vsel %vm308, %v309, %v258
        %v311 = vshrl.u32 %v310, 4
        %v312 = vand.u32 %v310, 15
        %v313 = vsub.s32 0, %v312
        %v314 = vsel %vm308, %v313, %v312
        %vm315 = vcmp.lt.s32.totalorder %v259, 0
        %v316 = vsub.s32 0, %v259
        %v317 = vsel %vm315, %v316, %v259
        %v318 = vshrl.u32 %v317, 4
        %v319 = vand.u32 %v317, 15
        %v320 = vsub.s32 0, %v319
        %v321 = vsel %vm315, %v320, %v319
        %vm322 = vcmp.lt.s32.totalorder %v260, 0
        %v323 = vsub.s32 0, %v260
        %v324 = vsel %vm322, %v323, %v260
        %v325 = vshrl.u32 %v324, 4
        %v326 = vand.u32 %v324, 15
        %v327 = vsub.s32 0, %v326
        %v328 = vsel %vm322, %v327, %v326
        %vm329 = vcmp.lt.s32.totalorder %v261, 0
        %v330 = vsub.s32 0, %v261
        %v331 = vsel %vm329, %v330, %v261
        %v332 = vshrl.u32 %v331, 4
        %v333 = vand.u32 %v331, 15
        %v334 = vsub.s32 0, %v333
        %v335 = vsel %vm329, %v334, %v333
        %vm336 = vcmp.lt.s32.totalorder %v262, 0
        %v337 = vsub.s32 0, %v262
        %v338 = vsel %vm336, %v337, %v262
        %v339 = vshrl.u32 %v338, 4
        %v340 = vand.u32 %v338, 15
        %v341 = vsub.s32 0, %v340
        %v342 = vsel %vm336, %v341, %v340
        %vm343 = vcmp.lt.s32.totalorder %v263, 0
        %v344 = vsub.s32 0, %v263
        %v345 = vsel %vm343, %v344, %v263
        %v346 = vshrl.u32 %v345, 4
        %v347 = vand.u32 %v345, 15
        %v348 = vsub.s32 0, %v347
        %v349 = vsel %vm343, %v348, %v347
        %vm350 = vcmp.lt.s32.totalorder %v264, 0
        %v351 = vsub.s32 0, %v264
        %v352 = vsel %vm350, %v351, %v264
        %v353 = vshrl.u32 %v352, 4
        %v354 = vand.u32 %v352, 15
        %v355 = vsub.s32 0, %v354
        %v356 = vsel %vm350, %v355, %v354
        %vm357 = vcmp.lt.s32.totalorder %v265, 0
        %v358 = vsub.s32 0, %v265
        %v359 = vsel %vm357, %v358, %v265
        %v360 = vshrl.u32 %v359, 4
        %v361 = vand.u32 %v359, 15
        %v362 = vsub.s32 0, %v361
        %v363 = vsel %vm357, %v362, %v361
        %vm364 = vcmp.lt.s32.totalorder %v266, 0
        %v365 = vsub.s32 0, %v266
        %v366 = vsel %vm364, %v365, %v266
        %v367 = vshrl.u32 %v366, 4
        %v368 = vand.u32 %v366, 15
        %v369 = vsub.s32 0, %v368
        %v370 = vsel %vm364, %v369, %v368
        %vm371 = vcmp.lt.s32.totalorder %v267, 0
        %v372 = vsub.s32 0, %v267
        %v373 = vsel %vm371, %v372, %v267
        %v374 = vshrl.u32 %v373, 4
        %v375 = vand.u32 %v373, 15
        %v376 = vsub.s32 0, %v375
        %v377 = vsel %vm371, %v376, %v375
        %vm378 = vcmp.lt.s32.totalorder %v268, 0
        %v379 = vsub.s32 0, %v268
        %v380 = vsel %vm378, %v379, %v268
        %v381 = vshrl.u32 %v380, 4
        %v382 = vand.u32 %v380, 15
        %v383 = vsub.s32 0, %v382
        %v384 = vsel %vm378, %v383, %v382
        %vm385 = vcmp.lt.s32.totalorder %v269, 0
        %v386 = vsub.s32 0, %v269
        %v387 = vsel %vm385, %v386, %v269
        %v388 = vshrl.u32 %v387, 4
        %v389 = vand.u32 %v387, 15
        %v390 = vsub.s32 0, %v389
        %v391 = vsel %vm385, %v390, %v389
        %vm392 = vcmp.lt.s32.totalorder %v270, 0
        %v393 = vsub.s32 0, %v270
        %v394 = vsel %vm392, %v393, %v270
        %v395 = vshrl.u32 %v394, 4
        %v396 = vand.u32 %v394, 15
        %v397 = vsub.s32 0, %v396
        %v398 = vsel %vm392, %v397, %v396
        %vm399 = vcmp.lt.s32.totalorder %v271, 0
        %v400 = vsub.s32 0, %v271
        %v401 = vsel %vm399, %v400, %v271
        %v402 = vshrl.u32 %v401, 4
        %v403 = vand.u32 %v401, 15
        %v404 = vsub.s32 0, %v403
        %v405 = vsel %vm399, %v404, %v403
        %vm406 = vcmp.lt.s32.totalorder %v272, 0
        %v407 = vsub.s32 0, %v272
        %v408 = vsel %vm406, %v407, %v272
        %v409 = vshrl.u32 %v408, 4
        %v410 = vand.u32 %v408, 15
        %v411 = vsub.s32 0, %v410
        %v412 = vsel %vm406, %v411, %v410
        %vm413 = vcmp.lt.s32.totalorder %v273, 0
        %v414 = vsub.s32 0, %v273
        %v415 = vsel %vm413, %v414, %v273
        %v416 = vshrl.u32 %v415, 4
        %v417 = vand.u32 %v415, 15
        %v418 = vsub.s32 0, %v417
        %v419 = vsel %vm413, %v418, %v417
        %vm420 = vcmp.lt.s32.totalorder %v274, 0
        %v421 = vsub.s32 0, %v274
        %v422 = vsel %vm420, %v421, %v274
        %v423 = vshrl.u32 %v422, 4
        %v424 = vand.u32 %v422, 15
        %v425 = vsub.s32 0, %v424
        %v426 = vsel %vm420, %v425, %v424
        %vm427 = vcmp.lt.s32.totalorder %v275, 0
        %v428 = vsub.s32 0, %v275
        %v429 = vsel %vm427, %v428, %v275
        %v430 = vshrl.u32 %v429, 4
        %v431 = vand.u32 %v429, 15
        %v432 = vsub.s32 0, %v431
        %v433 = vsel %vm427, %v432, %v431
        %vm434 = vcmp.lt.s32.totalorder %v276, 0
        %v435 = vsub.s32 0, %v276
        %v436 = vsel %vm434, %v435, %v276
        %v437 = vshrl.u32 %v436, 4
        %v438 = vand.u32 %v436, 15
        %v439 = vsub.s32 0, %v438
        %v440 = vsel %vm434, %v439, %v438
        %vm441 = vcmp.lt.s32.totalorder %v277, 0
        %v442 = vsub.s32 0, %v277
        %v443 = vsel %vm441, %v442, %v277
        %v444 = vshrl.u32 %v443, 4
        %v445 = vand.u32 %v443, 15
        %v446 = vsub.s32 0, %v445
        %v447 = vsel %vm441, %v446, %v445
        %vm448 = vcmp.lt.s32.totalorder %v278, 0
        %v449 = vsub.s32 0, %v278
        %v450 = vsel %vm448, %v449, %v278
        %v451 = vshrl.u32 %v450, 4
        %v452 = vand.u32 %v450, 15
        %v453 = vsub.s32 0, %v452
        %v454 = vsel %vm448, %v453, %v452
        %vm455 = vcmp.lt.s32.totalorder %v279, 0
        %v456 = vsub.s32 0, %v279
        %v457 = vsel %vm455, %v456, %v279
        %v458 = vshrl.u32 %v457, 4
        %v459 = vand.u32 %v457, 15
        %v460 = vsub.s32 0, %v459
        %v461 = vsel %vm455, %v460, %v459
        %vm462 = vcmp.lt.s32.totalorder %v280, 0
        %v463 = vsub.s32 0, %v280
        %v464 = vsel %vm462, %v463, %v280
        %v465 = vshrl.u32 %v464, 4
        %v466 = vand.u32 %v464, 15
        %v467 = vsub.s32 0, %v466
        %v468 = vsel %vm462, %v467, %v466
        %vm469 = vcmp.lt.s32.totalorder %v281, 0
        %v470 = vsub.s32 0, %v281
        %v471 = vsel %vm469, %v470, %v281
        %v472 = vshrl.u32 %v471, 4
        %v473 = vand.u32 %v471, 15
        %v474 = vsub.s32 0, %v473
        %v475 = vsel %vm469, %v474, %v473
        %vm476 = vcmp.lt.s32.totalorder %v282, 0
        %v477 = vsub.s32 0, %v282
        %v478 = vsel %vm476, %v477, %v282
        %v479 = vshrl.u32 %v478, 4
        %v480 = vand.u32 %v478, 15
        %v481 = vsub.s32 0, %v480
        %v482 = vsel %vm476, %v481, %v480
        %vm483 = vcmp.lt.s32.totalorder %v283, 0
        %v484 = vsub.s32 0, %v283
        %v485 = vsel %vm483, %v484, %v283
        %v486 = vshrl.u32 %v485, 4
        %v487 = vand.u32 %v485, 15
        %v488 = vsub.s32 0, %v487
        %v489 = vsel %vm483, %v488, %v487
        %vm490 = vcmp.lt.s32.totalorder %v284, 0
        %v491 = vsub.s32 0, %v284
        %v492 = vsel %vm490, %v491, %v284
        %v493 = vshrl.u32 %v492, 4
        %v494 = vand.u32 %v492, 15
        %v495 = vsub.s32 0, %v494
        %v496 = vsel %vm490, %v495, %v494
        %vm497 = vcmp.lt.s32.totalorder %v285, 0
        %v498 = vsub.s32 0, %v285
        %v499 = vsel %vm497, %v498, %v285
        %v500 = vshrl.u32 %v499, 4
        %v501 = vand.u32 %v499, 15
        %v502 = vsub.s32 0, %v501
        %v503 = vsel %vm497, %v502, %v501
        %vm504 = vcmp.lt.s32.totalorder %v286, 0
        %v505 = vsub.s32 0, %v286
        %v506 = vsel %vm504, %v505, %v286
        %v507 = vshrl.u32 %v506, 4
        %v508 = vand.u32 %v506, 15
        %v509 = vsub.s32 0, %v508
        %v510 = vsel %vm504, %v509, %v508
        %vm511 = vcmp.ne.s32.totalorder %v293, 0
        %vm512 = vcmp.ne.s32.totalorder %v300, 0
        %vm513 = vcmp.ne.s32.totalorder %v307, 0
        %vm514 = vcmp.ne.s32.totalorder %v314, 0
        %vm515 = vcmp.ne.s32.totalorder %v321, 0
        %vm516 = vcmp.ne.s32.totalorder %v328, 0
        %vm517 = vcmp.ne.s32.totalorder %v335, 0
        %vm518 = vcmp.ne.s32.totalorder %v342, 0
        %vm519 = vcmp.ne.s32.totalorder %v349, 0
        %vm520 = vcmp.ne.s32.totalorder %v356, 0
        %vm521 = vcmp.ne.s32.totalorder %v363, 0
        %vm522 = vcmp.ne.s32.totalorder %v370, 0
        %vm523 = vcmp.ne.s32.totalorder %v377, 0
        %vm524 = vcmp.ne.s32.totalorder %v384, 0
        %vm525 = vcmp.ne.s32.totalorder %v391, 0
        %vm526 = vcmp.ne.s32.totalorder %v398, 0
        %vm527 = vcmp.ne.s32.totalorder %v405, 0
        %vm528 = vcmp.ne.s32.totalorder %v412, 0
        %vm529 = vcmp.ne.s32.totalorder %v419, 0
        %vm530 = vcmp.ne.s32.totalorder %v426, 0
        %vm531 = vcmp.ne.s32.totalorder %v433, 0
        %vm532 = vcmp.ne.s32.totalorder %v440, 0
        %vm533 = vcmp.ne.s32.totalorder %v447, 0
        %vm534 = vcmp.ne.s32.totalorder %v454, 0
        %vm535 = vcmp.ne.s32.totalorder %v461, 0
        %vm536 = vcmp.ne.s32.totalorder %v468, 0
        %vm537 = vcmp.ne.s32.totalorder %v475, 0
        %vm538 = vcmp.ne.s32.totalorder %v482, 0
        %vm539 = vcmp.ne.s32.totalorder %v489, 0
        %vm540 = vcmp.ne.s32.totalorder %v496, 0
        %vm541 = vcmp.ne.s32.totalorder %v503, 0
        %vm542 = vcmp.ne.s32.totalorder %v510, 0
        %vm543 = vcmp.lt.s32.totalorder %v293, 0
        %vm544 = vcmp.lt.s32.totalorder %v300, 0
        %vm545 = vcmp.lt.s32.totalorder %v307, 0
        %vm546 = vcmp.lt.s32.totalorder %v314, 0
        %vm547 = vcmp.lt.s32.totalorder %v321, 0
        %vm548 = vcmp.lt.s32.totalorder %v328, 0
        %vm549 = vcmp.lt.s32.totalorder %v335, 0
        %vm550 = vcmp.lt.s32.totalorder %v342, 0
        %vm551 = vcmp.lt.s32.totalorder %v349, 0
        %vm552 = vcmp.lt.s32.totalorder %v356, 0
        %vm553 = vcmp.lt.s32.totalorder %v363, 0
        %vm554 = vcmp.lt.s32.totalorder %v370, 0
        %vm555 = vcmp.lt.s32.totalorder %v377, 0
        %vm556 = vcmp.lt.s32.totalorder %v384, 0
        %vm557 = vcmp.lt.s32.totalorder %v391, 0
        %vm558 = vcmp.lt.s32.totalorder %v398, 0
        %vm559 = vcmp.lt.s32.totalorder %v405, 0
        %vm560 = vcmp.lt.s32.totalorder %v412, 0
        %vm561 = vcmp.lt.s32.totalorder %v419, 0
        %vm562 = vcmp.lt.s32.totalorder %v426, 0
        %vm563 = vcmp.lt.s32.totalorder %v433, 0
        %vm564 = vcmp.lt.s32.totalorder %v440, 0
        %vm565 = vcmp.lt.s32.totalorder %v447, 0
        %vm566 = vcmp.lt.s32.totalorder %v454, 0
        %vm567 = vcmp.lt.s32.totalorder %v461, 0
        %vm568 = vcmp.lt.s32.totalorder %v468, 0
        %vm569 = vcmp.lt.s32.totalorder %v475, 0
        %vm570 = vcmp.lt.s32.totalorder %v482, 0
        %vm571 = vcmp.lt.s32.totalorder %v489, 0
        %vm572 = vcmp.lt.s32.totalorder %v496, 0
        %vm573 = vcmp.lt.s32.totalorder %v503, 0
        %vm574 = vcmp.lt.s32.totalorder %v510, 0
        %vm575 = vmand %vm543, %vm511
        %vm576 = vmand %vm544, %vm512
        %vm577 = vmand %vm545, %vm513
        %vm578 = vmand %vm546, %vm514
        %vm579 = vmand %vm547, %vm515
        %vm580 = vmand %vm548, %vm516
        %vm581 = vmand %vm549, %vm517
        %vm582 = vmand %vm550, %vm518
        %vm583 = vmand %vm551, %vm519
        %vm584 = vmand %vm552, %vm520
        %vm585 = vmand %vm553, %vm521
        %vm586 = vmand %vm554, %vm522
        %vm587 = vmand %vm555, %vm523
        %vm588 = vmand %vm556, %vm524
        %vm589 = vmand %vm557, %vm525
        %vm590 = vmand %vm558, %vm526
        %vm591 = vmand %vm559, %vm527
        %vm592 = vmand %vm560, %vm528
        %vm593 = vmand %vm561, %vm529
        %vm594 = vmand %vm562, %vm530
        %vm595 = vmand %vm563, %vm531
        %vm596 = vmand %vm564, %vm532
        %vm597 = vmand %vm565, %vm533
        %vm598 = vmand %vm566, %vm534
        %vm599 = vmand %vm567, %vm535
        %vm600 = vmand %vm568, %vm536
        %vm601 = vmand %vm569, %vm537
        %vm602 = vmand %vm570, %vm538
        %vm603 = vmand %vm571, %vm539
        %vm604 = vmand %vm572, %vm540
        %vm605 = vmand %vm573, %vm541
        %vm606 = vmand %vm574, %vm542
        %v607 = vadd.s32 %v293, 16
        %v608 = vadd.s32 %v300, 16
        %v609 = vadd.s32 %v307, 16
        %v610 = vadd.s32 %v314, 16
        %v611 = vadd.s32 %v321, 16
        %v612 = vadd.s32 %v328, 16
        %v613 = vadd.s32 %v335, 16
        %v614 = vadd.s32 %v342, 16
        %v615 = vadd.s32 %v349, 16
        %v616 = vadd.s32 %v356, 16
        %v617 = vadd.s32 %v363, 16
        %v618 = vadd.s32 %v370, 16
        %v619 = vadd.s32 %v377, 16
        %v620 = vadd.s32 %v384, 16
        %v621 = vadd.s32 %v391, 16
        %v622 = vadd.s32 %v398, 16
        %v623 = vadd.s32 %v405, 16
        %v624 = vadd.s32 %v412, 16
        %v625 = vadd.s32 %v419, 16
        %v626 = vadd.s32 %v426, 16
        %v627 = vadd.s32 %v433, 16
        %v628 = vadd.s32 %v440, 16
        %v629 = vadd.s32 %v447, 16
        %v630 = vadd.s32 %v454, 16
        %v631 = vadd.s32 %v461, 16
        %v632 = vadd.s32 %v468, 16
        %v633 = vadd.s32 %v475, 16
        %v634 = vadd.s32 %v482, 16
        %v635 = vadd.s32 %v489, 16
        %v636 = vadd.s32 %v496, 16
        %v637 = vadd.s32 %v503, 16
        %v638 = vadd.s32 %v510, 16
        %v639 = vsel %vm575, %v607, %v293
        %v640 = vsel %vm576, %v608, %v300
        %v641 = vsel %vm577, %v609, %v307
        %v642 = vsel %vm578, %v610, %v314
        %v643 = vsel %vm579, %v611, %v321
        %v644 = vsel %vm580, %v612, %v328
        %v645 = vsel %vm581, %v613, %v335
        %v646 = vsel %vm582, %v614, %v342
        %v647 = vsel %vm583, %v615, %v349
        %v648 = vsel %vm584, %v616, %v356
        %v649 = vsel %vm585, %v617, %v363
        %v650 = vsel %vm586, %v618, %v370
        %v651 = vsel %vm587, %v619, %v377
        %v652 = vsel %vm588, %v620, %v384
        %v653 = vsel %vm589, %v621, %v391
        %v654 = vsel %vm590, %v622, %v398
        %v655 = vsel %vm591, %v623, %v405
        %v656 = vsel %vm592, %v624, %v412
        %v657 = vsel %vm593, %v625, %v419
        %v658 = vsel %vm594, %v626, %v426
        %v659 = vsel %vm595, %v627, %v433
        %v660 = vsel %vm596, %v628, %v440
        %v661 = vsel %vm597, %v629, %v447
        %v662 = vsel %vm598, %v630, %v454
        %v663 = vsel %vm599, %v631, %v461
        %v664 = vsel %vm600, %v632, %v468
        %v665 = vsel %vm601, %v633, %v475
        %v666 = vsel %vm602, %v634, %v482
        %v667 = vsel %vm603, %v635, %v489
        %v668 = vsel %vm604, %v636, %v496
        %v669 = vsel %vm605, %v637, %v503
        %v670 = vsel %vm606, %v638, %v510
        %vm671 = vcmp.ne.s32.totalorder %v639, 0
        %vm672 = vcmp.ne.s32.totalorder %v640, 0
        %vm673 = vcmp.ne.s32.totalorder %v641, 0
        %vm674 = vcmp.ne.s32.totalorder %v642, 0
        %vm675 = vcmp.ne.s32.totalorder %v643, 0
        %vm676 = vcmp.ne.s32.totalorder %v644, 0
        %vm677 = vcmp.ne.s32.totalorder %v645, 0
        %vm678 = vcmp.ne.s32.totalorder %v646, 0
        %vm679 = vcmp.ne.s32.totalorder %v647, 0
        %vm680 = vcmp.ne.s32.totalorder %v648, 0
        %vm681 = vcmp.ne.s32.totalorder %v649, 0
        %vm682 = vcmp.ne.s32.totalorder %v650, 0
        %vm683 = vcmp.ne.s32.totalorder %v651, 0
        %vm684 = vcmp.ne.s32.totalorder %v652, 0
        %vm685 = vcmp.ne.s32.totalorder %v653, 0
        %vm686 = vcmp.ne.s32.totalorder %v654, 0
        %vm687 = vcmp.ne.s32.totalorder %v655, 0
        %vm688 = vcmp.ne.s32.totalorder %v656, 0
        %vm689 = vcmp.ne.s32.totalorder %v657, 0
        %vm690 = vcmp.ne.s32.totalorder %v658, 0
        %vm691 = vcmp.ne.s32.totalorder %v659, 0
        %vm692 = vcmp.ne.s32.totalorder %v660, 0
        %vm693 = vcmp.ne.s32.totalorder %v661, 0
        %vm694 = vcmp.ne.s32.totalorder %v662, 0
        %vm695 = vcmp.ne.s32.totalorder %v663, 0
        %vm696 = vcmp.ne.s32.totalorder %v664, 0
        %vm697 = vcmp.ne.s32.totalorder %v665, 0
        %vm698 = vcmp.ne.s32.totalorder %v666, 0
        %vm699 = vcmp.ne.s32.totalorder %v667, 0
        %vm700 = vcmp.ne.s32.totalorder %v668, 0
        %vm701 = vcmp.ne.s32.totalorder %v669, 0
        %vm702 = vcmp.ne.s32.totalorder %v670, 0
        %vm703 = vcmp.ne.s32.totalorder %v639, 15
        %vm704 = vcmp.ne.s32.totalorder %v640, 15
        %vm705 = vcmp.ne.s32.totalorder %v641, 15
        %vm706 = vcmp.ne.s32.totalorder %v642, 15
        %vm707 = vcmp.ne.s32.totalorder %v643, 15
        %vm708 = vcmp.ne.s32.totalorder %v644, 15
        %vm709 = vcmp.ne.s32.totalorder %v645, 15
        %vm710 = vcmp.ne.s32.totalorder %v646, 15
        %vm711 = vcmp.ne.s32.totalorder %v647, 15
        %vm712 = vcmp.ne.s32.totalorder %v648, 15
        %vm713 = vcmp.ne.s32.totalorder %v649, 15
        %vm714 = vcmp.ne.s32.totalorder %v650, 15
        %vm715 = vcmp.ne.s32.totalorder %v651, 15
        %vm716 = vcmp.ne.s32.totalorder %v652, 15
        %vm717 = vcmp.ne.s32.totalorder %v653, 15
        %vm718 = vcmp.ne.s32.totalorder %v654, 15
        %vm719 = vcmp.ne.s32.totalorder %v655, 15
        %vm720 = vcmp.ne.s32.totalorder %v656, 15
        %vm721 = vcmp.ne.s32.totalorder %v657, 15
        %vm722 = vcmp.ne.s32.totalorder %v658, 15
        %vm723 = vcmp.ne.s32.totalorder %v659, 15
        %vm724 = vcmp.ne.s32.totalorder %v660, 15
        %vm725 = vcmp.ne.s32.totalorder %v661, 15
        %vm726 = vcmp.ne.s32.totalorder %v662, 15
        %vm727 = vcmp.ne.s32.totalorder %v663, 15
        %vm728 = vcmp.ne.s32.totalorder %v664, 15
        %vm729 = vcmp.ne.s32.totalorder %v665, 15
        %vm730 = vcmp.ne.s32.totalorder %v666, 15
        %vm731 = vcmp.ne.s32.totalorder %v667, 15
        %vm732 = vcmp.ne.s32.totalorder %v668, 15
        %vm733 = vcmp.ne.s32.totalorder %v669, 15
        %vm734 = vcmp.ne.s32.totalorder %v670, 15
        %v735 = vld [vmem:[%s220] sm:$0xff]
        %v736 = vld [vmem:[%s220 + $0x8] sm:$0xff]
        %v737 = vld [vmem:[%s220 + $0x10] sm:$0xff]
        %v738 = vld [vmem:[%s220 + $0x18] sm:$0xff]
        %v739 = vld [vmem:[%s220 + $0x20] sm:$0xff]
        %v740 = vld [vmem:[%s220 + $0x28] sm:$0xff]
        %v741 = vld [vmem:[%s220 + $0x30] sm:$0xff]
        %v742 = vld [vmem:[%s220 + $0x38] sm:$0xff]
        %v743 = vld [vmem:[%s220 + $0x40] sm:$0xff]
        %v744 = vld [vmem:[%s220 + $0x48] sm:$0xff]
        %v745 = vld [vmem:[%s220 + $0x50] sm:$0xff]
        %v746 = vld [vmem:[%s220 + $0x58] sm:$0xff]
        %v747 = vld [vmem:[%s220 + $0x60] sm:$0xff]
        %v748 = vld [vmem:[%s220 + $0x68] sm:$0xff]
        %v749 = vld [vmem:[%s220 + $0x70] sm:$0xff]
        %v750 = vld [vmem:[%s220 + $0x78] sm:$0xff]
        %v751 = vld [vmem:[%s220 + $0x80] sm:$0xff]
        %v752 = vld [vmem:[%s220 + $0x88] sm:$0xff]
        %v753 = vld [vmem:[%s220 + $0x90] sm:$0xff]
        %v754 = vld [vmem:[%s220 + $0x98] sm:$0xff]
        %v755 = vld [vmem:[%s220 + $0xa0] sm:$0xff]
        %v756 = vld [vmem:[%s220 + $0xa8] sm:$0xff]
        %v757 = vld [vmem:[%s220 + $0xb0] sm:$0xff]
        %v758 = vld [vmem:[%s220 + $0xb8] sm:$0xff]
        %v759 = vld [vmem:[%s220 + $0xc0] sm:$0xff]
        %v760 = vld [vmem:[%s220 + $0xc8] sm:$0xff]
        %v761 = vld [vmem:[%s220 + $0xd0] sm:$0xff]
        %v762 = vld [vmem:[%s220 + $0xd8] sm:$0xff]
        %v763 = vld [vmem:[%s220 + $0xe0] sm:$0xff]
        %v764 = vld [vmem:[%s220 + $0xe8] sm:$0xff]
        %v765 = vld [vmem:[%s220 + $0xf0] sm:$0xff]
        %v766 = vld [vmem:[%s220 + $0xf8] sm:$0xff]
        %v767 = vrot.slane %v735, 7
        %v768 = vrot.slane %v736, 7
        %v769 = vrot.slane %v737, 7
        %v770 = vrot.slane %v738, 7
        %v771 = vrot.slane %v739, 7
        %v772 = vrot.slane %v740, 7
        %v773 = vrot.slane %v741, 7
        %v774 = vrot.slane %v742, 7
        %v775 = vrot.slane %v743, 7
        %v776 = vrot.slane %v744, 7
        %v777 = vrot.slane %v745, 7
        %v778 = vrot.slane %v746, 7
        %v779 = vrot.slane %v747, 7
        %v780 = vrot.slane %v748, 7
        %v781 = vrot.slane %v749, 7
        %v782 = vrot.slane %v750, 7
        %v783 = vrot.slane %v751, 7
        %v784 = vrot.slane %v752, 7
        %v785 = vrot.slane %v753, 7
        %v786 = vrot.slane %v754, 7
        %v787 = vrot.slane %v755, 7
        %v788 = vrot.slane %v756, 7
        %v789 = vrot.slane %v757, 7
        %v790 = vrot.slane %v758, 7
        %v791 = vrot.slane %v759, 7
        %v792 = vrot.slane %v760, 7
        %v793 = vrot.slane %v761, 7
        %v794 = vrot.slane %v762, 7
        %v795 = vrot.slane %v763, 7
        %v796 = vrot.slane %v764, 7
        %v797 = vrot.slane %v765, 7
        %v798 = vrot.slane %v766, 7
        %vm799 = vcmp.lt.s32.totalorder %v255, 1
        %v800 = vsel %vm799, %v797, %v798
        %v801 = vsel %vm799, %v796, %v797
        %v802 = vsel %vm799, %v795, %v796
        %v803 = vsel %vm799, %v794, %v795
        %v804 = vsel %vm799, %v793, %v794
        %v805 = vsel %vm799, %v792, %v793
        %v806 = vsel %vm799, %v791, %v792
        %v807 = vsel %vm799, %v790, %v791
        %v808 = vsel %vm799, %v789, %v790
        %v809 = vsel %vm799, %v788, %v789
        %v810 = vsel %vm799, %v787, %v788
        %v811 = vsel %vm799, %v786, %v787
        %v812 = vsel %vm799, %v785, %v786
        %v813 = vsel %vm799, %v784, %v785
        %v814 = vsel %vm799, %v783, %v784
        %v815 = vsel %vm799, %v782, %v783
        %v816 = vsel %vm799, %v781, %v782
        %v817 = vsel %vm799, %v780, %v781
        %v818 = vsel %vm799, %v779, %v780
        %v819 = vsel %vm799, %v778, %v779
        %v820 = vsel %vm799, %v777, %v778
        %v821 = vsel %vm799, %v776, %v777
        %v822 = vsel %vm799, %v775, %v776
        %v823 = vsel %vm799, %v774, %v775
        %v824 = vsel %vm799, %v773, %v774
        %v825 = vsel %vm799, %v772, %v773
        %v826 = vsel %vm799, %v771, %v772
        %v827 = vsel %vm799, %v770, %v771
        %v828 = vsel %vm799, %v769, %v770
        %v829 = vsel %vm799, %v768, %v769
        %v830 = vsel %vm799, %v767, %v768
        %v831 = vsel %vm799, %v798, %v767
        %v832 = vsel %vm671, 1, 0
        %v833 = vsel %vm672, 1, 0
        %v834 = vsel %vm673, 1, 0
        %v835 = vsel %vm674, 1, 0
        %v836 = vsel %vm675, 1, 0
        %v837 = vsel %vm676, 1, 0
        %v838 = vsel %vm677, 1, 0
        %v839 = vsel %vm678, 1, 0
        %v840 = vsel %vm679, 1, 0
        %v841 = vsel %vm680, 1, 0
        %v842 = vsel %vm681, 1, 0
        %v843 = vsel %vm682, 1, 0
        %v844 = vsel %vm683, 1, 0
        %v845 = vsel %vm684, 1, 0
        %v846 = vsel %vm685, 1, 0
        %v847 = vsel %vm686, 1, 0
        %v848 = vsel %vm687, 1, 0
        %v849 = vsel %vm688, 1, 0
        %v850 = vsel %vm689, 1, 0
        %v851 = vsel %vm690, 1, 0
        %v852 = vsel %vm691, 1, 0
        %v853 = vsel %vm692, 1, 0
        %v854 = vsel %vm693, 1, 0
        %v855 = vsel %vm694, 1, 0
        %v856 = vsel %vm695, 1, 0
        %v857 = vsel %vm696, 1, 0
        %v858 = vsel %vm697, 1, 0
        %v859 = vsel %vm698, 1, 0
        %v860 = vsel %vm699, 1, 0
        %v861 = vsel %vm700, 1, 0
        %v862 = vsel %vm701, 1, 0
        %v863 = vsel %vm702, 1, 0
        %vm864 = vcmp.eq.s32.totalorder %v832, 1
        %vm865 = vcmp.eq.s32.totalorder %v833, 1
        %vm866 = vcmp.eq.s32.totalorder %v834, 1
        %vm867 = vcmp.eq.s32.totalorder %v835, 1
        %vm868 = vcmp.eq.s32.totalorder %v836, 1
        %vm869 = vcmp.eq.s32.totalorder %v837, 1
        %vm870 = vcmp.eq.s32.totalorder %v838, 1
        %vm871 = vcmp.eq.s32.totalorder %v839, 1
        %vm872 = vcmp.eq.s32.totalorder %v840, 1
        %vm873 = vcmp.eq.s32.totalorder %v841, 1
        %vm874 = vcmp.eq.s32.totalorder %v842, 1
        %vm875 = vcmp.eq.s32.totalorder %v843, 1
        %vm876 = vcmp.eq.s32.totalorder %v844, 1
        %vm877 = vcmp.eq.s32.totalorder %v845, 1
        %vm878 = vcmp.eq.s32.totalorder %v846, 1
        %vm879 = vcmp.eq.s32.totalorder %v847, 1
        %vm880 = vcmp.eq.s32.totalorder %v848, 1
        %vm881 = vcmp.eq.s32.totalorder %v849, 1
        %vm882 = vcmp.eq.s32.totalorder %v850, 1
        %vm883 = vcmp.eq.s32.totalorder %v851, 1
        %vm884 = vcmp.eq.s32.totalorder %v852, 1
        %vm885 = vcmp.eq.s32.totalorder %v853, 1
        %vm886 = vcmp.eq.s32.totalorder %v854, 1
        %vm887 = vcmp.eq.s32.totalorder %v855, 1
        %vm888 = vcmp.eq.s32.totalorder %v856, 1
        %vm889 = vcmp.eq.s32.totalorder %v857, 1
        %vm890 = vcmp.eq.s32.totalorder %v858, 1
        %vm891 = vcmp.eq.s32.totalorder %v859, 1
        %vm892 = vcmp.eq.s32.totalorder %v860, 1
        %vm893 = vcmp.eq.s32.totalorder %v861, 1
        %vm894 = vcmp.eq.s32.totalorder %v862, 1
        %vm895 = vcmp.eq.s32.totalorder %v863, 1
        %v896 = vsel %vm864, %v831, 0.0
        %v897 = vsel %vm865, %v830, 0.0
        %v898 = vsel %vm866, %v829, 0.0
        %v899 = vsel %vm867, %v828, 0.0
        %v900 = vsel %vm868, %v827, 0.0
        %v901 = vsel %vm869, %v826, 0.0
        %v902 = vsel %vm870, %v825, 0.0
        %v903 = vsel %vm871, %v824, 0.0
        %v904 = vsel %vm872, %v823, 0.0
        %v905 = vsel %vm873, %v822, 0.0
        %v906 = vsel %vm874, %v821, 0.0
        %v907 = vsel %vm875, %v820, 0.0
        %v908 = vsel %vm876, %v819, 0.0
        %v909 = vsel %vm877, %v818, 0.0
        %v910 = vsel %vm878, %v817, 0.0
        %v911 = vsel %vm879, %v816, 0.0
        %v912 = vsel %vm880, %v815, 0.0
        %v913 = vsel %vm881, %v814, 0.0
        %v914 = vsel %vm882, %v813, 0.0
        %v915 = vsel %vm883, %v812, 0.0
        %v916 = vsel %vm884, %v811, 0.0
        %v917 = vsel %vm885, %v810, 0.0
        %v918 = vsel %vm886, %v809, 0.0
        %v919 = vsel %vm887, %v808, 0.0
        %v920 = vsel %vm888, %v807, 0.0
        %v921 = vsel %vm889, %v806, 0.0
        %v922 = vsel %vm890, %v805, 0.0
        %v923 = vsel %vm891, %v804, 0.0
        %v924 = vsel %vm892, %v803, 0.0
        %v925 = vsel %vm893, %v802, 0.0
        %v926 = vsel %vm894, %v801, 0.0
        %v927 = vsel %vm895, %v800, 0.0
        %v928 = vrot.slane %v735, 1
        %v929 = vrot.slane %v736, 1
        %v930 = vrot.slane %v737, 1
        %v931 = vrot.slane %v738, 1
        %v932 = vrot.slane %v739, 1
        %v933 = vrot.slane %v740, 1
        %v934 = vrot.slane %v741, 1
        %v935 = vrot.slane %v742, 1
        %v936 = vrot.slane %v743, 1
        %v937 = vrot.slane %v744, 1
        %v938 = vrot.slane %v745, 1
        %v939 = vrot.slane %v746, 1
        %v940 = vrot.slane %v747, 1
        %v941 = vrot.slane %v748, 1
        %v942 = vrot.slane %v749, 1
        %v943 = vrot.slane %v750, 1
        %v944 = vrot.slane %v751, 1
        %v945 = vrot.slane %v752, 1
        %v946 = vrot.slane %v753, 1
        %v947 = vrot.slane %v754, 1
        %v948 = vrot.slane %v755, 1
        %v949 = vrot.slane %v756, 1
        %v950 = vrot.slane %v757, 1
        %v951 = vrot.slane %v758, 1
        %v952 = vrot.slane %v759, 1
        %v953 = vrot.slane %v760, 1
        %v954 = vrot.slane %v761, 1
        %v955 = vrot.slane %v762, 1
        %v956 = vrot.slane %v763, 1
        %v957 = vrot.slane %v764, 1
        %v958 = vrot.slane %v765, 1
        %v959 = vrot.slane %v766, 1
        %vm960 = vcmp.lt.s32.totalorder %v255, 7
        %v961 = vsel %vm960, %v958, %v959
        %v962 = vsel %vm960, %v957, %v958
        %v963 = vsel %vm960, %v956, %v957
        %v964 = vsel %vm960, %v955, %v956
        %v965 = vsel %vm960, %v954, %v955
        %v966 = vsel %vm960, %v953, %v954
        %v967 = vsel %vm960, %v952, %v953
        %v968 = vsel %vm960, %v951, %v952
        %v969 = vsel %vm960, %v950, %v951
        %v970 = vsel %vm960, %v949, %v950
        %v971 = vsel %vm960, %v948, %v949
        %v972 = vsel %vm960, %v947, %v948
        %v973 = vsel %vm960, %v946, %v947
        %v974 = vsel %vm960, %v945, %v946
        %v975 = vsel %vm960, %v944, %v945
        %v976 = vsel %vm960, %v943, %v944
        %v977 = vsel %vm960, %v942, %v943
        %v978 = vsel %vm960, %v941, %v942
        %v979 = vsel %vm960, %v940, %v941
        %v980 = vsel %vm960, %v939, %v940
        %v981 = vsel %vm960, %v938, %v939
        %v982 = vsel %vm960, %v937, %v938
        %v983 = vsel %vm960, %v936, %v937
        %v984 = vsel %vm960, %v935, %v936
        %v985 = vsel %vm960, %v934, %v935
        %v986 = vsel %vm960, %v933, %v934
        %v987 = vsel %vm960, %v932, %v933
        %v988 = vsel %vm960, %v931, %v932
        %v989 = vsel %vm960, %v930, %v931
        %v990 = vsel %vm960, %v929, %v930
        %v991 = vsel %vm960, %v928, %v929
        %v992 = vsel %vm960, %v959, %v928
        %v993 = vsel %vm703, 1, 0
        %v994 = vsel %vm704, 1, 0
        %v995 = vsel %vm705, 1, 0
        %v996 = vsel %vm706, 1, 0
        %v997 = vsel %vm707, 1, 0
        %v998 = vsel %vm708, 1, 0
        %v999 = vsel %vm709, 1, 0
        %v1000 = vsel %vm710, 1, 0
        %v1001 = vsel %vm711, 1, 0
        %v1002 = vsel %vm712, 1, 0
        %v1003 = vsel %vm713, 1, 0
        %v1004 = vsel %vm714, 1, 0
        %v1005 = vsel %vm715, 1, 0
        %v1006 = vsel %vm716, 1, 0
        %v1007 = vsel %vm717, 1, 0
        %v1008 = vsel %vm718, 1, 0
        %v1009 = vsel %vm719, 1, 0
        %v1010 = vsel %vm720, 1, 0
        %v1011 = vsel %vm721, 1, 0
        %v1012 = vsel %vm722, 1, 0
        %v1013 = vsel %vm723, 1, 0
        %v1014 = vsel %vm724, 1, 0
        %v1015 = vsel %vm725, 1, 0
        %v1016 = vsel %vm726, 1, 0
        %v1017 = vsel %vm727, 1, 0
        %v1018 = vsel %vm728, 1, 0
        %v1019 = vsel %vm729, 1, 0
        %v1020 = vsel %vm730, 1, 0
        %v1021 = vsel %vm731, 1, 0
        %v1022 = vsel %vm732, 1, 0
        %v1023 = vsel %vm733, 1, 0
        %v1024 = vsel %vm734, 1, 0
        %vm1025 = vcmp.eq.s32.totalorder %v993, 1
        %vm1026 = vcmp.eq.s32.totalorder %v994, 1
        %vm1027 = vcmp.eq.s32.totalorder %v995, 1
        %vm1028 = vcmp.eq.s32.totalorder %v996, 1
        %vm1029 = vcmp.eq.s32.totalorder %v997, 1
        %vm1030 = vcmp.eq.s32.totalorder %v998, 1
        %vm1031 = vcmp.eq.s32.totalorder %v999, 1
        %vm1032 = vcmp.eq.s32.totalorder %v1000, 1
        %vm1033 = vcmp.eq.s32.totalorder %v1001, 1
        %vm1034 = vcmp.eq.s32.totalorder %v1002, 1
        %vm1035 = vcmp.eq.s32.totalorder %v1003, 1
        %vm1036 = vcmp.eq.s32.totalorder %v1004, 1
        %vm1037 = vcmp.eq.s32.totalorder %v1005, 1
        %vm1038 = vcmp.eq.s32.totalorder %v1006, 1
        %vm1039 = vcmp.eq.s32.totalorder %v1007, 1
        %vm1040 = vcmp.eq.s32.totalorder %v1008, 1
        %vm1041 = vcmp.eq.s32.totalorder %v1009, 1
        %vm1042 = vcmp.eq.s32.totalorder %v1010, 1
        %vm1043 = vcmp.eq.s32.totalorder %v1011, 1
        %vm1044 = vcmp.eq.s32.totalorder %v1012, 1
        %vm1045 = vcmp.eq.s32.totalorder %v1013, 1
        %vm1046 = vcmp.eq.s32.totalorder %v1014, 1
        %vm1047 = vcmp.eq.s32.totalorder %v1015, 1
        %vm1048 = vcmp.eq.s32.totalorder %v1016, 1
        %vm1049 = vcmp.eq.s32.totalorder %v1017, 1
        %vm1050 = vcmp.eq.s32.totalorder %v1018, 1
        %vm1051 = vcmp.eq.s32.totalorder %v1019, 1
        %vm1052 = vcmp.eq.s32.totalorder %v1020, 1
        %vm1053 = vcmp.eq.s32.totalorder %v1021, 1
        %vm1054 = vcmp.eq.s32.totalorder %v1022, 1
        %vm1055 = vcmp.eq.s32.totalorder %v1023, 1
        %vm1056 = vcmp.eq.s32.totalorder %v1024, 1
        %v1057 = vsel %vm1025, %v991, 0.0
        %v1058 = vsel %vm1026, %v990, 0.0
        %v1059 = vsel %vm1027, %v989, 0.0
        %v1060 = vsel %vm1028, %v988, 0.0
        %v1061 = vsel %vm1029, %v987, 0.0
        %v1062 = vsel %vm1030, %v986, 0.0
        %v1063 = vsel %vm1031, %v985, 0.0
        %v1064 = vsel %vm1032, %v984, 0.0
        %v1065 = vsel %vm1033, %v983, 0.0
        %v1066 = vsel %vm1034, %v982, 0.0
        %v1067 = vsel %vm1035, %v981, 0.0
        %v1068 = vsel %vm1036, %v980, 0.0
        %v1069 = vsel %vm1037, %v979, 0.0
        %v1070 = vsel %vm1038, %v978, 0.0
        %v1071 = vsel %vm1039, %v977, 0.0
        %v1072 = vsel %vm1040, %v976, 0.0
        %v1073 = vsel %vm1041, %v975, 0.0
        %v1074 = vsel %vm1042, %v974, 0.0
        %v1075 = vsel %vm1043, %v973, 0.0
        %v1076 = vsel %vm1044, %v972, 0.0
        %v1077 = vsel %vm1045, %v971, 0.0
        %v1078 = vsel %vm1046, %v970, 0.0
        %v1079 = vsel %vm1047, %v969, 0.0
        %v1080 = vsel %vm1048, %v968, 0.0
        %v1081 = vsel %vm1049, %v967, 0.0
        %v1082 = vsel %vm1050, %v966, 0.0
        %v1083 = vsel %vm1051, %v965, 0.0
        %v1084 = vsel %vm1052, %v964, 0.0
        %v1085 = vsel %vm1053, %v963, 0.0
        %v1086 = vsel %vm1054, %v962, 0.0
        %v1087 = vsel %vm1055, %v961, 0.0
        %v1088 = vsel %vm1056, %v992, 0.0
        %s1089 = scalar_lea.vmem [#allocation6], 48
        %v1090 = vld [vmem:[%s1089] sm:$0xff]
        %v1091 = vld [vmem:[%s1089 + $0x8] sm:$0xff]
        %s1092 = scalar_lea.vmem [#allocation6], 64
        %v1093 = vld [vmem:[%s1092] sm:$0xff]
        %v1094 = vld [vmem:[%s1092 + $0x8] sm:$0xff]
        %vm1095 = vcmask 130048
        %v1097 = vsel %vm1095, %v735, 0
        %v1100 = vsel %vm1095, %v736, 0
        %v1103 = vsel %vm1095, %v737, 0
        %v1106 = vsel %vm1095, %v738, 0
        %v1109 = vsel %vm1095, %v739, 0
        %v1112 = vsel %vm1095, %v740, 0
        %v1115 = vsel %vm1095, %v741, 0
        %v1118 = vsel %vm1095, %v742, 0
        %v1121 = vsel %vm1095, %v743, 0
        %v1124 = vsel %vm1095, %v744, 0
        %v1127 = vsel %vm1095, %v745, 0
        %v1130 = vsel %vm1095, %v746, 0
        %v1133 = vsel %vm1095, %v747, 0
        %v1136 = vsel %vm1095, %v748, 0
        %v1139 = vsel %vm1095, %v749, 0
        %v1142 = vsel %vm1095, %v750, 0
        %v1145 = vsel %vm1095, %v751, 0
        %v1148 = vsel %vm1095, %v752, 0
        %v1151 = vsel %vm1095, %v753, 0
        %v1154 = vsel %vm1095, %v754, 0
        %v1157 = vsel %vm1095, %v755, 0
        %v1160 = vsel %vm1095, %v756, 0
        %v1163 = vsel %vm1095, %v757, 0
        %v1166 = vsel %vm1095, %v758, 0
        %v1169 = vsel %vm1095, %v759, 0
        %v1172 = vsel %vm1095, %v760, 0
        %v1175 = vsel %vm1095, %v761, 0
        %v1178 = vsel %vm1095, %v762, 0
        %v1181 = vsel %vm1095, %v763, 0
        %v1184 = vsel %vm1095, %v764, 0
        %v1187 = vsel %vm1095, %v765, 0
        %v1190 = vsel %vm1095, %v766, 0
        %1192 = vmatprep.subr.mxu0 0.0
        %1193 = vmatpush1.msra.mxu0 %v1093
        %1194 = vmatprep.subr.mxu0 0.0
        %1195 = vmatpush1.msra.mxu0 %v1094
        %1196 = vmatprep.subr.mxu0 0.0
        %1197 = vmatpush1.msra.mxu0 0.0
        %1198 = vmatprep.subr.mxu0 0.0
        %1199 = vmatpush1.msra.mxu0 0.0
        %1200 = vmatprep.subr.mxu0 0.0
        %1201 = vmatpush1.msra.mxu0 0.0
        %1202 = vmatprep.subr.mxu0 0.0
        %1203 = vmatpush1.msra.mxu0 0.0
        %1204 = vmatprep.subr.mxu0 0.0
        %1205 = vmatpush1.msra.mxu0 0.0
        %1206 = vmatprep.subr.mxu0 0.0
        %1207 = vmatpush1.msra.mxu0 0.0
        %1208 = vmatprep.subr.mxu0 0.0
        %1209 = vmatpush1.msra.mxu0 0.0
        %1210 = vmatprep.subr.mxu0 0.0
        %1211 = vmatpush1.msra.mxu0 0.0
        %1212 = vmatprep.subr.mxu0 0.0
        %1213 = vmatpush1.msra.mxu0 0.0
        %1214 = vmatprep.subr.mxu0 0.0
        %1215 = vmatpush1.msra.mxu0 0.0
        %1216 = vmatprep.subr.mxu0 0.0
        %1217 = vmatpush1.msra.mxu0 0.0
        %1218 = vmatprep.subr.mxu0 0.0
        %1219 = vmatpush1.msra.mxu0 0.0
        %1220 = vmatprep.subr.mxu0 0.0
        %1221 = vmatpush1.msra.mxu0 0.0
        %1222 = vmatprep.subr.mxu0 0.0
        %1223 = vmatpush1.msra.mxu0 0.0
        %1224 = vmatprep.subr.mxu0 0.0
        %1225 = vmatpush1.msra.mxu0 0.0
        %1226 = vmatprep.subr.mxu0 0.0
        %1227 = vmatpush1.msra.mxu0 0.0
        %1228 = vmatprep.subr.mxu0 0.0
        %1229 = vmatpush1.msra.mxu0 0.0
        %1230 = vmatprep.subr.mxu0 0.0
        %1231 = vmatpush1.msra.mxu0 0.0
        %1232 = vmatprep.subr.mxu0 0.0
        %1233 = vmatpush1.msra.mxu0 0.0
        %1234 = vmatprep.subr.mxu0 0.0
        %1235 = vmatpush1.msra.mxu0 0.0
        %1236 = vmatprep.subr.mxu0 0.0
        %1237 = vmatpush1.msra.mxu0 0.0
        %1238 = vmatprep.subr.mxu0 0.0
        %1239 = vmatpush1.msra.mxu0 0.0
        %1240 = vmatprep.subr.mxu0 0.0
        %1241 = vmatpush1.msra.mxu0 0.0
        %1242 = vmatprep.subr.mxu0 0.0
        %1243 = vmatpush1.msra.mxu0 0.0
        %1244 = vmatprep.subr.mxu0 0.0
        %1245 = vmatpush1.msra.mxu0 0.0
        %1246 = vmatprep.subr.mxu0 0.0
        %1247 = vmatpush1.msra.mxu0 0.0
        %1248 = vmatprep.subr.mxu0 0.0
        %1249 = vmatpush1.msra.mxu0 0.0
        %1250 = vmatprep.subr.mxu0 0.0
        %1251 = vmatpush1.msra.mxu0 0.0
        %1252 = vmatprep.subr.mxu0 0.0
        %1253 = vmatpush1.msra.mxu0 0.0
        %1254 = vmatprep.subr.mxu0 0.0
        %1255 = vmatpush1.msra.mxu0 0.0
        %1256 = vmatprep.mubr.f32.mxu0 0.0
        %1257 = vmatmul.mubr.f32.gmra.mrb[0].mxu0 %v1097
        %v1258 = vpop.f32.mrb[0].mxu0
        %v1259 = vadd.f32 0.0, %v1258
        %v1260 = vpop.f32.mrb[0].mxu0
        %1261 = vmatprep.mubr.f32.mxu0 0.0
        %1262 = vmatmul.mubr.f32.gmra.mrb[0].mxu0 %v1100
        %v1263 = vpop.f32.mrb[0].mxu0
        %v1264 = vadd.f32 0.0, %v1263
        %v1265 = vpop.f32.mrb[0].mxu0
        %1266 = vmatprep.mubr.f32.mxu0 0.0
        %1267 = vmatmul.mubr.f32.gmra.mrb[0].mxu0 %v1103
        %v1268 = vpop.f32.mrb[0].mxu0
        %v1269 = vadd.f32 0.0, %v1268
        %v1270 = vpop.f32.mrb[0].mxu0
        %1271 = vmatprep.mubr.f32.mxu0 0.0
        %1272 = vmatmul.mubr.f32.gmra.mrb[0].mxu0 %v1106
        %v1273 = vpop.f32.mrb[0].mxu0
        %v1274 = vadd.f32 0.0, %v1273
        %v1275 = vpop.f32.mrb[0].mxu0
        %1276 = vmatprep.mubr.f32.mxu0 0.0
        %1277 = vmatmul.mubr.f32.gmra.mrb[0].mxu0 %v1109
        %v1278 = vpop.f32.mrb[0].mxu0
        %v1279 = vadd.f32 0.0, %v1278
        %v1280 = vpop.f32.mrb[0].mxu0
        %1281 = vmatprep.mubr.f32.mxu0 0.0
        %1282 = vmatmul.mubr.f32.gmra.mrb[0].mxu0 %v1112
        %v1283 = vpop.f32.mrb[0].mxu0
        %v1284 = vadd.f32 0.0, %v1283
        %v1285 = vpop.f32.mrb[0].mxu0
        %1286 = vmatprep.mubr.f32.mxu0 0.0
        %1287 = vmatmul.mubr.f32.gmra.mrb[0].mxu0 %v1115
        %v1288 = vpop.f32.mrb[0].mxu0
        %v1289 = vadd.f32 0.0, %v1288
        %v1290 = vpop.f32.mrb[0].mxu0
        %1291 = vmatprep.mubr.f32.mxu0 0.0
        %1292 = vmatmul.mubr.f32.gmra.mrb[0].mxu0 %v1118
        %v1293 = vpop.f32.mrb[0].mxu0
        %v1294 = vadd.f32 0.0, %v1293
        %v1295 = vpop.f32.mrb[0].mxu0
        %1296 = vmatprep.mubr.f32.mxu0 0.0
        %1297 = vmatmul.mubr.f32.gmra.mrb[0].mxu0 %v1121
        %v1298 = vpop.f32.mrb[0].mxu0
        %v1299 = vadd.f32 0.0, %v1298
        %v1300 = vpop.f32.mrb[0].mxu0
        %1301 = vmatprep.mubr.f32.mxu0 0.0
        %1302 = vmatmul.mubr.f32.gmra.mrb[0].mxu0 %v1124
        %v1303 = vpop.f32.mrb[0].mxu0
        %v1304 = vadd.f32 0.0, %v1303
        %v1305 = vpop.f32.mrb[0].mxu0
        %1306 = vmatprep.mubr.f32.mxu0 0.0
        %1307 = vmatmul.mubr.f32.gmra.mrb[0].mxu0 %v1127
        %v1308 = vpop.f32.mrb[0].mxu0
        %v1309 = vadd.f32 0.0, %v1308
        %v1310 = vpop.f32.mrb[0].mxu0
        %1311 = vmatprep.mubr.f32.mxu0 0.0
        %1312 = vmatmul.mubr.f32.gmra.mrb[0].mxu0 %v1130
        %v1313 = vpop.f32.mrb[0].mxu0
        %v1314 = vadd.f32 0.0, %v1313
        %v1315 = vpop.f32.mrb[0].mxu0
        %1316 = vmatprep.mubr.f32.mxu0 0.0
        %1317 = vmatmul.mubr.f32.gmra.mrb[0].mxu0 %v1133
        %v1318 = vpop.f32.mrb[0].mxu0
        %v1319 = vadd.f32 0.0, %v1318
        %v1320 = vpop.f32.mrb[0].mxu0
        %1321 = vmatprep.mubr.f32.mxu0 0.0
        %1322 = vmatmul.mubr.f32.gmra.mrb[0].mxu0 %v1136
        %v1323 = vpop.f32.mrb[0].mxu0
        %v1324 = vadd.f32 0.0, %v1323
        %v1325 = vpop.f32.mrb[0].mxu0
        %1326 = vmatprep.mubr.f32.mxu0 0.0
        %1327 = vmatmul.mubr.f32.gmra.mrb[0].mxu0 %v1139
        %v1328 = vpop.f32.mrb[0].mxu0
        %v1329 = vadd.f32 0.0, %v1328
        %v1330 = vpop.f32.mrb[0].mxu0
        %1331 = vmatprep.mubr.f32.mxu0 0.0
        %1332 = vmatmul.mubr.f32.gmra.mrb[0].mxu0 %v1142
        %v1333 = vpop.f32.mrb[0].mxu0
        %v1334 = vadd.f32 0.0, %v1333
        %v1335 = vpop.f32.mrb[0].mxu0
        %1336 = vmatprep.mubr.f32.mxu0 0.0
        %1337 = vmatmul.mubr.f32.gmra.mrb[0].mxu0 %v1145
        %v1338 = vpop.f32.mrb[0].mxu0
        %v1339 = vadd.f32 0.0, %v1338
        %v1340 = vpop.f32.mrb[0].mxu0
        %1341 = vmatprep.mubr.f32.mxu0 0.0
        %1342 = vmatmul.mubr.f32.gmra.mrb[0].mxu0 %v1148
        %v1343 = vpop.f32.mrb[0].mxu0
        %v1344 = vadd.f32 0.0, %v1343
        %v1345 = vpop.f32.mrb[0].mxu0
        %1346 = vmatprep.mubr.f32.mxu0 0.0
        %1347 = vmatmul.mubr.f32.gmra.mrb[0].mxu0 %v1151
        %v1348 = vpop.f32.mrb[0].mxu0
        %v1349 = vadd.f32 0.0, %v1348
        %v1350 = vpop.f32.mrb[0].mxu0
        %1351 = vmatprep.mubr.f32.mxu0 0.0
        %1352 = vmatmul.mubr.f32.gmra.mrb[0].mxu0 %v1154
        %v1353 = vpop.f32.mrb[0].mxu0
        %v1354 = vadd.f32 0.0, %v1353
        %v1355 = vpop.f32.mrb[0].mxu0
        %1356 = vmatprep.mubr.f32.mxu0 0.0
        %1357 = vmatmul.mubr.f32.gmra.mrb[0].mxu0 %v1157
        %v1358 = vpop.f32.mrb[0].mxu0
        %v1359 = vadd.f32 0.0, %v1358
        %v1360 = vpop.f32.mrb[0].mxu0
        %1361 = vmatprep.mubr.f32.mxu0 0.0
        %1362 = vmatmul.mubr.f32.gmra.mrb[0].mxu0 %v1160
        %v1363 = vpop.f32.mrb[0].mxu0
        %v1364 = vadd.f32 0.0, %v1363
        %v1365 = vpop.f32.mrb[0].mxu0
        %1366 = vmatprep.mubr.f32.mxu0 0.0
        %1367 = vmatmul.mubr.f32.gmra.mrb[0].mxu0 %v1163
        %v1368 = vpop.f32.mrb[0].mxu0
        %v1369 = vadd.f32 0.0, %v1368
        %v1370 = vpop.f32.mrb[0].mxu0
        %1371 = vmatprep.mubr.f32.mxu0 0.0
        %1372 = vmatmul.mubr.f32.gmra.mrb[0].mxu0 %v1166
        %v1373 = vpop.f32.mrb[0].mxu0
        %v1374 = vadd.f32 0.0, %v1373
        %v1375 = vpop.f32.mrb[0].mxu0
        %1376 = vmatprep.mubr.f32.mxu0 0.0
        %1377 = vmatmul.mubr.f32.gmra.mrb[0].mxu0 %v1169
        %v1378 = vpop.f32.mrb[0].mxu0
        %v1379 = vadd.f32 0.0, %v1378
        %v1380 = vpop.f32.mrb[0].mxu0
        %1381 = vmatprep.mubr.f32.mxu0 0.0
        %1382 = vmatmul.mubr.f32.gmra.mrb[0].mxu0 %v1172
        %v1383 = vpop.f32.mrb[0].mxu0
        %v1384 = vadd.f32 0.0, %v1383
        %v1385 = vpop.f32.mrb[0].mxu0
        %1386 = vmatprep.mubr.f32.mxu0 0.0
        %1387 = vmatmul.mubr.f32.gmra.mrb[0].mxu0 %v1175
        %v1388 = vpop.f32.mrb[0].mxu0
        %v1389 = vadd.f32 0.0, %v1388
        %v1390 = vpop.f32.mrb[0].mxu0
        %1391 = vmatprep.mubr.f32.mxu0 0.0
        %1392 = vmatmul.mubr.f32.gmra.mrb[0].mxu0 %v1178
        %v1393 = vpop.f32.mrb[0].mxu0
        %v1394 = vadd.f32 0.0, %v1393
        %v1395 = vpop.f32.mrb[0].mxu0
        %1396 = vmatprep.mubr.f32.mxu0 0.0
        %1397 = vmatmul.mubr.f32.gmra.mrb[0].mxu0 %v1181
        %v1398 = vpop.f32.mrb[0].mxu0
        %v1399 = vadd.f32 0.0, %v1398
        %v1400 = vpop.f32.mrb[0].mxu0
        %1401 = vmatprep.mubr.f32.mxu0 0.0
        %1402 = vmatmul.mubr.f32.gmra.mrb[0].mxu0 %v1184
        %v1403 = vpop.f32.mrb[0].mxu0
        %v1404 = vadd.f32 0.0, %v1403
        %v1405 = vpop.f32.mrb[0].mxu0
        %1406 = vmatprep.mubr.f32.mxu0 0.0
        %1407 = vmatmul.mubr.f32.gmra.mrb[0].mxu0 %v1187
        %v1408 = vpop.f32.mrb[0].mxu0
        %v1409 = vadd.f32 0.0, %v1408
        %v1410 = vpop.f32.mrb[0].mxu0
        %1411 = vmatprep.mubr.f32.mxu0 0.0
        %1412 = vmatmul.mubr.f32.gmra.mrb[0].mxu0 %v1190
        %v1413 = vpop.f32.mrb[0].mxu0
        %v1414 = vadd.f32 0.0, %v1413
        %v1415 = vpop.f32.mrb[0].mxu0
        %1416 = vdwg.mxu0
        %v1418 = vsel %vm1095, %v896, 0
        %v1421 = vsel %vm1095, %v897, 0
        %v1424 = vsel %vm1095, %v898, 0
        %v1427 = vsel %vm1095, %v899, 0
        %v1430 = vsel %vm1095, %v900, 0
        %v1433 = vsel %vm1095, %v901, 0
        %v1436 = vsel %vm1095, %v902, 0
        %v1439 = vsel %vm1095, %v903, 0
        %v1442 = vsel %vm1095, %v904, 0
        %v1445 = vsel %vm1095, %v905, 0
        %v1448 = vsel %vm1095, %v906, 0
        %v1451 = vsel %vm1095, %v907, 0
        %v1454 = vsel %vm1095, %v908, 0
        %v1457 = vsel %vm1095, %v909, 0
        %v1460 = vsel %vm1095, %v910, 0
        %v1463 = vsel %vm1095, %v911, 0
        %v1466 = vsel %vm1095, %v912, 0
        %v1469 = vsel %vm1095, %v913, 0
        %v1472 = vsel %vm1095, %v914, 0
        %v1475 = vsel %vm1095, %v915, 0
        %v1478 = vsel %vm1095, %v916, 0
        %v1481 = vsel %vm1095, %v917, 0
        %v1484 = vsel %vm1095, %v918, 0
        %v1487 = vsel %vm1095, %v919, 0
        %v1490 = vsel %vm1095, %v920, 0
        %v1493 = vsel %vm1095, %v921, 0
        %v1496 = vsel %vm1095, %v922, 0
        %v1499 = vsel %vm1095, %v923, 0
        %v1502 = vsel %vm1095, %v924, 0
        %v1505 = vsel %vm1095, %v925, 0
        %v1508 = vsel %vm1095, %v926, 0
        %v1511 = vsel %vm1095, %v927, 0
        %1513 = vmatprep.subr.mxu0 0.0
        %1514 = vmatpush1.msra.mxu0 %v1090
        %1515 = vmatprep.subr.mxu0 0.0
        %1516 = vmatpush1.msra.mxu0 %v1091
        %1517 = vmatprep.subr.mxu0 0.0
        %1518 = vmatpush1.msra.mxu0 0.0
        %1519 = vmatprep.subr.mxu0 0.0
        %1520 = vmatpush1.msra.mxu0 0.0
        %1521 = vmatprep.subr.mxu0 0.0
        %1522 = vmatpush1.msra.mxu0 0.0
        %1523 = vmatprep.subr.mxu0 0.0
        %1524 = vmatpush1.msra.mxu0 0.0
        %1525 = vmatprep.subr.mxu0 0.0
        %1526 = vmatpush1.msra.mxu0 0.0
        %1527 = vmatprep.subr.mxu0 0.0
        %1528 = vmatpush1.msra.mxu0 0.0
        %1529 = vmatprep.subr.mxu0 0.0
        %1530 = vmatpush1.msra.mxu0 0.0
        %1531 = vmatprep.subr.mxu0 0.0
        %1532 = vmatpush1.msra.mxu0 0.0
        %1533 = vmatprep.subr.mxu0 0.0
        %1534 = vmatpush1.msra.mxu0 0.0
        %1535 = vmatprep.subr.mxu0 0.0
        %1536 = vmatpush1.msra.mxu0 0.0
        %1537 = vmatprep.subr.mxu0 0.0
        %1538 = vmatpush1.msra.mxu0 0.0
        %1539 = vmatprep.subr.mxu0 0.0
        %1540 = vmatpush1.msra.mxu0 0.0
        %1541 = vmatprep.subr.mxu0 0.0
        %1542 = vmatpush1.msra.mxu0 0.0
        %1543 = vmatprep.subr.mxu0 0.0
        %1544 = vmatpush1.msra.mxu0 0.0
        %1545 = vmatprep.subr.mxu0 0.0
        %1546 = vmatpush1.msra.mxu0 0.0
        %1547 = vmatprep.subr.mxu0 0.0
        %1548 = vmatpush1.msra.mxu0 0.0
        %1549 = vmatprep.subr.mxu0 0.0
        %1550 = vmatpush1.msra.mxu0 0.0
        %1551 = vmatprep.subr.mxu0 0.0
        %1552 = vmatpush1.msra.mxu0 0.0
        %1553 = vmatprep.subr.mxu0 0.0
        %1554 = vmatpush1.msra.mxu0 0.0
        %1555 = vmatprep.subr.mxu0 0.0
        %1556 = vmatpush1.msra.mxu0 0.0
        %1557 = vmatprep.subr.mxu0 0.0
        %1558 = vmatpush1.msra.mxu0 0.0
        %1559 = vmatprep.subr.mxu0 0.0
        %1560 = vmatpush1.msra.mxu0 0.0
        %1561 = vmatprep.subr.mxu0 0.0
        %1562 = vmatpush1.msra.mxu0 0.0
        %1563 = vmatprep.subr.mxu0 0.0
        %1564 = vmatpush1.msra.mxu0 0.0
        %1565 = vmatprep.subr.mxu0 0.0
        %1566 = vmatpush1.msra.mxu0 0.0
        %1567 = vmatprep.subr.mxu0 0.0
        %1568 = vmatpush1.msra.mxu0 0.0
        %1569 = vmatprep.subr.mxu0 0.0
        %1570 = vmatpush1.msra.mxu0 0.0
        %1571 = vmatprep.subr.mxu0 0.0
        %1572 = vmatpush1.msra.mxu0 0.0
        %1573 = vmatprep.subr.mxu0 0.0
        %1574 = vmatpush1.msra.mxu0 0.0
        %1575 = vmatprep.subr.mxu0 0.0
        %1576 = vmatpush1.msra.mxu0 0.0
        %1577 = vmatprep.mubr.f32.mxu0 0.0
        %1578 = vmatmul.mubr.f32.gmra.mrb[0].mxu0 %v1418
        %v1579 = vpop.f32.mrb[0].mxu0
        %v1580 = vadd.f32 %v1259, %v1579
        %v1581 = vpop.f32.mrb[0].mxu0
        %1582 = vmatprep.mubr.f32.mxu0 0.0
        %1583 = vmatmul.mubr.f32.gmra.mrb[0].mxu0 %v1421
        %v1584 = vpop.f32.mrb[0].mxu0
        %v1585 = vadd.f32 %v1264, %v1584
        %v1586 = vpop.f32.mrb[0].mxu0
        %1587 = vmatprep.mubr.f32.mxu0 0.0
        %1588 = vmatmul.mubr.f32.gmra.mrb[0].mxu0 %v1424
        %v1589 = vpop.f32.mrb[0].mxu0
        %v1590 = vadd.f32 %v1269, %v1589
        %v1591 = vpop.f32.mrb[0].mxu0
        %1592 = vmatprep.mubr.f32.mxu0 0.0
        %1593 = vmatmul.mubr.f32.gmra.mrb[0].mxu0 %v1427
        %v1594 = vpop.f32.mrb[0].mxu0
        %v1595 = vadd.f32 %v1274, %v1594
        %v1596 = vpop.f32.mrb[0].mxu0
        %1597 = vmatprep.mubr.f32.mxu0 0.0
        %1598 = vmatmul.mubr.f32.gmra.mrb[0].mxu0 %v1430
        %v1599 = vpop.f32.mrb[0].mxu0
        %v1600 = vadd.f32 %v1279, %v1599
        %v1601 = vpop.f32.mrb[0].mxu0
        %1602 = vmatprep.mubr.f32.mxu0 0.0
        %1603 = vmatmul.mubr.f32.gmra.mrb[0].mxu0 %v1433
        %v1604 = vpop.f32.mrb[0].mxu0
        %v1605 = vadd.f32 %v1284, %v1604
        %v1606 = vpop.f32.mrb[0].mxu0
        %1607 = vmatprep.mubr.f32.mxu0 0.0
        %1608 = vmatmul.mubr.f32.gmra.mrb[0].mxu0 %v1436
        %v1609 = vpop.f32.mrb[0].mxu0
        %v1610 = vadd.f32 %v1289, %v1609
        %v1611 = vpop.f32.mrb[0].mxu0
        %1612 = vmatprep.mubr.f32.mxu0 0.0
        %1613 = vmatmul.mubr.f32.gmra.mrb[0].mxu0 %v1439
        %v1614 = vpop.f32.mrb[0].mxu0
        %v1615 = vadd.f32 %v1294, %v1614
        %v1616 = vpop.f32.mrb[0].mxu0
        %1617 = vmatprep.mubr.f32.mxu0 0.0
        %1618 = vmatmul.mubr.f32.gmra.mrb[0].mxu0 %v1442
        %v1619 = vpop.f32.mrb[0].mxu0
        %v1620 = vadd.f32 %v1299, %v1619
        %v1621 = vpop.f32.mrb[0].mxu0
        %1622 = vmatprep.mubr.f32.mxu0 0.0
        %1623 = vmatmul.mubr.f32.gmra.mrb[0].mxu0 %v1445
        %v1624 = vpop.f32.mrb[0].mxu0
        %v1625 = vadd.f32 %v1304, %v1624
        %v1626 = vpop.f32.mrb[0].mxu0
        %1627 = vmatprep.mubr.f32.mxu0 0.0
        %1628 = vmatmul.mubr.f32.gmra.mrb[0].mxu0 %v1448
        %v1629 = vpop.f32.mrb[0].mxu0
        %v1630 = vadd.f32 %v1309, %v1629
        %v1631 = vpop.f32.mrb[0].mxu0
        %1632 = vmatprep.mubr.f32.mxu0 0.0
        %1633 = vmatmul.mubr.f32.gmra.mrb[0].mxu0 %v1451
        %v1634 = vpop.f32.mrb[0].mxu0
        %v1635 = vadd.f32 %v1314, %v1634
        %v1636 = vpop.f32.mrb[0].mxu0
        %1637 = vmatprep.mubr.f32.mxu0 0.0
        %1638 = vmatmul.mubr.f32.gmra.mrb[0].mxu0 %v1454
        %v1639 = vpop.f32.mrb[0].mxu0
        %v1640 = vadd.f32 %v1319, %v1639
        %v1641 = vpop.f32.mrb[0].mxu0
        %1642 = vmatprep.mubr.f32.mxu0 0.0
        %1643 = vmatmul.mubr.f32.gmra.mrb[0].mxu0 %v1457
        %v1644 = vpop.f32.mrb[0].mxu0
        %v1645 = vadd.f32 %v1324, %v1644
        %v1646 = vpop.f32.mrb[0].mxu0
        %1647 = vmatprep.mubr.f32.mxu0 0.0
        %1648 = vmatmul.mubr.f32.gmra.mrb[0].mxu0 %v1460
        %v1649 = vpop.f32.mrb[0].mxu0
        %v1650 = vadd.f32 %v1329, %v1649
        %v1651 = vpop.f32.mrb[0].mxu0
        %1652 = vmatprep.mubr.f32.mxu0 0.0
        %1653 = vmatmul.mubr.f32.gmra.mrb[0].mxu0 %v1463
        %v1654 = vpop.f32.mrb[0].mxu0
        %v1655 = vadd.f32 %v1334, %v1654
        %v1656 = vpop.f32.mrb[0].mxu0
        %1657 = vmatprep.mubr.f32.mxu0 0.0
        %1658 = vmatmul.mubr.f32.gmra.mrb[0].mxu0 %v1466
        %v1659 = vpop.f32.mrb[0].mxu0
        %v1660 = vadd.f32 %v1339, %v1659
        %v1661 = vpop.f32.mrb[0].mxu0
        %1662 = vmatprep.mubr.f32.mxu0 0.0
        %1663 = vmatmul.mubr.f32.gmra.mrb[0].mxu0 %v1469
        %v1664 = vpop.f32.mrb[0].mxu0
        %v1665 = vadd.f32 %v1344, %v1664
        %v1666 = vpop.f32.mrb[0].mxu0
        %1667 = vmatprep.mubr.f32.mxu0 0.0
        %1668 = vmatmul.mubr.f32.gmra.mrb[0].mxu0 %v1472
        %v1669 = vpop.f32.mrb[0].mxu0
        %v1670 = vadd.f32 %v1349, %v1669
        %v1671 = vpop.f32.mrb[0].mxu0
        %1672 = vmatprep.mubr.f32.mxu0 0.0
        %1673 = vmatmul.mubr.f32.gmra.mrb[0].mxu0 %v1475
        %v1674 = vpop.f32.mrb[0].mxu0
        %v1675 = vadd.f32 %v1354, %v1674
        %v1676 = vpop.f32.mrb[0].mxu0
        %1677 = vmatprep.mubr.f32.mxu0 0.0
        %1678 = vmatmul.mubr.f32.gmra.mrb[0].mxu0 %v1478
        %v1679 = vpop.f32.mrb[0].mxu0
        %v1680 = vadd.f32 %v1359, %v1679
        %v1681 = vpop.f32.mrb[0].mxu0
        %1682 = vmatprep.mubr.f32.mxu0 0.0
        %1683 = vmatmul.mubr.f32.gmra.mrb[0].mxu0 %v1481
        %v1684 = vpop.f32.mrb[0].mxu0
        %v1685 = vadd.f32 %v1364, %v1684
        %v1686 = vpop.f32.mrb[0].mxu0
        %1687 = vmatprep.mubr.f32.mxu0 0.0
        %1688 = vmatmul.mubr.f32.gmra.mrb[0].mxu0 %v1484
        %v1689 = vpop.f32.mrb[0].mxu0
        %v1690 = vadd.f32 %v1369, %v1689
        %v1691 = vpop.f32.mrb[0].mxu0
        %1692 = vmatprep.mubr.f32.mxu0 0.0
        %1693 = vmatmul.mubr.f32.gmra.mrb[0].mxu0 %v1487
        %v1694 = vpop.f32.mrb[0].mxu0
        %v1695 = vadd.f32 %v1374, %v1694
        %v1696 = vpop.f32.mrb[0].mxu0
        %1697 = vmatprep.mubr.f32.mxu0 0.0
        %1698 = vmatmul.mubr.f32.gmra.mrb[0].mxu0 %v1490
        %v1699 = vpop.f32.mrb[0].mxu0
        %v1700 = vadd.f32 %v1379, %v1699
        %v1701 = vpop.f32.mrb[0].mxu0
        %1702 = vmatprep.mubr.f32.mxu0 0.0
        %1703 = vmatmul.mubr.f32.gmra.mrb[0].mxu0 %v1493
        %v1704 = vpop.f32.mrb[0].mxu0
        %v1705 = vadd.f32 %v1384, %v1704
        %v1706 = vpop.f32.mrb[0].mxu0
        %1707 = vmatprep.mubr.f32.mxu0 0.0
        %1708 = vmatmul.mubr.f32.gmra.mrb[0].mxu0 %v1496
        %v1709 = vpop.f32.mrb[0].mxu0
        %v1710 = vadd.f32 %v1389, %v1709
        %v1711 = vpop.f32.mrb[0].mxu0
        %1712 = vmatprep.mubr.f32.mxu0 0.0
        %1713 = vmatmul.mubr.f32.gmra.mrb[0].mxu0 %v1499
        %v1714 = vpop.f32.mrb[0].mxu0
        %v1715 = vadd.f32 %v1394, %v1714
        %v1716 = vpop.f32.mrb[0].mxu0
        %1717 = vmatprep.mubr.f32.mxu0 0.0
        %1718 = vmatmul.mubr.f32.gmra.mrb[0].mxu0 %v1502
        %v1719 = vpop.f32.mrb[0].mxu0
        %v1720 = vadd.f32 %v1399, %v1719
        %v1721 = vpop.f32.mrb[0].mxu0
        %1722 = vmatprep.mubr.f32.mxu0 0.0
        %1723 = vmatmul.mubr.f32.gmra.mrb[0].mxu0 %v1505
        %v1724 = vpop.f32.mrb[0].mxu0
        %v1725 = vadd.f32 %v1404, %v1724
        %v1726 = vpop.f32.mrb[0].mxu0
        %1727 = vmatprep.mubr.f32.mxu0 0.0
        %1728 = vmatmul.mubr.f32.gmra.mrb[0].mxu0 %v1508
        %v1729 = vpop.f32.mrb[0].mxu0
        %v1730 = vadd.f32 %v1409, %v1729
        %v1731 = vpop.f32.mrb[0].mxu0
        %1732 = vmatprep.mubr.f32.mxu0 0.0
        %1733 = vmatmul.mubr.f32.gmra.mrb[0].mxu0 %v1511
        %v1734 = vpop.f32.mrb[0].mxu0
        %v1735 = vadd.f32 %v1414, %v1734
        %v1736 = vpop.f32.mrb[0].mxu0
        %1737 = vdwg.mxu0
        %s1738 = scalar_lea.vmem [#allocation6], 80
        %v1739 = vld [vmem:[%s1738] sm:$0xff]
        %v1740 = vld [vmem:[%s1738 + $0x8] sm:$0xff]
        %v1742 = vsel %vm1095, %v1057, 0
        %v1745 = vsel %vm1095, %v1058, 0
        %v1748 = vsel %vm1095, %v1059, 0
        %v1751 = vsel %vm1095, %v1060, 0
        %v1754 = vsel %vm1095, %v1061, 0
        %v1757 = vsel %vm1095, %v1062, 0
        %v1760 = vsel %vm1095, %v1063, 0
        %v1763 = vsel %vm1095, %v1064, 0
        %v1766 = vsel %vm1095, %v1065, 0
        %v1769 = vsel %vm1095, %v1066, 0
        %v1772 = vsel %vm1095, %v1067, 0
        %v1775 = vsel %vm1095, %v1068, 0
        %v1778 = vsel %vm1095, %v1069, 0
        %v1781 = vsel %vm1095, %v1070, 0
        %v1784 = vsel %vm1095, %v1071, 0
        %v1787 = vsel %vm1095, %v1072, 0
        %v1790 = vsel %vm1095, %v1073, 0
        %v1793 = vsel %vm1095, %v1074, 0
        %v1796 = vsel %vm1095, %v1075, 0
        %v1799 = vsel %vm1095, %v1076, 0
        %v1802 = vsel %vm1095, %v1077, 0
        %v1805 = vsel %vm1095, %v1078, 0
        %v1808 = vsel %vm1095, %v1079, 0
        %v1811 = vsel %vm1095, %v1080, 0
        %v1814 = vsel %vm1095, %v1081, 0
        %v1817 = vsel %vm1095, %v1082, 0
        %v1820 = vsel %vm1095, %v1083, 0
        %v1823 = vsel %vm1095, %v1084, 0
        %v1826 = vsel %vm1095, %v1085, 0
        %v1829 = vsel %vm1095, %v1086, 0
        %v1832 = vsel %vm1095, %v1087, 0
        %v1835 = vsel %vm1095, %v1088, 0
        %1837 = vmatprep.subr.mxu0 0.0
        %1838 = vmatpush1.msra.mxu0 %v1739
        %1839 = vmatprep.subr.mxu0 0.0
        %1840 = vmatpush1.msra.mxu0 %v1740
        %1841 = vmatprep.subr.mxu0 0.0
        %1842 = vmatpush1.msra.mxu0 0.0
        %1843 = vmatprep.subr.mxu0 0.0
        %1844 = vmatpush1.msra.mxu0 0.0
        %1845 = vmatprep.subr.mxu0 0.0
        %1846 = vmatpush1.msra.mxu0 0.0
        %1847 = vmatprep.subr.mxu0 0.0
        %1848 = vmatpush1.msra.mxu0 0.0
        %1849 = vmatprep.subr.mxu0 0.0
        %1850 = vmatpush1.msra.mxu0 0.0
        %1851 = vmatprep.subr.mxu0 0.0
        %1852 = vmatpush1.msra.mxu0 0.0
        %1853 = vmatprep.subr.mxu0 0.0
        %1854 = vmatpush1.msra.mxu0 0.0
        %1855 = vmatprep.subr.mxu0 0.0
        %1856 = vmatpush1.msra.mxu0 0.0
        %1857 = vmatprep.subr.mxu0 0.0
        %1858 = vmatpush1.msra.mxu0 0.0
        %1859 = vmatprep.subr.mxu0 0.0
        %1860 = vmatpush1.msra.mxu0 0.0
        %1861 = vmatprep.subr.mxu0 0.0
        %1862 = vmatpush1.msra.mxu0 0.0
        %1863 = vmatprep.subr.mxu0 0.0
        %1864 = vmatpush1.msra.mxu0 0.0
        %1865 = vmatprep.subr.mxu0 0.0
        %1866 = vmatpush1.msra.mxu0 0.0
        %1867 = vmatprep.subr.mxu0 0.0
        %1868 = vmatpush1.msra.mxu0 0.0
        %1869 = vmatprep.subr.mxu0 0.0
        %1870 = vmatpush1.msra.mxu0 0.0
        %1871 = vmatprep.subr.mxu0 0.0
        %1872 = vmatpush1.msra.mxu0 0.0
        %1873 = vmatprep.subr.mxu0 0.0
        %1874 = vmatpush1.msra.mxu0 0.0
        %1875 = vmatprep.subr.mxu0 0.0
        %1876 = vmatpush1.msra.mxu0 0.0
        %1877 = vmatprep.subr.mxu0 0.0
        %1878 = vmatpush1.msra.mxu0 0.0
        %1879 = vmatprep.subr.mxu0 0.0
        %1880 = vmatpush1.msra.mxu0 0.0
        %1881 = vmatprep.subr.mxu0 0.0
        %1882 = vmatpush1.msra.mxu0 0.0
        %1883 = vmatprep.subr.mxu0 0.0
        %1884 = vmatpush1.msra.mxu0 0.0
        %1885 = vmatprep.subr.mxu0 0.0
        %1886 = vmatpush1.msra.mxu0 0.0
        %1887 = vmatprep.subr.mxu0 0.0
        %1888 = vmatpush1.msra.mxu0 0.0
        %1889 = vmatprep.subr.mxu0 0.0
        %1890 = vmatpush1.msra.mxu0 0.0
        %1891 = vmatprep.subr.mxu0 0.0
        %1892 = vmatpush1.msra.mxu0 0.0
        %1893 = vmatprep.subr.mxu0 0.0
        %1894 = vmatpush1.msra.mxu0 0.0
        %1895 = vmatprep.subr.mxu0 0.0
        %1896 = vmatpush1.msra.mxu0 0.0
        %1897 = vmatprep.subr.mxu0 0.0
        %1898 = vmatpush1.msra.mxu0 0.0
        %1899 = vmatprep.subr.mxu0 0.0
        %1900 = vmatpush1.msra.mxu0 0.0
        %1901 = vmatprep.mubr.f32.mxu0 0.0
        %1902 = vmatmul.mubr.f32.gmra.mrb[0].mxu0 %v1742
        %v1903 = vpop.f32.mrb[0].mxu0
        %v1904 = vadd.f32 0.0, %v1903
        %v1905 = vpop.f32.mrb[0].mxu0
        %1906 = vmatprep.mubr.f32.mxu0 0.0
        %1907 = vmatmul.mubr.f32.gmra.mrb[0].mxu0 %v1745
        %v1908 = vpop.f32.mrb[0].mxu0
        %v1909 = vadd.f32 0.0, %v1908
        %v1910 = vpop.f32.mrb[0].mxu0
        %1911 = vmatprep.mubr.f32.mxu0 0.0
        %1912 = vmatmul.mubr.f32.gmra.mrb[0].mxu0 %v1748
        %v1913 = vpop.f32.mrb[0].mxu0
        %v1914 = vadd.f32 0.0, %v1913
        %v1915 = vpop.f32.mrb[0].mxu0
        %1916 = vmatprep.mubr.f32.mxu0 0.0
        %1917 = vmatmul.mubr.f32.gmra.mrb[0].mxu0 %v1751
        %v1918 = vpop.f32.mrb[0].mxu0
        %v1919 = vadd.f32 0.0, %v1918
        %v1920 = vpop.f32.mrb[0].mxu0
        %1921 = vmatprep.mubr.f32.mxu0 0.0
        %1922 = vmatmul.mubr.f32.gmra.mrb[0].mxu0 %v1754
        %v1923 = vpop.f32.mrb[0].mxu0
        %v1924 = vadd.f32 0.0, %v1923
        %v1925 = vpop.f32.mrb[0].mxu0
        %1926 = vmatprep.mubr.f32.mxu0 0.0
        %1927 = vmatmul.mubr.f32.gmra.mrb[0].mxu0 %v1757
        %v1928 = vpop.f32.mrb[0].mxu0
        %v1929 = vadd.f32 0.0, %v1928
        %v1930 = vpop.f32.mrb[0].mxu0
        %1931 = vmatprep.mubr.f32.mxu0 0.0
        %1932 = vmatmul.mubr.f32.gmra.mrb[0].mxu0 %v1760
        %v1933 = vpop.f32.mrb[0].mxu0
        %v1934 = vadd.f32 0.0, %v1933
        %v1935 = vpop.f32.mrb[0].mxu0
        %1936 = vmatprep.mubr.f32.mxu0 0.0
        %1937 = vmatmul.mubr.f32.gmra.mrb[0].mxu0 %v1763
        %v1938 = vpop.f32.mrb[0].mxu0
        %v1939 = vadd.f32 0.0, %v1938
        %v1940 = vpop.f32.mrb[0].mxu0
        %1941 = vmatprep.mubr.f32.mxu0 0.0
        %1942 = vmatmul.mubr.f32.gmra.mrb[0].mxu0 %v1766
        %v1943 = vpop.f32.mrb[0].mxu0
        %v1944 = vadd.f32 0.0, %v1943
        %v1945 = vpop.f32.mrb[0].mxu0
        %1946 = vmatprep.mubr.f32.mxu0 0.0
        %1947 = vmatmul.mubr.f32.gmra.mrb[0].mxu0 %v1769
        %v1948 = vpop.f32.mrb[0].mxu0
        %v1949 = vadd.f32 0.0, %v1948
        %v1950 = vpop.f32.mrb[0].mxu0
        %1951 = vmatprep.mubr.f32.mxu0 0.0
        %1952 = vmatmul.mubr.f32.gmra.mrb[0].mxu0 %v1772
        %v1953 = vpop.f32.mrb[0].mxu0
        %v1954 = vadd.f32 0.0, %v1953
        %v1955 = vpop.f32.mrb[0].mxu0
        %1956 = vmatprep.mubr.f32.mxu0 0.0
        %1957 = vmatmul.mubr.f32.gmra.mrb[0].mxu0 %v1775
        %v1958 = vpop.f32.mrb[0].mxu0
        %v1959 = vadd.f32 0.0, %v1958
        %v1960 = vpop.f32.mrb[0].mxu0
        %1961 = vmatprep.mubr.f32.mxu0 0.0
        %1962 = vmatmul.mubr.f32.gmra.mrb[0].mxu0 %v1778
        %v1963 = vpop.f32.mrb[0].mxu0
        %v1964 = vadd.f32 0.0, %v1963
        %v1965 = vpop.f32.mrb[0].mxu0
        %1966 = vmatprep.mubr.f32.mxu0 0.0
        %1967 = vmatmul.mubr.f32.gmra.mrb[0].mxu0 %v1781
        %v1968 = vpop.f32.mrb[0].mxu0
        %v1969 = vadd.f32 0.0, %v1968
        %v1970 = vpop.f32.mrb[0].mxu0
        %1971 = vmatprep.mubr.f32.mxu0 0.0
        %1972 = vmatmul.mubr.f32.gmra.mrb[0].mxu0 %v1784
        %v1973 = vpop.f32.mrb[0].mxu0
        %v1974 = vadd.f32 0.0, %v1973
        %v1975 = vpop.f32.mrb[0].mxu0
        %1976 = vmatprep.mubr.f32.mxu0 0.0
        %1977 = vmatmul.mubr.f32.gmra.mrb[0].mxu0 %v1787
        %v1978 = vpop.f32.mrb[0].mxu0
        %v1979 = vadd.f32 0.0, %v1978
        %v1980 = vpop.f32.mrb[0].mxu0
        %1981 = vmatprep.mubr.f32.mxu0 0.0
        %1982 = vmatmul.mubr.f32.gmra.mrb[0].mxu0 %v1790
        %v1983 = vpop.f32.mrb[0].mxu0
        %v1984 = vadd.f32 0.0, %v1983
        %v1985 = vpop.f32.mrb[0].mxu0
        %1986 = vmatprep.mubr.f32.mxu0 0.0
        %1987 = vmatmul.mubr.f32.gmra.mrb[0].mxu0 %v1793
        %v1988 = vpop.f32.mrb[0].mxu0
        %v1989 = vadd.f32 0.0, %v1988
        %v1990 = vpop.f32.mrb[0].mxu0
        %1991 = vmatprep.mubr.f32.mxu0 0.0
        %1992 = vmatmul.mubr.f32.gmra.mrb[0].mxu0 %v1796
        %v1993 = vpop.f32.mrb[0].mxu0
        %v1994 = vadd.f32 0.0, %v1993
        %v1995 = vpop.f32.mrb[0].mxu0
        %1996 = vmatprep.mubr.f32.mxu0 0.0
        %1997 = vmatmul.mubr.f32.gmra.mrb[0].mxu0 %v1799
        %v1998 = vpop.f32.mrb[0].mxu0
        %v1999 = vadd.f32 0.0, %v1998
        %v2000 = vpop.f32.mrb[0].mxu0
        %2001 = vmatprep.mubr.f32.mxu0 0.0
        %2002 = vmatmul.mubr.f32.gmra.mrb[0].mxu0 %v1802
        %v2003 = vpop.f32.mrb[0].mxu0
        %v2004 = vadd.f32 0.0, %v2003
        %v2005 = vpop.f32.mrb[0].mxu0
        %2006 = vmatprep.mubr.f32.mxu0 0.0
        %2007 = vmatmul.mubr.f32.gmra.mrb[0].mxu0 %v1805
        %v2008 = vpop.f32.mrb[0].mxu0
        %v2009 = vadd.f32 0.0, %v2008
        %v2010 = vpop.f32.mrb[0].mxu0
        %2011 = vmatprep.mubr.f32.mxu0 0.0
        %2012 = vmatmul.mubr.f32.gmra.mrb[0].mxu0 %v1808
        %v2013 = vpop.f32.mrb[0].mxu0
        %v2014 = vadd.f32 0.0, %v2013
        %v2015 = vpop.f32.mrb[0].mxu0
        %2016 = vmatprep.mubr.f32.mxu0 0.0
        %2017 = vmatmul.mubr.f32.gmra.mrb[0].mxu0 %v1811
        %v2018 = vpop.f32.mrb[0].mxu0
        %v2019 = vadd.f32 0.0, %v2018
        %v2020 = vpop.f32.mrb[0].mxu0
        %2021 = vmatprep.mubr.f32.mxu0 0.0
        %2022 = vmatmul.mubr.f32.gmra.mrb[0].mxu0 %v1814
        %v2023 = vpop.f32.mrb[0].mxu0
        %v2024 = vadd.f32 0.0, %v2023
        %v2025 = vpop.f32.mrb[0].mxu0
        %2026 = vmatprep.mubr.f32.mxu0 0.0
        %2027 = vmatmul.mubr.f32.gmra.mrb[0].mxu0 %v1817
        %v2028 = vpop.f32.mrb[0].mxu0
        %v2029 = vadd.f32 0.0, %v2028
        %v2030 = vpop.f32.mrb[0].mxu0
        %2031 = vmatprep.mubr.f32.mxu0 0.0
        %2032 = vmatmul.mubr.f32.gmra.mrb[0].mxu0 %v1820
        %v2033 = vpop.f32.mrb[0].mxu0
        %v2034 = vadd.f32 0.0, %v2033
        %v2035 = vpop.f32.mrb[0].mxu0
        %2036 = vmatprep.mubr.f32.mxu0 0.0
        %2037 = vmatmul.mubr.f32.gmra.mrb[0].mxu0 %v1823
        %v2038 = vpop.f32.mrb[0].mxu0
        %v2039 = vadd.f32 0.0, %v2038
        %v2040 = vpop.f32.mrb[0].mxu0
        %2041 = vmatprep.mubr.f32.mxu0 0.0
        %2042 = vmatmul.mubr.f32.gmra.mrb[0].mxu0 %v1826
        %v2043 = vpop.f32.mrb[0].mxu0
        %v2044 = vadd.f32 0.0, %v2043
        %v2045 = vpop.f32.mrb[0].mxu0
        %2046 = vmatprep.mubr.f32.mxu0 0.0
        %2047 = vmatmul.mubr.f32.gmra.mrb[0].mxu0 %v1829
        %v2048 = vpop.f32.mrb[0].mxu0
        %v2049 = vadd.f32 0.0, %v2048
        %v2050 = vpop.f32.mrb[0].mxu0
        %2051 = vmatprep.mubr.f32.mxu0 0.0
        %2052 = vmatmul.mubr.f32.gmra.mrb[0].mxu0 %v1832
        %v2053 = vpop.f32.mrb[0].mxu0
        %v2054 = vadd.f32 0.0, %v2053
        %v2055 = vpop.f32.mrb[0].mxu0
        %2056 = vmatprep.mubr.f32.mxu0 0.0
        %2057 = vmatmul.mubr.f32.gmra.mrb[0].mxu0 %v1835
        %v2058 = vpop.f32.mrb[0].mxu0
        %v2059 = vadd.f32 0.0, %v2058
        %v2060 = vpop.f32.mrb[0].mxu0
        %2061 = vdwg.mxu0
        %v2062 = vadd.f32 %v1580, %v1904
        %v2063 = vadd.f32 %v1585, %v1909
        %v2064 = vadd.f32 %v1590, %v1914
        %v2065 = vadd.f32 %v1595, %v1919
        %v2066 = vadd.f32 %v1600, %v1924
        %v2067 = vadd.f32 %v1605, %v1929
        %v2068 = vadd.f32 %v1610, %v1934
        %v2069 = vadd.f32 %v1615, %v1939
        %v2070 = vadd.f32 %v1620, %v1944
        %v2071 = vadd.f32 %v1625, %v1949
        %v2072 = vadd.f32 %v1630, %v1954
        %v2073 = vadd.f32 %v1635, %v1959
        %v2074 = vadd.f32 %v1640, %v1964
        %v2075 = vadd.f32 %v1645, %v1969
        %v2076 = vadd.f32 %v1650, %v1974
        %v2077 = vadd.f32 %v1655, %v1979
        %v2078 = vadd.f32 %v1660, %v1984
        %v2079 = vadd.f32 %v1665, %v1989
        %v2080 = vadd.f32 %v1670, %v1994
        %v2081 = vadd.f32 %v1675, %v1999
        %v2082 = vadd.f32 %v1680, %v2004
        %v2083 = vadd.f32 %v1685, %v2009
        %v2084 = vadd.f32 %v1690, %v2014
        %v2085 = vadd.f32 %v1695, %v2019
        %v2086 = vadd.f32 %v1700, %v2024
        %v2087 = vadd.f32 %v1705, %v2029
        %v2088 = vadd.f32 %v1710, %v2034
        %v2089 = vadd.f32 %v1715, %v2039
        %v2090 = vadd.f32 %v1720, %v2044
        %v2091 = vadd.f32 %v1725, %v2049
        %v2092 = vadd.f32 %v1730, %v2054
        %v2093 = vadd.f32 %v1735, %v2059
        %p2094 = scmp.eq.s32.totalorder %s28, 0
        // Predicated region
        $region41: #{tpu_custom_call.1} parent=31 // pred_check
          %p2095 = pneg %p2094
        $region42: #{tpu_custom_call.1} parent=31 // pred_check_branch
          %2097 = sbr.rel (%p2095) target = $region44
        $region43: #{tpu_custom_call.1} parent=31 // pred_region
          %2098 = vst [vmem:[#allocation2] sm:$0xff] %v2062
          %2099 = vst [vmem:[#allocation2 + $0x8] sm:$0xff] %v2063
          %2100 = vst [vmem:[#allocation2 + $0x10] sm:$0xff] %v2064
          %2101 = vst [vmem:[#allocation2 + $0x18] sm:$0xff] %v2065
          %2102 = vst [vmem:[#allocation2 + $0x20] sm:$0xff] %v2066
          %2103 = vst [vmem:[#allocation2 + $0x28] sm:$0xff] %v2067
          %2104 = vst [vmem:[#allocation2 + $0x30] sm:$0xff] %v2068
          %2105 = vst [vmem:[#allocation2 + $0x38] sm:$0xff] %v2069
          %2106 = vst [vmem:[#allocation2 + $0x40] sm:$0xff] %v2070
          %2107 = vst [vmem:[#allocation2 + $0x48] sm:$0xff] %v2071
          %2108 = vst [vmem:[#allocation2 + $0x50] sm:$0xff] %v2072
          %2109 = vst [vmem:[#allocation2 + $0x58] sm:$0xff] %v2073
          %2110 = vst [vmem:[#allocation2 + $0x60] sm:$0xff] %v2074
          %2111 = vst [vmem:[#allocation2 + $0x68] sm:$0xff] %v2075
          %2112 = vst [vmem:[#allocation2 + $0x70] sm:$0xff] %v2076
          %2113 = vst [vmem:[#allocation2 + $0x78] sm:$0xff] %v2077
          %2114 = vst [vmem:[#allocation2 + $0x80] sm:$0xff] %v2078
          %2115 = vst [vmem:[#allocation2 + $0x88] sm:$0xff] %v2079
          %2116 = vst [vmem:[#allocation2 + $0x90] sm:$0xff] %v2080
          %2117 = vst [vmem:[#allocation2 + $0x98] sm:$0xff] %v2081
          %2118 = vst [vmem:[#allocation2 + $0xa0] sm:$0xff] %v2082
          %2119 = vst [vmem:[#allocation2 + $0xa8] sm:$0xff] %v2083
          %2120 = vst [vmem:[#allocation2 + $0xb0] sm:$0xff] %v2084
          %2121 = vst [vmem:[#allocation2 + $0xb8] sm:$0xff] %v2085
          %2122 = vst [vmem:[#allocation2 + $0xc0] sm:$0xff] %v2086
          %2123 = vst [vmem:[#allocation2 + $0xc8] sm:$0xff] %v2087
          %2124 = vst [vmem:[#allocation2 + $0xd0] sm:$0xff] %v2088
          %2125 = vst [vmem:[#allocation2 + $0xd8] sm:$0xff] %v2089
          %2126 = vst [vmem:[#allocation2 + $0xe0] sm:$0xff] %v2090
          %2127 = vst [vmem:[#allocation2 + $0xe8] sm:$0xff] %v2091
          %2128 = vst [vmem:[#allocation2 + $0xf0] sm:$0xff] %v2092
          %2129 = vst [vmem:[#allocation2 + $0xf8] sm:$0xff] %v2093
        $region44: #{tpu_custom_call.1} parent=31 // pred_fallthru
          _
        %p2130 = scmp.ne.s32.totalorder %s28, 0
        // Predicated region
        $region45: #{tpu_custom_call.1} parent=31 // pred_check
          %p2131 = pneg %p2130
        $region46: #{tpu_custom_call.1} parent=31 // pred_check_branch
          %2133 = sbr.rel (%p2131) target = $region48
        $region47: #{tpu_custom_call.1} parent=31 // pred_region
          %v2134 = vld [vmem:[#allocation2] sm:$0xff]
          %v2135 = vld [vmem:[#allocation2 + $0x8] sm:$0xff]
          %v2136 = vld [vmem:[#allocation2 + $0x10] sm:$0xff]
          %v2137 = vld [vmem:[#allocation2 + $0x18] sm:$0xff]
          %v2138 = vld [vmem:[#allocation2 + $0x20] sm:$0xff]
          %v2139 = vld [vmem:[#allocation2 + $0x28] sm:$0xff]
          %v2140 = vld [vmem:[#allocation2 + $0x30] sm:$0xff]
          %v2141 = vld [vmem:[#allocation2 + $0x38] sm:$0xff]
          %v2142 = vld [vmem:[#allocation2 + $0x40] sm:$0xff]
          %v2143 = vld [vmem:[#allocation2 + $0x48] sm:$0xff]
          %v2144 = vld [vmem:[#allocation2 + $0x50] sm:$0xff]
          %v2145 = vld [vmem:[#allocation2 + $0x58] sm:$0xff]
          %v2146 = vld [vmem:[#allocation2 + $0x60] sm:$0xff]
          %v2147 = vld [vmem:[#allocation2 + $0x68] sm:$0xff]
          %v2148 = vld [vmem:[#allocation2 + $0x70] sm:$0xff]
          %v2149 = vld [vmem:[#allocation2 + $0x78] sm:$0xff]
          %v2150 = vld [vmem:[#allocation2 + $0x80] sm:$0xff]
          %v2151 = vld [vmem:[#allocation2 + $0x88] sm:$0xff]
          %v2152 = vld [vmem:[#allocation2 + $0x90] sm:$0xff]
          %v2153 = vld [vmem:[#allocation2 + $0x98] sm:$0xff]
          %v2154 = vld [vmem:[#allocation2 + $0xa0] sm:$0xff]
          %v2155 = vld [vmem:[#allocation2 + $0xa8] sm:$0xff]
          %v2156 = vld [vmem:[#allocation2 + $0xb0] sm:$0xff]
          %v2157 = vld [vmem:[#allocation2 + $0xb8] sm:$0xff]
          %v2158 = vld [vmem:[#allocation2 + $0xc0] sm:$0xff]
          %v2159 = vld [vmem:[#allocation2 + $0xc8] sm:$0xff]
          %v2160 = vld [vmem:[#allocation2 + $0xd0] sm:$0xff]
          %v2161 = vld [vmem:[#allocation2 + $0xd8] sm:$0xff]
          %v2162 = vld [vmem:[#allocation2 + $0xe0] sm:$0xff]
          %v2163 = vld [vmem:[#allocation2 + $0xe8] sm:$0xff]
          %v2164 = vld [vmem:[#allocation2 + $0xf0] sm:$0xff]
          %v2165 = vld [vmem:[#allocation2 + $0xf8] sm:$0xff]
          %v2166 = vadd.f32 %v2134, %v2062
          %v2167 = vadd.f32 %v2135, %v2063
          %v2168 = vadd.f32 %v2136, %v2064
          %v2169 = vadd.f32 %v2137, %v2065
          %v2170 = vadd.f32 %v2138, %v2066
          %v2171 = vadd.f32 %v2139, %v2067
          %v2172 = vadd.f32 %v2140, %v2068
          %v2173 = vadd.f32 %v2141, %v2069
          %v2174 = vadd.f32 %v2142, %v2070
          %v2175 = vadd.f32 %v2143, %v2071
          %v2176 = vadd.f32 %v2144, %v2072
          %v2177 = vadd.f32 %v2145, %v2073
          %v2178 = vadd.f32 %v2146, %v2074
          %v2179 = vadd.f32 %v2147, %v2075
          %v2180 = vadd.f32 %v2148, %v2076
          %v2181 = vadd.f32 %v2149, %v2077
          %v2182 = vadd.f32 %v2150, %v2078
          %v2183 = vadd.f32 %v2151, %v2079
          %v2184 = vadd.f32 %v2152, %v2080
          %v2185 = vadd.f32 %v2153, %v2081
          %v2186 = vadd.f32 %v2154, %v2082
          %v2187 = vadd.f32 %v2155, %v2083
          %v2188 = vadd.f32 %v2156, %v2084
          %v2189 = vadd.f32 %v2157, %v2085
          %v2190 = vadd.f32 %v2158, %v2086
          %v2191 = vadd.f32 %v2159, %v2087
          %v2192 = vadd.f32 %v2160, %v2088
          %v2193 = vadd.f32 %v2161, %v2089
          %v2194 = vadd.f32 %v2162, %v2090
          %v2195 = vadd.f32 %v2163, %v2091
          %v2196 = vadd.f32 %v2164, %v2092
          %v2197 = vadd.f32 %v2165, %v2093
          %2198 = vst [vmem:[#allocation2] sm:$0xff] %v2166
          %2199 = vst [vmem:[#allocation2 + $0x8] sm:$0xff] %v2167
          %2200 = vst [vmem:[#allocation2 + $0x10] sm:$0xff] %v2168
          %2201 = vst [vmem:[#allocation2 + $0x18] sm:$0xff] %v2169
          %2202 = vst [vmem:[#allocation2 + $0x20] sm:$0xff] %v2170
          %2203 = vst [vmem:[#allocation2 + $0x28] sm:$0xff] %v2171
          %2204 = vst [vmem:[#allocation2 + $0x30] sm:$0xff] %v2172
          %2205 = vst [vmem:[#allocation2 + $0x38] sm:$0xff] %v2173
          %2206 = vst [vmem:[#allocation2 + $0x40] sm:$0xff] %v2174
          %2207 = vst [vmem:[#allocation2 + $0x48] sm:$0xff] %v2175
          %2208 = vst [vmem:[#allocation2 + $0x50] sm:$0xff] %v2176
          %2209 = vst [vmem:[#allocation2 + $0x58] sm:$0xff] %v2177
          %2210 = vst [vmem:[#allocation2 + $0x60] sm:$0xff] %v2178
          %2211 = vst [vmem:[#allocation2 + $0x68] sm:$0xff] %v2179
          %2212 = vst [vmem:[#allocation2 + $0x70] sm:$0xff] %v2180
          %2213 = vst [vmem:[#allocation2 + $0x78] sm:$0xff] %v2181
          %2214 = vst [vmem:[#allocation2 + $0x80] sm:$0xff] %v2182
          %2215 = vst [vmem:[#allocation2 + $0x88] sm:$0xff] %v2183
          %2216 = vst [vmem:[#allocation2 + $0x90] sm:$0xff] %v2184
          %2217 = vst [vmem:[#allocation2 + $0x98] sm:$0xff] %v2185
          %2218 = vst [vmem:[#allocation2 + $0xa0] sm:$0xff] %v2186
          %2219 = vst [vmem:[#allocation2 + $0xa8] sm:$0xff] %v2187
          %2220 = vst [vmem:[#allocation2 + $0xb0] sm:$0xff] %v2188
          %2221 = vst [vmem:[#allocation2 + $0xb8] sm:$0xff] %v2189
          %2222 = vst [vmem:[#allocation2 + $0xc0] sm:$0xff] %v2190
          %2223 = vst [vmem:[#allocation2 + $0xc8] sm:$0xff] %v2191
          %2224 = vst [vmem:[#allocation2 + $0xd0] sm:$0xff] %v2192
          %2225 = vst [vmem:[#allocation2 + $0xd8] sm:$0xff] %v2193
          %2226 = vst [vmem:[#allocation2 + $0xe0] sm:$0xff] %v2194
          %2227 = vst [vmem:[#allocation2 + $0xe8] sm:$0xff] %v2195
          %2228 = vst [vmem:[#allocation2 + $0xf0] sm:$0xff] %v2196
          %2229 = vst [vmem:[#allocation2 + $0xf8] sm:$0xff] %v2197
        $region48: #{tpu_custom_call.1} parent=31 // pred_fallthru
          _
        %v2230 = vld [vmem:[%s220] sm:$0xff]
        %v2231 = vld [vmem:[%s220 + $0x8] sm:$0xff]
        %v2232 = vld [vmem:[%s220 + $0x10] sm:$0xff]
        %v2233 = vld [vmem:[%s220 + $0x18] sm:$0xff]
        %v2234 = vld [vmem:[%s220 + $0x20] sm:$0xff]
        %v2235 = vld [vmem:[%s220 + $0x28] sm:$0xff]
        %v2236 = vld [vmem:[%s220 + $0x30] sm:$0xff]
        %v2237 = vld [vmem:[%s220 + $0x38] sm:$0xff]
        %v2238 = vld [vmem:[%s220 + $0x40] sm:$0xff]
        %v2239 = vld [vmem:[%s220 + $0x48] sm:$0xff]
        %v2240 = vld [vmem:[%s220 + $0x50] sm:$0xff]
        %v2241 = vld [vmem:[%s220 + $0x58] sm:$0xff]
        %v2242 = vld [vmem:[%s220 + $0x60] sm:$0xff]
        %v2243 = vld [vmem:[%s220 + $0x68] sm:$0xff]
        %v2244 = vld [vmem:[%s220 + $0x70] sm:$0xff]
        %v2245 = vld [vmem:[%s220 + $0x78] sm:$0xff]
        %v2246 = vld [vmem:[%s220 + $0x80] sm:$0xff]
        %v2247 = vld [vmem:[%s220 + $0x88] sm:$0xff]
        %v2248 = vld [vmem:[%s220 + $0x90] sm:$0xff]
        %v2249 = vld [vmem:[%s220 + $0x98] sm:$0xff]
        %v2250 = vld [vmem:[%s220 + $0xa0] sm:$0xff]
        %v2251 = vld [vmem:[%s220 + $0xa8] sm:$0xff]
        %v2252 = vld [vmem:[%s220 + $0xb0] sm:$0xff]
        %v2253 = vld [vmem:[%s220 + $0xb8] sm:$0xff]
        %v2254 = vld [vmem:[%s220 + $0xc0] sm:$0xff]
        %v2255 = vld [vmem:[%s220 + $0xc8] sm:$0xff]
        %v2256 = vld [vmem:[%s220 + $0xd0] sm:$0xff]
        %v2257 = vld [vmem:[%s220 + $0xd8] sm:$0xff]
        %v2258 = vld [vmem:[%s220 + $0xe0] sm:$0xff]
        %v2259 = vld [vmem:[%s220 + $0xe8] sm:$0xff]
        %v2260 = vrot.slane %v2230, 7
        %v2261 = vrot.slane %v2231, 7
        %v2262 = vrot.slane %v2232, 7
        %v2263 = vrot.slane %v2233, 7
        %v2264 = vrot.slane %v2234, 7
        %v2265 = vrot.slane %v2235, 7
        %v2266 = vrot.slane %v2236, 7
        %v2267 = vrot.slane %v2237, 7
        %v2268 = vrot.slane %v2238, 7
        %v2269 = vrot.slane %v2239, 7
        %v2270 = vrot.slane %v2240, 7
        %v2271 = vrot.slane %v2241, 7
        %v2272 = vrot.slane %v2242, 7
        %v2273 = vrot.slane %v2243, 7
        %v2274 = vrot.slane %v2244, 7
        %v2275 = vrot.slane %v2245, 7
        %v2276 = vrot.slane %v2246, 7
        %v2277 = vrot.slane %v2247, 7
        %v2278 = vrot.slane %v2248, 7
        %v2279 = vrot.slane %v2249, 7
        %v2280 = vrot.slane %v2250, 7
        %v2281 = vrot.slane %v2251, 7
        %v2282 = vrot.slane %v2252, 7
        %v2283 = vrot.slane %v2253, 7
        %v2284 = vrot.slane %v2254, 7
        %v2285 = vrot.slane %v2255, 7
        %v2286 = vrot.slane %v2256, 7
        %v2287 = vrot.slane %v2257, 7
        %v2288 = vrot.slane %v2258, 7
        %v2289 = vrot.slane %v2259, 7
        %v2290 = vsel %vm799, %v2288, %v2289
        %v2291 = vsel %vm799, %v2287, %v2288
        %v2292 = vsel %vm799, %v2286, %v2287
        %v2293 = vsel %vm799, %v2285, %v2286
        %v2294 = vsel %vm799, %v2284, %v2285
        %v2295 = vsel %vm799, %v2283, %v2284
        %v2296 = vsel %vm799, %v2282, %v2283
        %v2297 = vsel %vm799, %v2281, %v2282
        %v2298 = vsel %vm799, %v2280, %v2281
        %v2299 = vsel %vm799, %v2279, %v2280
        %v2300 = vsel %vm799, %v2278, %v2279
        %v2301 = vsel %vm799, %v2277, %v2278
        %v2302 = vsel %vm799, %v2276, %v2277
        %v2303 = vsel %vm799, %v2275, %v2276
        %v2304 = vsel %vm799, %v2274, %v2275
        %v2305 = vsel %vm799, %v2273, %v2274
        %v2306 = vsel %vm799, %v2272, %v2273
        %v2307 = vsel %vm799, %v2271, %v2272
        %v2308 = vsel %vm799, %v2270, %v2271
        %v2309 = vsel %vm799, %v2269, %v2270
        %v2310 = vsel %vm799, %v2268, %v2269
        %v2311 = vsel %vm799, %v2267, %v2268
        %v2312 = vsel %vm799, %v2266, %v2267
        %v2313 = vsel %vm799, %v2265, %v2266
        %v2314 = vsel %vm799, %v2264, %v2265
        %v2315 = vsel %vm799, %v2263, %v2264
        %v2316 = vsel %vm799, %v2262, %v2263
        %v2317 = vsel %vm799, %v2261, %v2262
        %v2318 = vsel %vm799, %v2260, %v2261
        %v2319 = vsel %vm799, %v2289, %v2260
        %v2320 = vsel %vm864, %v2319, 0.0
        %v2321 = vsel %vm865, %v2318, 0.0
        %v2322 = vsel %vm866, %v2317, 0.0
        %v2323 = vsel %vm867, %v2316, 0.0
        %v2324 = vsel %vm868, %v2315, 0.0
        %v2325 = vsel %vm869, %v2314, 0.0
        %v2326 = vsel %vm870, %v2313, 0.0
        %v2327 = vsel %vm871, %v2312, 0.0
        %v2328 = vsel %vm872, %v2311, 0.0
        %v2329 = vsel %vm873, %v2310, 0.0
        %v2330 = vsel %vm874, %v2309, 0.0
        %v2331 = vsel %vm875, %v2308, 0.0
        %v2332 = vsel %vm876, %v2307, 0.0
        %v2333 = vsel %vm877, %v2306, 0.0
        %v2334 = vsel %vm878, %v2305, 0.0
        %v2335 = vsel %vm879, %v2304, 0.0
        %v2336 = vsel %vm880, %v2303, 0.0
        %v2337 = vsel %vm881, %v2302, 0.0
        %v2338 = vsel %vm882, %v2301, 0.0
        %v2339 = vsel %vm883, %v2300, 0.0
        %v2340 = vsel %vm884, %v2299, 0.0
        %v2341 = vsel %vm885, %v2298, 0.0
        %v2342 = vsel %vm886, %v2297, 0.0
        %v2343 = vsel %vm887, %v2296, 0.0
        %v2344 = vsel %vm888, %v2295, 0.0
        %v2345 = vsel %vm889, %v2294, 0.0
        %v2346 = vsel %vm890, %v2293, 0.0
        %v2347 = vsel %vm891, %v2292, 0.0
        %v2348 = vsel %vm892, %v2291, 0.0
        %v2349 = vsel %vm893, %v2290, 0.0
        %v2350 = vrot.slane %v2230, 1
        %v2351 = vrot.slane %v2231, 1
        %v2352 = vrot.slane %v2232, 1
        %v2353 = vrot.slane %v2233, 1
        %v2354 = vrot.slane %v2234, 1
        %v2355 = vrot.slane %v2235, 1
        %v2356 = vrot.slane %v2236, 1
        %v2357 = vrot.slane %v2237, 1
        %v2358 = vrot.slane %v2238, 1
        %v2359 = vrot.slane %v2239, 1
        %v2360 = vrot.slane %v2240, 1
        %v2361 = vrot.slane %v2241, 1
        %v2362 = vrot.slane %v2242, 1
        %v2363 = vrot.slane %v2243, 1
        %v2364 = vrot.slane %v2244, 1
        %v2365 = vrot.slane %v2245, 1
        %v2366 = vrot.slane %v2246, 1
        %v2367 = vrot.slane %v2247, 1
        %v2368 = vrot.slane %v2248, 1
        %v2369 = vrot.slane %v2249, 1
        %v2370 = vrot.slane %v2250, 1
        %v2371 = vrot.slane %v2251, 1
        %v2372 = vrot.slane %v2252, 1
        %v2373 = vrot.slane %v2253, 1
        %v2374 = vrot.slane %v2254, 1
        %v2375 = vrot.slane %v2255, 1
        %v2376 = vrot.slane %v2256, 1
        %v2377 = vrot.slane %v2257, 1
        %v2378 = vrot.slane %v2258, 1
        %v2379 = vrot.slane %v2259, 1
        %v2380 = vsel %vm960, %v2378, %v2379
        %v2381 = vsel %vm960, %v2377, %v2378
        %v2382 = vsel %vm960, %v2376, %v2377
        %v2383 = vsel %vm960, %v2375, %v2376
        %v2384 = vsel %vm960, %v2374, %v2375
        %v2385 = vsel %vm960, %v2373, %v2374
        %v2386 = vsel %vm960, %v2372, %v2373
        %v2387 = vsel %vm960, %v2371, %v2372
        %v2388 = vsel %vm960, %v2370, %v2371
        %v2389 = vsel %vm960, %v2369, %v2370
        %v2390 = vsel %vm960, %v2368, %v2369
        %v2391 = vsel %vm960, %v2367, %v2368
        %v2392 = vsel %vm960, %v2366, %v2367
        %v2393 = vsel %vm960, %v2365, %v2366
        %v2394 = vsel %vm960, %v2364, %v2365
        %v2395 = vsel %vm960, %v2363, %v2364
        %v2396 = vsel %vm960, %v2362, %v2363
        %v2397 = vsel %vm960, %v2361, %v2362
        %v2398 = vsel %vm960, %v2360, %v2361
        %v2399 = vsel %vm960, %v2359, %v2360
        %v2400 = vsel %vm960, %v2358, %v2359
        %v2401 = vsel %vm960, %v2357, %v2358
        %v2402 = vsel %vm960, %v2356, %v2357
        %v2403 = vsel %vm960, %v2355, %v2356
        %v2404 = vsel %vm960, %v2354, %v2355
        %v2405 = vsel %vm960, %v2353, %v2354
        %v2406 = vsel %vm960, %v2352, %v2353
        %v2407 = vsel %vm960, %v2351, %v2352
        %v2408 = vsel %vm960, %v2350, %v2351
        %v2409 = vsel %vm960, %v2379, %v2350
        %v2410 = vsel %vm1025, %v2408, 0.0
        %v2411 = vsel %vm1026, %v2407, 0.0
        %v2412 = vsel %vm1027, %v2406, 0.0
        %v2413 = vsel %vm1028, %v2405, 0.0
        %v2414 = vsel %vm1029, %v2404, 0.0
        %v2415 = vsel %vm1030, %v2403, 0.0
        %v2416 = vsel %vm1031, %v2402, 0.0
        %v2417 = vsel %vm1032, %v2401, 0.0
        %v2418 = vsel %vm1033, %v2400, 0.0
        %v2419 = vsel %vm1034, %v2399, 0.0
        %v2420 = vsel %vm1035, %v2398, 0.0
        %v2421 = vsel %vm1036, %v2397, 0.0
        %v2422 = vsel %vm1037, %v2396, 0.0
        %v2423 = vsel %vm1038, %v2395, 0.0
        %v2424 = vsel %vm1039, %v2394, 0.0
        %v2425 = vsel %vm1040, %v2393, 0.0
        %v2426 = vsel %vm1041, %v2392, 0.0
        %v2427 = vsel %vm1042, %v2391, 0.0
        %v2428 = vsel %vm1043, %v2390, 0.0
        %v2429 = vsel %vm1044, %v2389, 0.0
        %v2430 = vsel %vm1045, %v2388, 0.0
        %v2431 = vsel %vm1046, %v2387, 0.0
        %v2432 = vsel %vm1047, %v2386, 0.0
        %v2433 = vsel %vm1048, %v2385, 0.0
        %v2434 = vsel %vm1049, %v2384, 0.0
        %v2435 = vsel %vm1050, %v2383, 0.0
        %v2436 = vsel %vm1051, %v2382, 0.0
        %v2437 = vsel %vm1052, %v2381, 0.0
        %v2438 = vsel %vm1053, %v2380, 0.0
        %v2439 = vsel %vm1054, %v2409, 0.0
        %v2440 = vld [vmem:[#allocation6] sm:$0xff]
        %v2441 = vld [vmem:[#allocation6 + $0x8] sm:$0xff]
        %s2442 = scalar_lea.vmem [#allocation6], 16
        %v2443 = vld [vmem:[%s2442] sm:$0xff]
        %v2444 = vld [vmem:[%s2442 + $0x8] sm:$0xff]
        %v2446 = vsel %vm1095, %v2230, 0
        %v2449 = vsel %vm1095, %v2231, 0
        %v2452 = vsel %vm1095, %v2232, 0
        %v2455 = vsel %vm1095, %v2233, 0
        %v2458 = vsel %vm1095, %v2234, 0
        %v2461 = vsel %vm1095, %v2235, 0
        %v2464 = vsel %vm1095, %v2236, 0
        %v2467 = vsel %vm1095, %v2237, 0
        %v2470 = vsel %vm1095, %v2238, 0
        %v2473 = vsel %vm1095, %v2239, 0
        %v2476 = vsel %vm1095, %v2240, 0
        %v2479 = vsel %vm1095, %v2241, 0
        %v2482 = vsel %vm1095, %v2242, 0
        %v2485 = vsel %vm1095, %v2243, 0
        %v2488 = vsel %vm1095, %v2244, 0
        %v2491 = vsel %vm1095, %v2245, 0
        %v2494 = vsel %vm1095, %v2246, 0
        %v2497 = vsel %vm1095, %v2247, 0
        %v2500 = vsel %vm1095, %v2248, 0
        %v2503 = vsel %vm1095, %v2249, 0
        %v2506 = vsel %vm1095, %v2250, 0
        %v2509 = vsel %vm1095, %v2251, 0
        %v2512 = vsel %vm1095, %v2252, 0
        %v2515 = vsel %vm1095, %v2253, 0
        %v2518 = vsel %vm1095, %v2254, 0
        %v2521 = vsel %vm1095, %v2255, 0
        %v2524 = vsel %vm1095, %v2256, 0
        %v2527 = vsel %vm1095, %v2257, 0
        %v2530 = vsel %vm1095, %v2258, 0
        %v2533 = vsel %vm1095, %v2259, 0
        %2535 = vmatprep.subr.mxu0 0.0
        %2536 = vmatpush1.msra.mxu0 %v2443
        %2537 = vmatprep.subr.mxu0 0.0
        %2538 = vmatpush1.msra.mxu0 %v2444
        %2539 = vmatprep.subr.mxu0 0.0
        %2540 = vmatpush1.msra.mxu0 0.0
        %2541 = vmatprep.subr.mxu0 0.0
        %2542 = vmatpush1.msra.mxu0 0.0
        %2543 = vmatprep.subr.mxu0 0.0
        %2544 = vmatpush1.msra.mxu0 0.0
        %2545 = vmatprep.subr.mxu0 0.0
        %2546 = vmatpush1.msra.mxu0 0.0
        %2547 = vmatprep.subr.mxu0 0.0
        %2548 = vmatpush1.msra.mxu0 0.0
        %2549 = vmatprep.subr.mxu0 0.0
        %2550 = vmatpush1.msra.mxu0 0.0
        %2551 = vmatprep.subr.mxu0 0.0
        %2552 = vmatpush1.msra.mxu0 0.0
        %2553 = vmatprep.subr.mxu0 0.0
        %2554 = vmatpush1.msra.mxu0 0.0
        %2555 = vmatprep.subr.mxu0 0.0
        %2556 = vmatpush1.msra.mxu0 0.0
        %2557 = vmatprep.subr.mxu0 0.0
        %2558 = vmatpush1.msra.mxu0 0.0
        %2559 = vmatprep.subr.mxu0 0.0
        %2560 = vmatpush1.msra.mxu0 0.0
        %2561 = vmatprep.subr.mxu0 0.0
        %2562 = vmatpush1.msra.mxu0 0.0
        %2563 = vmatprep.subr.mxu0 0.0
        %2564 = vmatpush1.msra.mxu0 0.0
        %2565 = vmatprep.subr.mxu0 0.0
        %2566 = vmatpush1.msra.mxu0 0.0
        %2567 = vmatprep.subr.mxu0 0.0
        %2568 = vmatpush1.msra.mxu0 0.0
        %2569 = vmatprep.subr.mxu0 0.0
        %2570 = vmatpush1.msra.mxu0 0.0
        %2571 = vmatprep.subr.mxu0 0.0
        %2572 = vmatpush1.msra.mxu0 0.0
        %2573 = vmatprep.subr.mxu0 0.0
        %2574 = vmatpush1.msra.mxu0 0.0
        %2575 = vmatprep.subr.mxu0 0.0
        %2576 = vmatpush1.msra.mxu0 0.0
        %2577 = vmatprep.subr.mxu0 0.0
        %2578 = vmatpush1.msra.mxu0 0.0
        %2579 = vmatprep.subr.mxu0 0.0
        %2580 = vmatpush1.msra.mxu0 0.0
        %2581 = vmatprep.subr.mxu0 0.0
        %2582 = vmatpush1.msra.mxu0 0.0
        %2583 = vmatprep.subr.mxu0 0.0
        %2584 = vmatpush1.msra.mxu0 0.0
        %2585 = vmatprep.subr.mxu0 0.0
        %2586 = vmatpush1.msra.mxu0 0.0
        %2587 = vmatprep.subr.mxu0 0.0
        %2588 = vmatpush1.msra.mxu0 0.0
        %2589 = vmatprep.subr.mxu0 0.0
        %2590 = vmatpush1.msra.mxu0 0.0
        %2591 = vmatprep.subr.mxu0 0.0
        %2592 = vmatpush1.msra.mxu0 0.0
        %2593 = vmatprep.subr.mxu0 0.0
        %2594 = vmatpush1.msra.mxu0 0.0
        %2595 = vmatprep.subr.mxu0 0.0
        %2596 = vmatpush1.msra.mxu0 0.0
        %2597 = vmatprep.subr.mxu0 0.0
        %2598 = vmatpush1.msra.mxu0 0.0
        %2599 = vmatprep.mubr.f32.mxu0 0.0
        %2600 = vmatmul.mubr.f32.gmra.mrb[0].mxu0 %v2446
        %v2601 = vpop.f32.mrb[0].mxu0
        %v2602 = vadd.f32 0.0, %v2601
        %v2603 = vpop.f32.mrb[0].mxu0
        %2604 = vmatprep.mubr.f32.mxu0 0.0
        %2605 = vmatmul.mubr.f32.gmra.mrb[0].mxu0 %v2449
        %v2606 = vpop.f32.mrb[0].mxu0
        %v2607 = vadd.f32 0.0, %v2606
        %v2608 = vpop.f32.mrb[0].mxu0
        %2609 = vmatprep.mubr.f32.mxu0 0.0
        %2610 = vmatmul.mubr.f32.gmra.mrb[0].mxu0 %v2452
        %v2611 = vpop.f32.mrb[0].mxu0
        %v2612 = vadd.f32 0.0, %v2611
        %v2613 = vpop.f32.mrb[0].mxu0
        %2614 = vmatprep.mubr.f32.mxu0 0.0
        %2615 = vmatmul.mubr.f32.gmra.mrb[0].mxu0 %v2455
        %v2616 = vpop.f32.mrb[0].mxu0
        %v2617 = vadd.f32 0.0, %v2616
        %v2618 = vpop.f32.mrb[0].mxu0
        %2619 = vmatprep.mubr.f32.mxu0 0.0
        %2620 = vmatmul.mubr.f32.gmra.mrb[0].mxu0 %v2458
        %v2621 = vpop.f32.mrb[0].mxu0
        %v2622 = vadd.f32 0.0, %v2621
        %v2623 = vpop.f32.mrb[0].mxu0
        %2624 = vmatprep.mubr.f32.mxu0 0.0
        %2625 = vmatmul.mubr.f32.gmra.mrb[0].mxu0 %v2461
        %v2626 = vpop.f32.mrb[0].mxu0
        %v2627 = vadd.f32 0.0, %v2626
        %v2628 = vpop.f32.mrb[0].mxu0
        %2629 = vmatprep.mubr.f32.mxu0 0.0
        %2630 = vmatmul.mubr.f32.gmra.mrb[0].mxu0 %v2464
        %v2631 = vpop.f32.mrb[0].mxu0
        %v2632 = vadd.f32 0.0, %v2631
        %v2633 = vpop.f32.mrb[0].mxu0
        %2634 = vmatprep.mubr.f32.mxu0 0.0
        %2635 = vmatmul.mubr.f32.gmra.mrb[0].mxu0 %v2467
        %v2636 = vpop.f32.mrb[0].mxu0
        %v2637 = vadd.f32 0.0, %v2636
        %v2638 = vpop.f32.mrb[0].mxu0
        %2639 = vmatprep.mubr.f32.mxu0 0.0
        %2640 = vmatmul.mubr.f32.gmra.mrb[0].mxu0 %v2470
        %v2641 = vpop.f32.mrb[0].mxu0
        %v2642 = vadd.f32 0.0, %v2641
        %v2643 = vpop.f32.mrb[0].mxu0
        %2644 = vmatprep.mubr.f32.mxu0 0.0
        %2645 = vmatmul.mubr.f32.gmra.mrb[0].mxu0 %v2473
        %v2646 = vpop.f32.mrb[0].mxu0
        %v2647 = vadd.f32 0.0, %v2646
        %v2648 = vpop.f32.mrb[0].mxu0
        %2649 = vmatprep.mubr.f32.mxu0 0.0
        %2650 = vmatmul.mubr.f32.gmra.mrb[0].mxu0 %v2476
        %v2651 = vpop.f32.mrb[0].mxu0
        %v2652 = vadd.f32 0.0, %v2651
        %v2653 = vpop.f32.mrb[0].mxu0
        %2654 = vmatprep.mubr.f32.mxu0 0.0
        %2655 = vmatmul.mubr.f32.gmra.mrb[0].mxu0 %v2479
        %v2656 = vpop.f32.mrb[0].mxu0
        %v2657 = vadd.f32 0.0, %v2656
        %v2658 = vpop.f32.mrb[0].mxu0
        %2659 = vmatprep.mubr.f32.mxu0 0.0
        %2660 = vmatmul.mubr.f32.gmra.mrb[0].mxu0 %v2482
        %v2661 = vpop.f32.mrb[0].mxu0
        %v2662 = vadd.f32 0.0, %v2661
        %v2663 = vpop.f32.mrb[0].mxu0
        %2664 = vmatprep.mubr.f32.mxu0 0.0
        %2665 = vmatmul.mubr.f32.gmra.mrb[0].mxu0 %v2485
        %v2666 = vpop.f32.mrb[0].mxu0
        %v2667 = vadd.f32 0.0, %v2666
        %v2668 = vpop.f32.mrb[0].mxu0
        %2669 = vmatprep.mubr.f32.mxu0 0.0
        %2670 = vmatmul.mubr.f32.gmra.mrb[0].mxu0 %v2488
        %v2671 = vpop.f32.mrb[0].mxu0
        %v2672 = vadd.f32 0.0, %v2671
        %v2673 = vpop.f32.mrb[0].mxu0
        %2674 = vmatprep.mubr.f32.mxu0 0.0
        %2675 = vmatmul.mubr.f32.gmra.mrb[0].mxu0 %v2491
        %v2676 = vpop.f32.mrb[0].mxu0
        %v2677 = vadd.f32 0.0, %v2676
        %v2678 = vpop.f32.mrb[0].mxu0
        %2679 = vmatprep.mubr.f32.mxu0 0.0
        %2680 = vmatmul.mubr.f32.gmra.mrb[0].mxu0 %v2494
        %v2681 = vpop.f32.mrb[0].mxu0
        %v2682 = vadd.f32 0.0, %v2681
        %v2683 = vpop.f32.mrb[0].mxu0
        %2684 = vmatprep.mubr.f32.mxu0 0.0
        %2685 = vmatmul.mubr.f32.gmra.mrb[0].mxu0 %v2497
        %v2686 = vpop.f32.mrb[0].mxu0
        %v2687 = vadd.f32 0.0, %v2686
        %v2688 = vpop.f32.mrb[0].mxu0
        %2689 = vmatprep.mubr.f32.mxu0 0.0
        %2690 = vmatmul.mubr.f32.gmra.mrb[0].mxu0 %v2500
        %v2691 = vpop.f32.mrb[0].mxu0
        %v2692 = vadd.f32 0.0, %v2691
        %v2693 = vpop.f32.mrb[0].mxu0
        %2694 = vmatprep.mubr.f32.mxu0 0.0
        %2695 = vmatmul.mubr.f32.gmra.mrb[0].mxu0 %v2503
        %v2696 = vpop.f32.mrb[0].mxu0
        %v2697 = vadd.f32 0.0, %v2696
        %v2698 = vpop.f32.mrb[0].mxu0
        %2699 = vmatprep.mubr.f32.mxu0 0.0
        %2700 = vmatmul.mubr.f32.gmra.mrb[0].mxu0 %v2506
        %v2701 = vpop.f32.mrb[0].mxu0
        %v2702 = vadd.f32 0.0, %v2701
        %v2703 = vpop.f32.mrb[0].mxu0
        %2704 = vmatprep.mubr.f32.mxu0 0.0
        %2705 = vmatmul.mubr.f32.gmra.mrb[0].mxu0 %v2509
        %v2706 = vpop.f32.mrb[0].mxu0
        %v2707 = vadd.f32 0.0, %v2706
        %v2708 = vpop.f32.mrb[0].mxu0
        %2709 = vmatprep.mubr.f32.mxu0 0.0
        %2710 = vmatmul.mubr.f32.gmra.mrb[0].mxu0 %v2512
        %v2711 = vpop.f32.mrb[0].mxu0
        %v2712 = vadd.f32 0.0, %v2711
        %v2713 = vpop.f32.mrb[0].mxu0
        %2714 = vmatprep.mubr.f32.mxu0 0.0
        %2715 = vmatmul.mubr.f32.gmra.mrb[0].mxu0 %v2515
        %v2716 = vpop.f32.mrb[0].mxu0
        %v2717 = vadd.f32 0.0, %v2716
        %v2718 = vpop.f32.mrb[0].mxu0
        %2719 = vmatprep.mubr.f32.mxu0 0.0
        %2720 = vmatmul.mubr.f32.gmra.mrb[0].mxu0 %v2518
        %v2721 = vpop.f32.mrb[0].mxu0
        %v2722 = vadd.f32 0.0, %v2721
        %v2723 = vpop.f32.mrb[0].mxu0
        %2724 = vmatprep.mubr.f32.mxu0 0.0
        %2725 = vmatmul.mubr.f32.gmra.mrb[0].mxu0 %v2521
        %v2726 = vpop.f32.mrb[0].mxu0
        %v2727 = vadd.f32 0.0, %v2726
        %v2728 = vpop.f32.mrb[0].mxu0
        %2729 = vmatprep.mubr.f32.mxu0 0.0
        %2730 = vmatmul.mubr.f32.gmra.mrb[0].mxu0 %v2524
        %v2731 = vpop.f32.mrb[0].mxu0
        %v2732 = vadd.f32 0.0, %v2731
        %v2733 = vpop.f32.mrb[0].mxu0
        %2734 = vmatprep.mubr.f32.mxu0 0.0
        %2735 = vmatmul.mubr.f32.gmra.mrb[0].mxu0 %v2527
        %v2736 = vpop.f32.mrb[0].mxu0
        %v2737 = vadd.f32 0.0, %v2736
        %v2738 = vpop.f32.mrb[0].mxu0
        %2739 = vmatprep.mubr.f32.mxu0 0.0
        %2740 = vmatmul.mubr.f32.gmra.mrb[0].mxu0 %v2530
        %v2741 = vpop.f32.mrb[0].mxu0
        %v2742 = vadd.f32 0.0, %v2741
        %v2743 = vpop.f32.mrb[0].mxu0
        %2744 = vmatprep.mubr.f32.mxu0 0.0
        %2745 = vmatmul.mubr.f32.gmra.mrb[0].mxu0 %v2533
        %v2746 = vpop.f32.mrb[0].mxu0
        %v2747 = vadd.f32 0.0, %v2746
        %v2748 = vpop.f32.mrb[0].mxu0
        %2749 = vdwg.mxu0
        %v2751 = vsel %vm1095, %v2320, 0
        %v2754 = vsel %vm1095, %v2321, 0
        %v2757 = vsel %vm1095, %v2322, 0
        %v2760 = vsel %vm1095, %v2323, 0
        %v2763 = vsel %vm1095, %v2324, 0
        %v2766 = vsel %vm1095, %v2325, 0
        %v2769 = vsel %vm1095, %v2326, 0
        %v2772 = vsel %vm1095, %v2327, 0
        %v2775 = vsel %vm1095, %v2328, 0
        %v2778 = vsel %vm1095, %v2329, 0
        %v2781 = vsel %vm1095, %v2330, 0
        %v2784 = vsel %vm1095, %v2331, 0
        %v2787 = vsel %vm1095, %v2332, 0
        %v2790 = vsel %vm1095, %v2333, 0
        %v2793 = vsel %vm1095, %v2334, 0
        %v2796 = vsel %vm1095, %v2335, 0
        %v2799 = vsel %vm1095, %v2336, 0
        %v2802 = vsel %vm1095, %v2337, 0
        %v2805 = vsel %vm1095, %v2338, 0
        %v2808 = vsel %vm1095, %v2339, 0
        %v2811 = vsel %vm1095, %v2340, 0
        %v2814 = vsel %vm1095, %v2341, 0
        %v2817 = vsel %vm1095, %v2342, 0
        %v2820 = vsel %vm1095, %v2343, 0
        %v2823 = vsel %vm1095, %v2344, 0
        %v2826 = vsel %vm1095, %v2345, 0
        %v2829 = vsel %vm1095, %v2346, 0
        %v2832 = vsel %vm1095, %v2347, 0
        %v2835 = vsel %vm1095, %v2348, 0
        %v2838 = vsel %vm1095, %v2349, 0
        %2840 = vmatprep.subr.mxu0 0.0
        %2841 = vmatpush1.msra.mxu0 %v2440
        %2842 = vmatprep.subr.mxu0 0.0
        %2843 = vmatpush1.msra.mxu0 %v2441
        %2844 = vmatprep.subr.mxu0 0.0
        %2845 = vmatpush1.msra.mxu0 0.0
        %2846 = vmatprep.subr.mxu0 0.0
        %2847 = vmatpush1.msra.mxu0 0.0
        %2848 = vmatprep.subr.mxu0 0.0
        %2849 = vmatpush1.msra.mxu0 0.0
        %2850 = vmatprep.subr.mxu0 0.0
        %2851 = vmatpush1.msra.mxu0 0.0
        %2852 = vmatprep.subr.mxu0 0.0
        %2853 = vmatpush1.msra.mxu0 0.0
        %2854 = vmatprep.subr.mxu0 0.0
        %2855 = vmatpush1.msra.mxu0 0.0
        %2856 = vmatprep.subr.mxu0 0.0
        %2857 = vmatpush1.msra.mxu0 0.0
        %2858 = vmatprep.subr.mxu0 0.0
        %2859 = vmatpush1.msra.mxu0 0.0
        %2860 = vmatprep.subr.mxu0 0.0
        %2861 = vmatpush1.msra.mxu0 0.0
        %2862 = vmatprep.subr.mxu0 0.0
        %2863 = vmatpush1.msra.mxu0 0.0
        %2864 = vmatprep.subr.mxu0 0.0
        %2865 = vmatpush1.msra.mxu0 0.0
        %2866 = vmatprep.subr.mxu0 0.0
        %2867 = vmatpush1.msra.mxu0 0.0
        %2868 = vmatprep.subr.mxu0 0.0
        %2869 = vmatpush1.msra.mxu0 0.0
        %2870 = vmatprep.subr.mxu0 0.0
        %2871 = vmatpush1.msra.mxu0 0.0
        %2872 = vmatprep.subr.mxu0 0.0
        %2873 = vmatpush1.msra.mxu0 0.0
        %2874 = vmatprep.subr.mxu0 0.0
        %2875 = vmatpush1.msra.mxu0 0.0
        %2876 = vmatprep.subr.mxu0 0.0
        %2877 = vmatpush1.msra.mxu0 0.0
        %2878 = vmatprep.subr.mxu0 0.0
        %2879 = vmatpush1.msra.mxu0 0.0
        %2880 = vmatprep.subr.mxu0 0.0
        %2881 = vmatpush1.msra.mxu0 0.0
        %2882 = vmatprep.subr.mxu0 0.0
        %2883 = vmatpush1.msra.mxu0 0.0
        %2884 = vmatprep.subr.mxu0 0.0
        %2885 = vmatpush1.msra.mxu0 0.0
        %2886 = vmatprep.subr.mxu0 0.0
        %2887 = vmatpush1.msra.mxu0 0.0
        %2888 = vmatprep.subr.mxu0 0.0
        %2889 = vmatpush1.msra.mxu0 0.0
        %2890 = vmatprep.subr.mxu0 0.0
        %2891 = vmatpush1.msra.mxu0 0.0
        %2892 = vmatprep.subr.mxu0 0.0
        %2893 = vmatpush1.msra.mxu0 0.0
        %2894 = vmatprep.subr.mxu0 0.0
        %2895 = vmatpush1.msra.mxu0 0.0
        %2896 = vmatprep.subr.mxu0 0.0
        %2897 = vmatpush1.msra.mxu0 0.0
        %2898 = vmatprep.subr.mxu0 0.0
        %2899 = vmatpush1.msra.mxu0 0.0
        %2900 = vmatprep.subr.mxu0 0.0
        %2901 = vmatpush1.msra.mxu0 0.0
        %2902 = vmatprep.subr.mxu0 0.0
        %2903 = vmatpush1.msra.mxu0 0.0
        %2904 = vmatprep.mubr.f32.mxu0 0.0
        %2905 = vmatmul.mubr.f32.gmra.mrb[0].mxu0 %v2751
        %v2906 = vpop.f32.mrb[0].mxu0
        %v2907 = vadd.f32 %v2602, %v2906
        %v2908 = vpop.f32.mrb[0].mxu0
        %2909 = vmatprep.mubr.f32.mxu0 0.0
        %2910 = vmatmul.mubr.f32.gmra.mrb[0].mxu0 %v2754
        %v2911 = vpop.f32.mrb[0].mxu0
        %v2912 = vadd.f32 %v2607, %v2911
        %v2913 = vpop.f32.mrb[0].mxu0
        %2914 = vmatprep.mubr.f32.mxu0 0.0
        %2915 = vmatmul.mubr.f32.gmra.mrb[0].mxu0 %v2757
        %v2916 = vpop.f32.mrb[0].mxu0
        %v2917 = vadd.f32 %v2612, %v2916
        %v2918 = vpop.f32.mrb[0].mxu0
        %2919 = vmatprep.mubr.f32.mxu0 0.0
        %2920 = vmatmul.mubr.f32.gmra.mrb[0].mxu0 %v2760
        %v2921 = vpop.f32.mrb[0].mxu0
        %v2922 = vadd.f32 %v2617, %v2921
        %v2923 = vpop.f32.mrb[0].mxu0
        %2924 = vmatprep.mubr.f32.mxu0 0.0
        %2925 = vmatmul.mubr.f32.gmra.mrb[0].mxu0 %v2763
        %v2926 = vpop.f32.mrb[0].mxu0
        %v2927 = vadd.f32 %v2622, %v2926
        %v2928 = vpop.f32.mrb[0].mxu0
        %2929 = vmatprep.mubr.f32.mxu0 0.0
        %2930 = vmatmul.mubr.f32.gmra.mrb[0].mxu0 %v2766
        %v2931 = vpop.f32.mrb[0].mxu0
        %v2932 = vadd.f32 %v2627, %v2931
        %v2933 = vpop.f32.mrb[0].mxu0
        %2934 = vmatprep.mubr.f32.mxu0 0.0
        %2935 = vmatmul.mubr.f32.gmra.mrb[0].mxu0 %v2769
        %v2936 = vpop.f32.mrb[0].mxu0
        %v2937 = vadd.f32 %v2632, %v2936
        %v2938 = vpop.f32.mrb[0].mxu0
        %2939 = vmatprep.mubr.f32.mxu0 0.0
        %2940 = vmatmul.mubr.f32.gmra.mrb[0].mxu0 %v2772
        %v2941 = vpop.f32.mrb[0].mxu0
        %v2942 = vadd.f32 %v2637, %v2941
        %v2943 = vpop.f32.mrb[0].mxu0
        %2944 = vmatprep.mubr.f32.mxu0 0.0
        %2945 = vmatmul.mubr.f32.gmra.mrb[0].mxu0 %v2775
        %v2946 = vpop.f32.mrb[0].mxu0
        %v2947 = vadd.f32 %v2642, %v2946
        %v2948 = vpop.f32.mrb[0].mxu0
        %2949 = vmatprep.mubr.f32.mxu0 0.0
        %2950 = vmatmul.mubr.f32.gmra.mrb[0].mxu0 %v2778
        %v2951 = vpop.f32.mrb[0].mxu0
        %v2952 = vadd.f32 %v2647, %v2951
        %v2953 = vpop.f32.mrb[0].mxu0
        %2954 = vmatprep.mubr.f32.mxu0 0.0
        %2955 = vmatmul.mubr.f32.gmra.mrb[0].mxu0 %v2781
        %v2956 = vpop.f32.mrb[0].mxu0
        %v2957 = vadd.f32 %v2652, %v2956
        %v2958 = vpop.f32.mrb[0].mxu0
        %2959 = vmatprep.mubr.f32.mxu0 0.0
        %2960 = vmatmul.mubr.f32.gmra.mrb[0].mxu0 %v2784
        %v2961 = vpop.f32.mrb[0].mxu0
        %v2962 = vadd.f32 %v2657, %v2961
        %v2963 = vpop.f32.mrb[0].mxu0
        %2964 = vmatprep.mubr.f32.mxu0 0.0
        %2965 = vmatmul.mubr.f32.gmra.mrb[0].mxu0 %v2787
        %v2966 = vpop.f32.mrb[0].mxu0
        %v2967 = vadd.f32 %v2662, %v2966
        %v2968 = vpop.f32.mrb[0].mxu0
        %2969 = vmatprep.mubr.f32.mxu0 0.0
        %2970 = vmatmul.mubr.f32.gmra.mrb[0].mxu0 %v2790
        %v2971 = vpop.f32.mrb[0].mxu0
        %v2972 = vadd.f32 %v2667, %v2971
        %v2973 = vpop.f32.mrb[0].mxu0
        %2974 = vmatprep.mubr.f32.mxu0 0.0
        %2975 = vmatmul.mubr.f32.gmra.mrb[0].mxu0 %v2793
        %v2976 = vpop.f32.mrb[0].mxu0
        %v2977 = vadd.f32 %v2672, %v2976
        %v2978 = vpop.f32.mrb[0].mxu0
        %2979 = vmatprep.mubr.f32.mxu0 0.0
        %2980 = vmatmul.mubr.f32.gmra.mrb[0].mxu0 %v2796
        %v2981 = vpop.f32.mrb[0].mxu0
        %v2982 = vadd.f32 %v2677, %v2981
        %v2983 = vpop.f32.mrb[0].mxu0
        %2984 = vmatprep.mubr.f32.mxu0 0.0
        %2985 = vmatmul.mubr.f32.gmra.mrb[0].mxu0 %v2799
        %v2986 = vpop.f32.mrb[0].mxu0
        %v2987 = vadd.f32 %v2682, %v2986
        %v2988 = vpop.f32.mrb[0].mxu0
        %2989 = vmatprep.mubr.f32.mxu0 0.0
        %2990 = vmatmul.mubr.f32.gmra.mrb[0].mxu0 %v2802
        %v2991 = vpop.f32.mrb[0].mxu0
        %v2992 = vadd.f32 %v2687, %v2991
        %v2993 = vpop.f32.mrb[0].mxu0
        %2994 = vmatprep.mubr.f32.mxu0 0.0
        %2995 = vmatmul.mubr.f32.gmra.mrb[0].mxu0 %v2805
        %v2996 = vpop.f32.mrb[0].mxu0
        %v2997 = vadd.f32 %v2692, %v2996
        %v2998 = vpop.f32.mrb[0].mxu0
        %2999 = vmatprep.mubr.f32.mxu0 0.0
        %3000 = vmatmul.mubr.f32.gmra.mrb[0].mxu0 %v2808
        %v3001 = vpop.f32.mrb[0].mxu0
        %v3002 = vadd.f32 %v2697, %v3001
        %v3003 = vpop.f32.mrb[0].mxu0
        %3004 = vmatprep.mubr.f32.mxu0 0.0
        %3005 = vmatmul.mubr.f32.gmra.mrb[0].mxu0 %v2811
        %v3006 = vpop.f32.mrb[0].mxu0
        %v3007 = vadd.f32 %v2702, %v3006
        %v3008 = vpop.f32.mrb[0].mxu0
        %3009 = vmatprep.mubr.f32.mxu0 0.0
        %3010 = vmatmul.mubr.f32.gmra.mrb[0].mxu0 %v2814
        %v3011 = vpop.f32.mrb[0].mxu0
        %v3012 = vadd.f32 %v2707, %v3011
        %v3013 = vpop.f32.mrb[0].mxu0
        %3014 = vmatprep.mubr.f32.mxu0 0.0
        %3015 = vmatmul.mubr.f32.gmra.mrb[0].mxu0 %v2817
        %v3016 = vpop.f32.mrb[0].mxu0
        %v3017 = vadd.f32 %v2712, %v3016
        %v3018 = vpop.f32.mrb[0].mxu0
        %3019 = vmatprep.mubr.f32.mxu0 0.0
        %3020 = vmatmul.mubr.f32.gmra.mrb[0].mxu0 %v2820
        %v3021 = vpop.f32.mrb[0].mxu0
        %v3022 = vadd.f32 %v2717, %v3021
        %v3023 = vpop.f32.mrb[0].mxu0
        %3024 = vmatprep.mubr.f32.mxu0 0.0
        %3025 = vmatmul.mubr.f32.gmra.mrb[0].mxu0 %v2823
        %v3026 = vpop.f32.mrb[0].mxu0
        %v3027 = vadd.f32 %v2722, %v3026
        %v3028 = vpop.f32.mrb[0].mxu0
        %3029 = vmatprep.mubr.f32.mxu0 0.0
        %3030 = vmatmul.mubr.f32.gmra.mrb[0].mxu0 %v2826
        %v3031 = vpop.f32.mrb[0].mxu0
        %v3032 = vadd.f32 %v2727, %v3031
        %v3033 = vpop.f32.mrb[0].mxu0
        %3034 = vmatprep.mubr.f32.mxu0 0.0
        %3035 = vmatmul.mubr.f32.gmra.mrb[0].mxu0 %v2829
        %v3036 = vpop.f32.mrb[0].mxu0
        %v3037 = vadd.f32 %v2732, %v3036
        %v3038 = vpop.f32.mrb[0].mxu0
        %3039 = vmatprep.mubr.f32.mxu0 0.0
        %3040 = vmatmul.mubr.f32.gmra.mrb[0].mxu0 %v2832
        %v3041 = vpop.f32.mrb[0].mxu0
        %v3042 = vadd.f32 %v2737, %v3041
        %v3043 = vpop.f32.mrb[0].mxu0
        %3044 = vmatprep.mubr.f32.mxu0 0.0
        %3045 = vmatmul.mubr.f32.gmra.mrb[0].mxu0 %v2835
        %v3046 = vpop.f32.mrb[0].mxu0
        %v3047 = vadd.f32 %v2742, %v3046
        %v3048 = vpop.f32.mrb[0].mxu0
        %3049 = vmatprep.mubr.f32.mxu0 0.0
        %3050 = vmatmul.mubr.f32.gmra.mrb[0].mxu0 %v2838
        %v3051 = vpop.f32.mrb[0].mxu0
        %v3052 = vadd.f32 %v2747, %v3051
        %v3053 = vpop.f32.mrb[0].mxu0
        %3054 = vdwg.mxu0
        %s3055 = scalar_lea.vmem [#allocation6], 32
        %v3056 = vld [vmem:[%s3055] sm:$0xff]
        %v3057 = vld [vmem:[%s3055 + $0x8] sm:$0xff]
        %v3059 = vsel %vm1095, %v2410, 0
        %v3062 = vsel %vm1095, %v2411, 0
        %v3065 = vsel %vm1095, %v2412, 0
        %v3068 = vsel %vm1095, %v2413, 0
        %v3071 = vsel %vm1095, %v2414, 0
        %v3074 = vsel %vm1095, %v2415, 0
        %v3077 = vsel %vm1095, %v2416, 0
        %v3080 = vsel %vm1095, %v2417, 0
        %v3083 = vsel %vm1095, %v2418, 0
        %v3086 = vsel %vm1095, %v2419, 0
        %v3089 = vsel %vm1095, %v2420, 0
        %v3092 = vsel %vm1095, %v2421, 0
        %v3095 = vsel %vm1095, %v2422, 0
        %v3098 = vsel %vm1095, %v2423, 0
        %v3101 = vsel %vm1095, %v2424, 0
        %v3104 = vsel %vm1095, %v2425, 0
        %v3107 = vsel %vm1095, %v2426, 0
        %v3110 = vsel %vm1095, %v2427, 0
        %v3113 = vsel %vm1095, %v2428, 0
        %v3116 = vsel %vm1095, %v2429, 0
        %v3119 = vsel %vm1095, %v2430, 0
        %v3122 = vsel %vm1095, %v2431, 0
        %v3125 = vsel %vm1095, %v2432, 0
        %v3128 = vsel %vm1095, %v2433, 0
        %v3131 = vsel %vm1095, %v2434, 0
        %v3134 = vsel %vm1095, %v2435, 0
        %v3137 = vsel %vm1095, %v2436, 0
        %v3140 = vsel %vm1095, %v2437, 0
        %v3143 = vsel %vm1095, %v2438, 0
        %v3146 = vsel %vm1095, %v2439, 0
        %3148 = vmatprep.subr.mxu0 0.0
        %3149 = vmatpush1.msra.mxu0 %v3056
        %3150 = vmatprep.subr.mxu0 0.0
        %3151 = vmatpush1.msra.mxu0 %v3057
        %3152 = vmatprep.subr.mxu0 0.0
        %3153 = vmatpush1.msra.mxu0 0.0
        %3154 = vmatprep.subr.mxu0 0.0
        %3155 = vmatpush1.msra.mxu0 0.0
        %3156 = vmatprep.subr.mxu0 0.0
        %3157 = vmatpush1.msra.mxu0 0.0
        %3158 = vmatprep.subr.mxu0 0.0
        %3159 = vmatpush1.msra.mxu0 0.0
        %3160 = vmatprep.subr.mxu0 0.0
        %3161 = vmatpush1.msra.mxu0 0.0
        %3162 = vmatprep.subr.mxu0 0.0
        %3163 = vmatpush1.msra.mxu0 0.0
        %3164 = vmatprep.subr.mxu0 0.0
        %3165 = vmatpush1.msra.mxu0 0.0
        %3166 = vmatprep.subr.mxu0 0.0
        %3167 = vmatpush1.msra.mxu0 0.0
        %3168 = vmatprep.subr.mxu0 0.0
        %3169 = vmatpush1.msra.mxu0 0.0
        %3170 = vmatprep.subr.mxu0 0.0
        %3171 = vmatpush1.msra.mxu0 0.0
        %3172 = vmatprep.subr.mxu0 0.0
        %3173 = vmatpush1.msra.mxu0 0.0
        %3174 = vmatprep.subr.mxu0 0.0
        %3175 = vmatpush1.msra.mxu0 0.0
        %3176 = vmatprep.subr.mxu0 0.0
        %3177 = vmatpush1.msra.mxu0 0.0
        %3178 = vmatprep.subr.mxu0 0.0
        %3179 = vmatpush1.msra.mxu0 0.0
        %3180 = vmatprep.subr.mxu0 0.0
        %3181 = vmatpush1.msra.mxu0 0.0
        %3182 = vmatprep.subr.mxu0 0.0
        %3183 = vmatpush1.msra.mxu0 0.0
        %3184 = vmatprep.subr.mxu0 0.0
        %3185 = vmatpush1.msra.mxu0 0.0
        %3186 = vmatprep.subr.mxu0 0.0
        %3187 = vmatpush1.msra.mxu0 0.0
        %3188 = vmatprep.subr.mxu0 0.0
        %3189 = vmatpush1.msra.mxu0 0.0
        %3190 = vmatprep.subr.mxu0 0.0
        %3191 = vmatpush1.msra.mxu0 0.0
        %3192 = vmatprep.subr.mxu0 0.0
        %3193 = vmatpush1.msra.mxu0 0.0
        %3194 = vmatprep.subr.mxu0 0.0
        %3195 = vmatpush1.msra.mxu0 0.0
        %3196 = vmatprep.subr.mxu0 0.0
        %3197 = vmatpush1.msra.mxu0 0.0
        %3198 = vmatprep.subr.mxu0 0.0
        %3199 = vmatpush1.msra.mxu0 0.0
        %3200 = vmatprep.subr.mxu0 0.0
        %3201 = vmatpush1.msra.mxu0 0.0
        %3202 = vmatprep.subr.mxu0 0.0
        %3203 = vmatpush1.msra.mxu0 0.0
        %3204 = vmatprep.subr.mxu0 0.0
        %3205 = vmatpush1.msra.mxu0 0.0
        %3206 = vmatprep.subr.mxu0 0.0
        %3207 = vmatpush1.msra.mxu0 0.0
        %3208 = vmatprep.subr.mxu0 0.0
        %3209 = vmatpush1.msra.mxu0 0.0
        %3210 = vmatprep.subr.mxu0 0.0
        %3211 = vmatpush1.msra.mxu0 0.0
        %3212 = vmatprep.mubr.f32.mxu0 0.0
        %3213 = vmatmul.mubr.f32.gmra.mrb[0].mxu0 %v3059
        %v3214 = vpop.f32.mrb[0].mxu0
        %v3215 = vadd.f32 0.0, %v3214
        %v3216 = vpop.f32.mrb[0].mxu0
        %3217 = vmatprep.mubr.f32.mxu0 0.0
        %3218 = vmatmul.mubr.f32.gmra.mrb[0].mxu0 %v3062
        %v3219 = vpop.f32.mrb[0].mxu0
        %v3220 = vadd.f32 0.0, %v3219
        %v3221 = vpop.f32.mrb[0].mxu0
        %3222 = vmatprep.mubr.f32.mxu0 0.0
        %3223 = vmatmul.mubr.f32.gmra.mrb[0].mxu0 %v3065
        %v3224 = vpop.f32.mrb[0].mxu0
        %v3225 = vadd.f32 0.0, %v3224
        %v3226 = vpop.f32.mrb[0].mxu0
        %3227 = vmatprep.mubr.f32.mxu0 0.0
        %3228 = vmatmul.mubr.f32.gmra.mrb[0].mxu0 %v3068
        %v3229 = vpop.f32.mrb[0].mxu0
        %v3230 = vadd.f32 0.0, %v3229
        %v3231 = vpop.f32.mrb[0].mxu0
        %3232 = vmatprep.mubr.f32.mxu0 0.0
        %3233 = vmatmul.mubr.f32.gmra.mrb[0].mxu0 %v3071
        %v3234 = vpop.f32.mrb[0].mxu0
        %v3235 = vadd.f32 0.0, %v3234
        %v3236 = vpop.f32.mrb[0].mxu0
        %3237 = vmatprep.mubr.f32.mxu0 0.0
        %3238 = vmatmul.mubr.f32.gmra.mrb[0].mxu0 %v3074
        %v3239 = vpop.f32.mrb[0].mxu0
        %v3240 = vadd.f32 0.0, %v3239
        %v3241 = vpop.f32.mrb[0].mxu0
        %3242 = vmatprep.mubr.f32.mxu0 0.0
        %3243 = vmatmul.mubr.f32.gmra.mrb[0].mxu0 %v3077
        %v3244 = vpop.f32.mrb[0].mxu0
        %v3245 = vadd.f32 0.0, %v3244
        %v3246 = vpop.f32.mrb[0].mxu0
        %3247 = vmatprep.mubr.f32.mxu0 0.0
        %3248 = vmatmul.mubr.f32.gmra.mrb[0].mxu0 %v3080
        %v3249 = vpop.f32.mrb[0].mxu0
        %v3250 = vadd.f32 0.0, %v3249
        %v3251 = vpop.f32.mrb[0].mxu0
        %3252 = vmatprep.mubr.f32.mxu0 0.0
        %3253 = vmatmul.mubr.f32.gmra.mrb[0].mxu0 %v3083
        %v3254 = vpop.f32.mrb[0].mxu0
        %v3255 = vadd.f32 0.0, %v3254
        %v3256 = vpop.f32.mrb[0].mxu0
        %3257 = vmatprep.mubr.f32.mxu0 0.0
        %3258 = vmatmul.mubr.f32.gmra.mrb[0].mxu0 %v3086
        %v3259 = vpop.f32.mrb[0].mxu0
        %v3260 = vadd.f32 0.0, %v3259
        %v3261 = vpop.f32.mrb[0].mxu0
        %3262 = vmatprep.mubr.f32.mxu0 0.0
        %3263 = vmatmul.mubr.f32.gmra.mrb[0].mxu0 %v3089
        %v3264 = vpop.f32.mrb[0].mxu0
        %v3265 = vadd.f32 0.0, %v3264
        %v3266 = vpop.f32.mrb[0].mxu0
        %3267 = vmatprep.mubr.f32.mxu0 0.0
        %3268 = vmatmul.mubr.f32.gmra.mrb[0].mxu0 %v3092
        %v3269 = vpop.f32.mrb[0].mxu0
        %v3270 = vadd.f32 0.0, %v3269
        %v3271 = vpop.f32.mrb[0].mxu0
        %3272 = vmatprep.mubr.f32.mxu0 0.0
        %3273 = vmatmul.mubr.f32.gmra.mrb[0].mxu0 %v3095
        %v3274 = vpop.f32.mrb[0].mxu0
        %v3275 = vadd.f32 0.0, %v3274
        %v3276 = vpop.f32.mrb[0].mxu0
        %3277 = vmatprep.mubr.f32.mxu0 0.0
        %3278 = vmatmul.mubr.f32.gmra.mrb[0].mxu0 %v3098
        %v3279 = vpop.f32.mrb[0].mxu0
        %v3280 = vadd.f32 0.0, %v3279
        %v3281 = vpop.f32.mrb[0].mxu0
        %3282 = vmatprep.mubr.f32.mxu0 0.0
        %3283 = vmatmul.mubr.f32.gmra.mrb[0].mxu0 %v3101
        %v3284 = vpop.f32.mrb[0].mxu0
        %v3285 = vadd.f32 0.0, %v3284
        %v3286 = vpop.f32.mrb[0].mxu0
        %3287 = vmatprep.mubr.f32.mxu0 0.0
        %3288 = vmatmul.mubr.f32.gmra.mrb[0].mxu0 %v3104
        %v3289 = vpop.f32.mrb[0].mxu0
        %v3290 = vadd.f32 0.0, %v3289
        %v3291 = vpop.f32.mrb[0].mxu0
        %3292 = vmatprep.mubr.f32.mxu0 0.0
        %3293 = vmatmul.mubr.f32.gmra.mrb[0].mxu0 %v3107
        %v3294 = vpop.f32.mrb[0].mxu0
        %v3295 = vadd.f32 0.0, %v3294
        %v3296 = vpop.f32.mrb[0].mxu0
        %3297 = vmatprep.mubr.f32.mxu0 0.0
        %3298 = vmatmul.mubr.f32.gmra.mrb[0].mxu0 %v3110
        %v3299 = vpop.f32.mrb[0].mxu0
        %v3300 = vadd.f32 0.0, %v3299
        %v3301 = vpop.f32.mrb[0].mxu0
        %3302 = vmatprep.mubr.f32.mxu0 0.0
        %3303 = vmatmul.mubr.f32.gmra.mrb[0].mxu0 %v3113
        %v3304 = vpop.f32.mrb[0].mxu0
        %v3305 = vadd.f32 0.0, %v3304
        %v3306 = vpop.f32.mrb[0].mxu0
        %3307 = vmatprep.mubr.f32.mxu0 0.0
        %3308 = vmatmul.mubr.f32.gmra.mrb[0].mxu0 %v3116
        %v3309 = vpop.f32.mrb[0].mxu0
        %v3310 = vadd.f32 0.0, %v3309
        %v3311 = vpop.f32.mrb[0].mxu0
        %3312 = vmatprep.mubr.f32.mxu0 0.0
        %3313 = vmatmul.mubr.f32.gmra.mrb[0].mxu0 %v3119
        %v3314 = vpop.f32.mrb[0].mxu0
        %v3315 = vadd.f32 0.0, %v3314
        %v3316 = vpop.f32.mrb[0].mxu0
        %3317 = vmatprep.mubr.f32.mxu0 0.0
        %3318 = vmatmul.mubr.f32.gmra.mrb[0].mxu0 %v3122
        %v3319 = vpop.f32.mrb[0].mxu0
        %v3320 = vadd.f32 0.0, %v3319
        %v3321 = vpop.f32.mrb[0].mxu0
        %3322 = vmatprep.mubr.f32.mxu0 0.0
        %3323 = vmatmul.mubr.f32.gmra.mrb[0].mxu0 %v3125
        %v3324 = vpop.f32.mrb[0].mxu0
        %v3325 = vadd.f32 0.0, %v3324
        %v3326 = vpop.f32.mrb[0].mxu0
        %3327 = vmatprep.mubr.f32.mxu0 0.0
        %3328 = vmatmul.mubr.f32.gmra.mrb[0].mxu0 %v3128
        %v3329 = vpop.f32.mrb[0].mxu0
        %v3330 = vadd.f32 0.0, %v3329
        %v3331 = vpop.f32.mrb[0].mxu0
        %3332 = vmatprep.mubr.f32.mxu0 0.0
        %3333 = vmatmul.mubr.f32.gmra.mrb[0].mxu0 %v3131
        %v3334 = vpop.f32.mrb[0].mxu0
        %v3335 = vadd.f32 0.0, %v3334
        %v3336 = vpop.f32.mrb[0].mxu0
        %3337 = vmatprep.mubr.f32.mxu0 0.0
        %3338 = vmatmul.mubr.f32.gmra.mrb[0].mxu0 %v3134
        %v3339 = vpop.f32.mrb[0].mxu0
        %v3340 = vadd.f32 0.0, %v3339
        %v3341 = vpop.f32.mrb[0].mxu0
        %3342 = vmatprep.mubr.f32.mxu0 0.0
        %3343 = vmatmul.mubr.f32.gmra.mrb[0].mxu0 %v3137
        %v3344 = vpop.f32.mrb[0].mxu0
        %v3345 = vadd.f32 0.0, %v3344
        %v3346 = vpop.f32.mrb[0].mxu0
        %3347 = vmatprep.mubr.f32.mxu0 0.0
        %3348 = vmatmul.mubr.f32.gmra.mrb[0].mxu0 %v3140
        %v3349 = vpop.f32.mrb[0].mxu0
        %v3350 = vadd.f32 0.0, %v3349
        %v3351 = vpop.f32.mrb[0].mxu0
        %3352 = vmatprep.mubr.f32.mxu0 0.0
        %3353 = vmatmul.mubr.f32.gmra.mrb[0].mxu0 %v3143
        %v3354 = vpop.f32.mrb[0].mxu0
        %v3355 = vadd.f32 0.0, %v3354
        %v3356 = vpop.f32.mrb[0].mxu0
        %3357 = vmatprep.mubr.f32.mxu0 0.0
        %3358 = vmatmul.mubr.f32.gmra.mrb[0].mxu0 %v3146
        %v3359 = vpop.f32.mrb[0].mxu0
        %v3360 = vadd.f32 0.0, %v3359
        %v3361 = vpop.f32.mrb[0].mxu0
        %3362 = vdwg.mxu0
        %v3363 = vadd.f32 %v2907, %v3215
        %v3364 = vadd.f32 %v2912, %v3220
        %v3365 = vadd.f32 %v2917, %v3225
        %v3366 = vadd.f32 %v2922, %v3230
        %v3367 = vadd.f32 %v2927, %v3235
        %v3368 = vadd.f32 %v2932, %v3240
        %v3369 = vadd.f32 %v2937, %v3245
        %v3370 = vadd.f32 %v2942, %v3250
        %v3371 = vadd.f32 %v2947, %v3255
        %v3372 = vadd.f32 %v2952, %v3260
        %v3373 = vadd.f32 %v2957, %v3265
        %v3374 = vadd.f32 %v2962, %v3270
        %v3375 = vadd.f32 %v2967, %v3275
        %v3376 = vadd.f32 %v2972, %v3280
        %v3377 = vadd.f32 %v2977, %v3285
        %v3378 = vadd.f32 %v2982, %v3290
        %v3379 = vadd.f32 %v2987, %v3295
        %v3380 = vadd.f32 %v2992, %v3300
        %v3381 = vadd.f32 %v2997, %v3305
        %v3382 = vadd.f32 %v3002, %v3310
        %v3383 = vadd.f32 %v3007, %v3315
        %v3384 = vadd.f32 %v3012, %v3320
        %v3385 = vadd.f32 %v3017, %v3325
        %v3386 = vadd.f32 %v3022, %v3330
        %v3387 = vadd.f32 %v3027, %v3335
        %v3388 = vadd.f32 %v3032, %v3340
        %v3389 = vadd.f32 %v3037, %v3345
        %v3390 = vadd.f32 %v3042, %v3350
        %v3391 = vadd.f32 %v3047, %v3355
        %v3392 = vadd.f32 %v3052, %v3360
        %v3393 = vld [vmem:[#allocation2 + $0x10] sm:$0xff]
        %v3394 = vld [vmem:[#allocation2 + $0x18] sm:$0xff]
        %v3395 = vld [vmem:[#allocation2 + $0x20] sm:$0xff]
        %v3396 = vld [vmem:[#allocation2 + $0x28] sm:$0xff]
        %v3397 = vld [vmem:[#allocation2 + $0x30] sm:$0xff]
        %v3398 = vld [vmem:[#allocation2 + $0x38] sm:$0xff]
        %v3399 = vld [vmem:[#allocation2 + $0x40] sm:$0xff]
        %v3400 = vld [vmem:[#allocation2 + $0x48] sm:$0xff]
        %v3401 = vld [vmem:[#allocation2 + $0x50] sm:$0xff]
        %v3402 = vld [vmem:[#allocation2 + $0x58] sm:$0xff]
        %v3403 = vld [vmem:[#allocation2 + $0x60] sm:$0xff]
        %v3404 = vld [vmem:[#allocation2 + $0x68] sm:$0xff]
        %v3405 = vld [vmem:[#allocation2 + $0x70] sm:$0xff]
        %v3406 = vld [vmem:[#allocation2 + $0x78] sm:$0xff]
        %v3407 = vld [vmem:[#allocation2 + $0x80] sm:$0xff]
        %v3408 = vld [vmem:[#allocation2 + $0x88] sm:$0xff]
        %v3409 = vld [vmem:[#allocation2 + $0x90] sm:$0xff]
        %v3410 = vld [vmem:[#allocation2 + $0x98] sm:$0xff]
        %v3411 = vld [vmem:[#allocation2 + $0xa0] sm:$0xff]
        %v3412 = vld [vmem:[#allocation2 + $0xa8] sm:$0xff]
        %v3413 = vld [vmem:[#allocation2 + $0xb0] sm:$0xff]
        %v3414 = vld [vmem:[#allocation2 + $0xb8] sm:$0xff]
        %v3415 = vld [vmem:[#allocation2 + $0xc0] sm:$0xff]
        %v3416 = vld [vmem:[#allocation2 + $0xc8] sm:$0xff]
        %v3417 = vld [vmem:[#allocation2 + $0xd0] sm:$0xff]
        %v3418 = vld [vmem:[#allocation2 + $0xd8] sm:$0xff]
        %v3419 = vld [vmem:[#allocation2 + $0xe0] sm:$0xff]
        %v3420 = vld [vmem:[#allocation2 + $0xe8] sm:$0xff]
        %v3421 = vld [vmem:[#allocation2 + $0xf0] sm:$0xff]
        %v3422 = vld [vmem:[#allocation2 + $0xf8] sm:$0xff]
        %v3423 = vadd.f32 %v3393, %v3363
        %v3424 = vadd.f32 %v3394, %v3364
        %v3425 = vadd.f32 %v3395, %v3365
        %v3426 = vadd.f32 %v3396, %v3366
        %v3427 = vadd.f32 %v3397, %v3367
        %v3428 = vadd.f32 %v3398, %v3368
        %v3429 = vadd.f32 %v3399, %v3369
        %v3430 = vadd.f32 %v3400, %v3370
        %v3431 = vadd.f32 %v3401, %v3371
        %v3432 = vadd.f32 %v3402, %v3372
        %v3433 = vadd.f32 %v3403, %v3373
        %v3434 = vadd.f32 %v3404, %v3374
        %v3435 = vadd.f32 %v3405, %v3375
        %v3436 = vadd.f32 %v3406, %v3376
        %v3437 = vadd.f32 %v3407, %v3377
        %v3438 = vadd.f32 %v3408, %v3378
        %v3439 = vadd.f32 %v3409, %v3379
        %v3440 = vadd.f32 %v3410, %v3380
        %v3441 = vadd.f32 %v3411, %v3381
        %v3442 = vadd.f32 %v3412, %v3382
        %v3443 = vadd.f32 %v3413, %v3383
        %v3444 = vadd.f32 %v3414, %v3384
        %v3445 = vadd.f32 %v3415, %v3385
        %v3446 = vadd.f32 %v3416, %v3386
        %v3447 = vadd.f32 %v3417, %v3387
        %v3448 = vadd.f32 %v3418, %v3388
        %v3449 = vadd.f32 %v3419, %v3389
        %v3450 = vadd.f32 %v3420, %v3390
        %v3451 = vadd.f32 %v3421, %v3391
        %v3452 = vadd.f32 %v3422, %v3392
        %3453 = vst [vmem:[#allocation2 + $0x10] sm:$0xff] %v3423
        %3454 = vst [vmem:[#allocation2 + $0x18] sm:$0xff] %v3424
        %3455 = vst [vmem:[#allocation2 + $0x20] sm:$0xff] %v3425
        %3456 = vst [vmem:[#allocation2 + $0x28] sm:$0xff] %v3426
        %3457 = vst [vmem:[#allocation2 + $0x30] sm:$0xff] %v3427
        %3458 = vst [vmem:[#allocation2 + $0x38] sm:$0xff] %v3428
        %3459 = vst [vmem:[#allocation2 + $0x40] sm:$0xff] %v3429
        %3460 = vst [vmem:[#allocation2 + $0x48] sm:$0xff] %v3430
        %3461 = vst [vmem:[#allocation2 + $0x50] sm:$0xff] %v3431
        %3462 = vst [vmem:[#allocation2 + $0x58] sm:$0xff] %v3432
        %3463 = vst [vmem:[#allocation2 + $0x60] sm:$0xff] %v3433
        %3464 = vst [vmem:[#allocation2 + $0x68] sm:$0xff] %v3434
        %3465 = vst [vmem:[#allocation2 + $0x70] sm:$0xff] %v3435
        %3466 = vst [vmem:[#allocation2 + $0x78] sm:$0xff] %v3436
        %3467 = vst [vmem:[#allocation2 + $0x80] sm:$0xff] %v3437
        %3468 = vst [vmem:[#allocation2 + $0x88] sm:$0xff] %v3438
        %3469 = vst [vmem:[#allocation2 + $0x90] sm:$0xff] %v3439
        %3470 = vst [vmem:[#allocation2 + $0x98] sm:$0xff] %v3440
        %3471 = vst [vmem:[#allocation2 + $0xa0] sm:$0xff] %v3441
        %3472 = vst [vmem:[#allocation2 + $0xa8] sm:$0xff] %v3442
        %3473 = vst [vmem:[#allocation2 + $0xb0] sm:$0xff] %v3443
        %3474 = vst [vmem:[#allocation2 + $0xb8] sm:$0xff] %v3444
        %3475 = vst [vmem:[#allocation2 + $0xc0] sm:$0xff] %v3445
        %3476 = vst [vmem:[#allocation2 + $0xc8] sm:$0xff] %v3446
        %3477 = vst [vmem:[#allocation2 + $0xd0] sm:$0xff] %v3447
        %3478 = vst [vmem:[#allocation2 + $0xd8] sm:$0xff] %v3448
        %3479 = vst [vmem:[#allocation2 + $0xe0] sm:$0xff] %v3449
        %3480 = vst [vmem:[#allocation2 + $0xe8] sm:$0xff] %v3450
        %3481 = vst [vmem:[#allocation2 + $0xf0] sm:$0xff] %v3451
        %3482 = vst [vmem:[#allocation2 + $0xf8] sm:$0xff] %v3452
        %s3483 = scalar_lea.vmem %s220, 16 [#allocation3]
        %v3484 = vld [vmem:[%s3483] sm:$0xff]
        %v3485 = vld [vmem:[%s3483 + $0x8] sm:$0xff]
        %v3486 = vld [vmem:[%s3483 + $0x10] sm:$0xff]
        %v3487 = vld [vmem:[%s3483 + $0x18] sm:$0xff]
        %v3488 = vld [vmem:[%s3483 + $0x20] sm:$0xff]
        %v3489 = vld [vmem:[%s3483 + $0x28] sm:$0xff]
        %v3490 = vld [vmem:[%s3483 + $0x30] sm:$0xff]
        %v3491 = vld [vmem:[%s3483 + $0x38] sm:$0xff]
        %v3492 = vld [vmem:[%s3483 + $0x40] sm:$0xff]
        %v3493 = vld [vmem:[%s3483 + $0x48] sm:$0xff]
        %v3494 = vld [vmem:[%s3483 + $0x50] sm:$0xff]
        %v3495 = vld [vmem:[%s3483 + $0x58] sm:$0xff]
        %v3496 = vld [vmem:[%s3483 + $0x60] sm:$0xff]
        %v3497 = vld [vmem:[%s3483 + $0x68] sm:$0xff]
        %v3498 = vld [vmem:[%s3483 + $0x70] sm:$0xff]
        %v3499 = vld [vmem:[%s3483 + $0x78] sm:$0xff]
        %v3500 = vld [vmem:[%s3483 + $0x80] sm:$0xff]
        %v3501 = vld [vmem:[%s3483 + $0x88] sm:$0xff]
        %v3502 = vld [vmem:[%s3483 + $0x90] sm:$0xff]
        %v3503 = vld [vmem:[%s3483 + $0x98] sm:$0xff]
        %v3504 = vld [vmem:[%s3483 + $0xa0] sm:$0xff]
        %v3505 = vld [vmem:[%s3483 + $0xa8] sm:$0xff]
        %v3506 = vld [vmem:[%s3483 + $0xb0] sm:$0xff]
        %v3507 = vld [vmem:[%s3483 + $0xb8] sm:$0xff]
        %v3508 = vld [vmem:[%s3483 + $0xc0] sm:$0xff]
        %v3509 = vld [vmem:[%s3483 + $0xc8] sm:$0xff]
        %v3510 = vld [vmem:[%s3483 + $0xd0] sm:$0xff]
        %v3511 = vld [vmem:[%s3483 + $0xd8] sm:$0xff]
        %v3512 = vld [vmem:[%s3483 + $0xe0] sm:$0xff]
        %v3513 = vld [vmem:[%s3483 + $0xe8] sm:$0xff]
        %v3514 = vrot.slane %v3484, 7
        %v3515 = vrot.slane %v3485, 7
        %v3516 = vrot.slane %v3486, 7
        %v3517 = vrot.slane %v3487, 7
        %v3518 = vrot.slane %v3488, 7
        %v3519 = vrot.slane %v3489, 7
        %v3520 = vrot.slane %v3490, 7
        %v3521 = vrot.slane %v3491, 7
        %v3522 = vrot.slane %v3492, 7
        %v3523 = vrot.slane %v3493, 7
        %v3524 = vrot.slane %v3494, 7
        %v3525 = vrot.slane %v3495, 7
        %v3526 = vrot.slane %v3496, 7
        %v3527 = vrot.slane %v3497, 7
        %v3528 = vrot.slane %v3498, 7
        %v3529 = vrot.slane %v3499, 7
        %v3530 = vrot.slane %v3500, 7
        %v3531 = vrot.slane %v3501, 7
        %v3532 = vrot.slane %v3502, 7
        %v3533 = vrot.slane %v3503, 7
        %v3534 = vrot.slane %v3504, 7
        %v3535 = vrot.slane %v3505, 7
        %v3536 = vrot.slane %v3506, 7
        %v3537 = vrot.slane %v3507, 7
        %v3538 = vrot.slane %v3508, 7
        %v3539 = vrot.slane %v3509, 7
        %v3540 = vrot.slane %v3510, 7
        %v3541 = vrot.slane %v3511, 7
        %v3542 = vrot.slane %v3512, 7
        %v3543 = vrot.slane %v3513, 7
        %v3544 = vsel %vm799, %v3542, %v3543
        %v3545 = vsel %vm799, %v3541, %v3542
        %v3546 = vsel %vm799, %v3540, %v3541
        %v3547 = vsel %vm799, %v3539, %v3540
        %v3548 = vsel %vm799, %v3538, %v3539
        %v3549 = vsel %vm799, %v3537, %v3538
        %v3550 = vsel %vm799, %v3536, %v3537
        %v3551 = vsel %vm799, %v3535, %v3536
        %v3552 = vsel %vm799, %v3534, %v3535
        %v3553 = vsel %vm799, %v3533, %v3534
        %v3554 = vsel %vm799, %v3532, %v3533
        %v3555 = vsel %vm799, %v3531, %v3532
        %v3556 = vsel %vm799, %v3530, %v3531
        %v3557 = vsel %vm799, %v3529, %v3530
        %v3558 = vsel %vm799, %v3528, %v3529
        %v3559 = vsel %vm799, %v3527, %v3528
        %v3560 = vsel %vm799, %v3526, %v3527
        %v3561 = vsel %vm799, %v3525, %v3526
        %v3562 = vsel %vm799, %v3524, %v3525
        %v3563 = vsel %vm799, %v3523, %v3524
        %v3564 = vsel %vm799, %v3522, %v3523
        %v3565 = vsel %vm799, %v3521, %v3522
        %v3566 = vsel %vm799, %v3520, %v3521
        %v3567 = vsel %vm799, %v3519, %v3520
        %v3568 = vsel %vm799, %v3518, %v3519
        %v3569 = vsel %vm799, %v3517, %v3518
        %v3570 = vsel %vm799, %v3516, %v3517
        %v3571 = vsel %vm799, %v3515, %v3516
        %v3572 = vsel %vm799, %v3514, %v3515
        %v3573 = vsel %vm799, %v3543, %v3514
        %v3574 = vsel %vm864, %v3573, 0.0
        %v3575 = vsel %vm865, %v3572, 0.0
        %v3576 = vsel %vm866, %v3571, 0.0
        %v3577 = vsel %vm867, %v3570, 0.0
        %v3578 = vsel %vm868, %v3569, 0.0
        %v3579 = vsel %vm869, %v3568, 0.0
        %v3580 = vsel %vm870, %v3567, 0.0
        %v3581 = vsel %vm871, %v3566, 0.0
        %v3582 = vsel %vm872, %v3565, 0.0
        %v3583 = vsel %vm873, %v3564, 0.0
        %v3584 = vsel %vm874, %v3563, 0.0
        %v3585 = vsel %vm875, %v3562, 0.0
        %v3586 = vsel %vm876, %v3561, 0.0
        %v3587 = vsel %vm877, %v3560, 0.0
        %v3588 = vsel %vm878, %v3559, 0.0
        %v3589 = vsel %vm879, %v3558, 0.0
        %v3590 = vsel %vm880, %v3557, 0.0
        %v3591 = vsel %vm881, %v3556, 0.0
        %v3592 = vsel %vm882, %v3555, 0.0
        %v3593 = vsel %vm883, %v3554, 0.0
        %v3594 = vsel %vm884, %v3553, 0.0
        %v3595 = vsel %vm885, %v3552, 0.0
        %v3596 = vsel %vm886, %v3551, 0.0
        %v3597 = vsel %vm887, %v3550, 0.0
        %v3598 = vsel %vm888, %v3549, 0.0
        %v3599 = vsel %vm889, %v3548, 0.0
        %v3600 = vsel %vm890, %v3547, 0.0
        %v3601 = vsel %vm891, %v3546, 0.0
        %v3602 = vsel %vm892, %v3545, 0.0
        %v3603 = vsel %vm893, %v3544, 0.0
        %v3604 = vrot.slane %v3484, 1
        %v3605 = vrot.slane %v3485, 1
        %v3606 = vrot.slane %v3486, 1
        %v3607 = vrot.slane %v3487, 1
        %v3608 = vrot.slane %v3488, 1
        %v3609 = vrot.slane %v3489, 1
        %v3610 = vrot.slane %v3490, 1
        %v3611 = vrot.slane %v3491, 1
        %v3612 = vrot.slane %v3492, 1
        %v3613 = vrot.slane %v3493, 1
        %v3614 = vrot.slane %v3494, 1
        %v3615 = vrot.slane %v3495, 1
        %v3616 = vrot.slane %v3496, 1
        %v3617 = vrot.slane %v3497, 1
        %v3618 = vrot.slane %v3498, 1
        %v3619 = vrot.slane %v3499, 1
        %v3620 = vrot.slane %v3500, 1
        %v3621 = vrot.slane %v3501, 1
        %v3622 = vrot.slane %v3502, 1
        %v3623 = vrot.slane %v3503, 1
        %v3624 = vrot.slane %v3504, 1
        %v3625 = vrot.slane %v3505, 1
        %v3626 = vrot.slane %v3506, 1
        %v3627 = vrot.slane %v3507, 1
        %v3628 = vrot.slane %v3508, 1
        %v3629 = vrot.slane %v3509, 1
        %v3630 = vrot.slane %v3510, 1
        %v3631 = vrot.slane %v3511, 1
        %v3632 = vrot.slane %v3512, 1
        %v3633 = vrot.slane %v3513, 1
        %v3634 = vsel %vm960, %v3632, %v3633
        %v3635 = vsel %vm960, %v3631, %v3632
        %v3636 = vsel %vm960, %v3630, %v3631
        %v3637 = vsel %vm960, %v3629, %v3630
        %v3638 = vsel %vm960, %v3628, %v3629
        %v3639 = vsel %vm960, %v3627, %v3628
        %v3640 = vsel %vm960, %v3626, %v3627
        %v3641 = vsel %vm960, %v3625, %v3626
        %v3642 = vsel %vm960, %v3624, %v3625
        %v3643 = vsel %vm960, %v3623, %v3624
        %v3644 = vsel %vm960, %v3622, %v3623
        %v3645 = vsel %vm960, %v3621, %v3622
        %v3646 = vsel %vm960, %v3620, %v3621
        %v3647 = vsel %vm960, %v3619, %v3620
        %v3648 = vsel %vm960, %v3618, %v3619
        %v3649 = vsel %vm960, %v3617, %v3618
        %v3650 = vsel %vm960, %v3616, %v3617
        %v3651 = vsel %vm960, %v3615, %v3616
        %v3652 = vsel %vm960, %v3614, %v3615
        %v3653 = vsel %vm960, %v3613, %v3614
        %v3654 = vsel %vm960, %v3612, %v3613
        %v3655 = vsel %vm960, %v3611, %v3612
        %v3656 = vsel %vm960, %v3610, %v3611
        %v3657 = vsel %vm960, %v3609, %v3610
        %v3658 = vsel %vm960, %v3608, %v3609
        %v3659 = vsel %vm960, %v3607, %v3608
        %v3660 = vsel %vm960, %v3606, %v3607
        %v3661 = vsel %vm960, %v3605, %v3606
        %v3662 = vsel %vm960, %v3604, %v3605
        %v3663 = vsel %vm960, %v3633, %v3604
        %v3664 = vsel %vm1025, %v3662, 0.0
        %v3665 = vsel %vm1026, %v3661, 0.0
        %v3666 = vsel %vm1027, %v3660, 0.0
        %v3667 = vsel %vm1028, %v3659, 0.0
        %v3668 = vsel %vm1029, %v3658, 0.0
        %v3669 = vsel %vm1030, %v3657, 0.0
        %v3670 = vsel %vm1031, %v3656, 0.0
        %v3671 = vsel %vm1032, %v3655, 0.0
        %v3672 = vsel %vm1033, %v3654, 0.0
        %v3673 = vsel %vm1034, %v3653, 0.0
        %v3674 = vsel %vm1035, %v3652, 0.0
        %v3675 = vsel %vm1036, %v3651, 0.0
        %v3676 = vsel %vm1037, %v3650, 0.0
        %v3677 = vsel %vm1038, %v3649, 0.0
        %v3678 = vsel %vm1039, %v3648, 0.0
        %v3679 = vsel %vm1040, %v3647, 0.0
        %v3680 = vsel %vm1041, %v3646, 0.0
        %v3681 = vsel %vm1042, %v3645, 0.0
        %v3682 = vsel %vm1043, %v3644, 0.0
        %v3683 = vsel %vm1044, %v3643, 0.0
        %v3684 = vsel %vm1045, %v3642, 0.0
        %v3685 = vsel %vm1046, %v3641, 0.0
        %v3686 = vsel %vm1047, %v3640, 0.0
        %v3687 = vsel %vm1048, %v3639, 0.0
        %v3688 = vsel %vm1049, %v3638, 0.0
        %v3689 = vsel %vm1050, %v3637, 0.0
        %v3690 = vsel %vm1051, %v3636, 0.0
        %v3691 = vsel %vm1052, %v3635, 0.0
        %v3692 = vsel %vm1053, %v3634, 0.0
        %v3693 = vsel %vm1054, %v3663, 0.0
        %s3694 = scalar_lea.vmem [#allocation6], 96
        %v3695 = vld [vmem:[%s3694] sm:$0xff]
        %v3696 = vld [vmem:[%s3694 + $0x8] sm:$0xff]
        %s3697 = scalar_lea.vmem [#allocation6], 112
        %v3698 = vld [vmem:[%s3697] sm:$0xff]
        %v3699 = vld [vmem:[%s3697 + $0x8] sm:$0xff]
        %v3701 = vsel %vm1095, %v3484, 0
        %v3704 = vsel %vm1095, %v3485, 0
        %v3707 = vsel %vm1095, %v3486, 0
        %v3710 = vsel %vm1095, %v3487, 0
        %v3713 = vsel %vm1095, %v3488, 0
        %v3716 = vsel %vm1095, %v3489, 0
        %v3719 = vsel %vm1095, %v3490, 0
        %v3722 = vsel %vm1095, %v3491, 0
        %v3725 = vsel %vm1095, %v3492, 0
        %v3728 = vsel %vm1095, %v3493, 0
        %v3731 = vsel %vm1095, %v3494, 0
        %v3734 = vsel %vm1095, %v3495, 0
        %v3737 = vsel %vm1095, %v3496, 0
        %v3740 = vsel %vm1095, %v3497, 0
        %v3743 = vsel %vm1095, %v3498, 0
        %v3746 = vsel %vm1095, %v3499, 0
        %v3749 = vsel %vm1095, %v3500, 0
        %v3752 = vsel %vm1095, %v3501, 0
        %v3755 = vsel %vm1095, %v3502, 0
        %v3758 = vsel %vm1095, %v3503, 0
        %v3761 = vsel %vm1095, %v3504, 0
        %v3764 = vsel %vm1095, %v3505, 0
        %v3767 = vsel %vm1095, %v3506, 0
        %v3770 = vsel %vm1095, %v3507, 0
        %v3773 = vsel %vm1095, %v3508, 0
        %v3776 = vsel %vm1095, %v3509, 0
        %v3779 = vsel %vm1095, %v3510, 0
        %v3782 = vsel %vm1095, %v3511, 0
        %v3785 = vsel %vm1095, %v3512, 0
        %v3788 = vsel %vm1095, %v3513, 0
        %3790 = vmatprep.subr.mxu0 0.0
        %3791 = vmatpush1.msra.mxu0 %v3698
        %3792 = vmatprep.subr.mxu0 0.0
        %3793 = vmatpush1.msra.mxu0 %v3699
        %3794 = vmatprep.subr.mxu0 0.0
        %3795 = vmatpush1.msra.mxu0 0.0
        %3796 = vmatprep.subr.mxu0 0.0
        %3797 = vmatpush1.msra.mxu0 0.0
        %3798 = vmatprep.subr.mxu0 0.0
        %3799 = vmatpush1.msra.mxu0 0.0
        %3800 = vmatprep.subr.mxu0 0.0
        %3801 = vmatpush1.msra.mxu0 0.0
        %3802 = vmatprep.subr.mxu0 0.0
        %3803 = vmatpush1.msra.mxu0 0.0
        %3804 = vmatprep.subr.mxu0 0.0
        %3805 = vmatpush1.msra.mxu0 0.0
        %3806 = vmatprep.subr.mxu0 0.0
        %3807 = vmatpush1.msra.mxu0 0.0
        %3808 = vmatprep.subr.mxu0 0.0
        %3809 = vmatpush1.msra.mxu0 0.0
        %3810 = vmatprep.subr.mxu0 0.0
        %3811 = vmatpush1.msra.mxu0 0.0
        %3812 = vmatprep.subr.mxu0 0.0
        %3813 = vmatpush1.msra.mxu0 0.0
        %3814 = vmatprep.subr.mxu0 0.0
        %3815 = vmatpush1.msra.mxu0 0.0
        %3816 = vmatprep.subr.mxu0 0.0
        %3817 = vmatpush1.msra.mxu0 0.0
        %3818 = vmatprep.subr.mxu0 0.0
        %3819 = vmatpush1.msra.mxu0 0.0
        %3820 = vmatprep.subr.mxu0 0.0
        %3821 = vmatpush1.msra.mxu0 0.0
        %3822 = vmatprep.subr.mxu0 0.0
        %3823 = vmatpush1.msra.mxu0 0.0
        %3824 = vmatprep.subr.mxu0 0.0
        %3825 = vmatpush1.msra.mxu0 0.0
        %3826 = vmatprep.subr.mxu0 0.0
        %3827 = vmatpush1.msra.mxu0 0.0
        %3828 = vmatprep.subr.mxu0 0.0
        %3829 = vmatpush1.msra.mxu0 0.0
        %3830 = vmatprep.subr.mxu0 0.0
        %3831 = vmatpush1.msra.mxu0 0.0
        %3832 = vmatprep.subr.mxu0 0.0
        %3833 = vmatpush1.msra.mxu0 0.0
        %3834 = vmatprep.subr.mxu0 0.0
        %3835 = vmatpush1.msra.mxu0 0.0
        %3836 = vmatprep.subr.mxu0 0.0
        %3837 = vmatpush1.msra.mxu0 0.0
        %3838 = vmatprep.subr.mxu0 0.0
        %3839 = vmatpush1.msra.mxu0 0.0
        %3840 = vmatprep.subr.mxu0 0.0
        %3841 = vmatpush1.msra.mxu0 0.0
        %3842 = vmatprep.subr.mxu0 0.0
        %3843 = vmatpush1.msra.mxu0 0.0
        %3844 = vmatprep.subr.mxu0 0.0
        %3845 = vmatpush1.msra.mxu0 0.0
        %3846 = vmatprep.subr.mxu0 0.0
        %3847 = vmatpush1.msra.mxu0 0.0
        %3848 = vmatprep.subr.mxu0 0.0
        %3849 = vmatpush1.msra.mxu0 0.0
        %3850 = vmatprep.subr.mxu0 0.0
        %3851 = vmatpush1.msra.mxu0 0.0
        %3852 = vmatprep.subr.mxu0 0.0
        %3853 = vmatpush1.msra.mxu0 0.0
        %3854 = vmatprep.mubr.f32.mxu0 0.0
        %3855 = vmatmul.mubr.f32.gmra.mrb[0].mxu0 %v3701
        %v3856 = vpop.f32.mrb[0].mxu0
        %v3857 = vadd.f32 0.0, %v3856
        %v3858 = vpop.f32.mrb[0].mxu0
        %3859 = vmatprep.mubr.f32.mxu0 0.0
        %3860 = vmatmul.mubr.f32.gmra.mrb[0].mxu0 %v3704
        %v3861 = vpop.f32.mrb[0].mxu0
        %v3862 = vadd.f32 0.0, %v3861
        %v3863 = vpop.f32.mrb[0].mxu0
        %3864 = vmatprep.mubr.f32.mxu0 0.0
        %3865 = vmatmul.mubr.f32.gmra.mrb[0].mxu0 %v3707
        %v3866 = vpop.f32.mrb[0].mxu0
        %v3867 = vadd.f32 0.0, %v3866
        %v3868 = vpop.f32.mrb[0].mxu0
        %3869 = vmatprep.mubr.f32.mxu0 0.0
        %3870 = vmatmul.mubr.f32.gmra.mrb[0].mxu0 %v3710
        %v3871 = vpop.f32.mrb[0].mxu0
        %v3872 = vadd.f32 0.0, %v3871
        %v3873 = vpop.f32.mrb[0].mxu0
        %3874 = vmatprep.mubr.f32.mxu0 0.0
        %3875 = vmatmul.mubr.f32.gmra.mrb[0].mxu0 %v3713
        %v3876 = vpop.f32.mrb[0].mxu0
        %v3877 = vadd.f32 0.0, %v3876
        %v3878 = vpop.f32.mrb[0].mxu0
        %3879 = vmatprep.mubr.f32.mxu0 0.0
        %3880 = vmatmul.mubr.f32.gmra.mrb[0].mxu0 %v3716
        %v3881 = vpop.f32.mrb[0].mxu0
        %v3882 = vadd.f32 0.0, %v3881
        %v3883 = vpop.f32.mrb[0].mxu0
        %3884 = vmatprep.mubr.f32.mxu0 0.0
        %3885 = vmatmul.mubr.f32.gmra.mrb[0].mxu0 %v3719
        %v3886 = vpop.f32.mrb[0].mxu0
        %v3887 = vadd.f32 0.0, %v3886
        %v3888 = vpop.f32.mrb[0].mxu0
        %3889 = vmatprep.mubr.f32.mxu0 0.0
        %3890 = vmatmul.mubr.f32.gmra.mrb[0].mxu0 %v3722
        %v3891 = vpop.f32.mrb[0].mxu0
        %v3892 = vadd.f32 0.0, %v3891
        %v3893 = vpop.f32.mrb[0].mxu0
        %3894 = vmatprep.mubr.f32.mxu0 0.0
        %3895 = vmatmul.mubr.f32.gmra.mrb[0].mxu0 %v3725
        %v3896 = vpop.f32.mrb[0].mxu0
        %v3897 = vadd.f32 0.0, %v3896
        %v3898 = vpop.f32.mrb[0].mxu0
        %3899 = vmatprep.mubr.f32.mxu0 0.0
        %3900 = vmatmul.mubr.f32.gmra.mrb[0].mxu0 %v3728
        %v3901 = vpop.f32.mrb[0].mxu0
        %v3902 = vadd.f32 0.0, %v3901
        %v3903 = vpop.f32.mrb[0].mxu0
        %3904 = vmatprep.mubr.f32.mxu0 0.0
        %3905 = vmatmul.mubr.f32.gmra.mrb[0].mxu0 %v3731
        %v3906 = vpop.f32.mrb[0].mxu0
        %v3907 = vadd.f32 0.0, %v3906
        %v3908 = vpop.f32.mrb[0].mxu0
        %3909 = vmatprep.mubr.f32.mxu0 0.0
        %3910 = vmatmul.mubr.f32.gmra.mrb[0].mxu0 %v3734
        %v3911 = vpop.f32.mrb[0].mxu0
        %v3912 = vadd.f32 0.0, %v3911
        %v3913 = vpop.f32.mrb[0].mxu0
        %3914 = vmatprep.mubr.f32.mxu0 0.0
        %3915 = vmatmul.mubr.f32.gmra.mrb[0].mxu0 %v3737
        %v3916 = vpop.f32.mrb[0].mxu0
        %v3917 = vadd.f32 0.0, %v3916
        %v3918 = vpop.f32.mrb[0].mxu0
        %3919 = vmatprep.mubr.f32.mxu0 0.0
        %3920 = vmatmul.mubr.f32.gmra.mrb[0].mxu0 %v3740
        %v3921 = vpop.f32.mrb[0].mxu0
        %v3922 = vadd.f32 0.0, %v3921
        %v3923 = vpop.f32.mrb[0].mxu0
        %3924 = vmatprep.mubr.f32.mxu0 0.0
        %3925 = vmatmul.mubr.f32.gmra.mrb[0].mxu0 %v3743
        %v3926 = vpop.f32.mrb[0].mxu0
        %v3927 = vadd.f32 0.0, %v3926
        %v3928 = vpop.f32.mrb[0].mxu0
        %3929 = vmatprep.mubr.f32.mxu0 0.0
        %3930 = vmatmul.mubr.f32.gmra.mrb[0].mxu0 %v3746
        %v3931 = vpop.f32.mrb[0].mxu0
        %v3932 = vadd.f32 0.0, %v3931
        %v3933 = vpop.f32.mrb[0].mxu0
        %3934 = vmatprep.mubr.f32.mxu0 0.0
        %3935 = vmatmul.mubr.f32.gmra.mrb[0].mxu0 %v3749
        %v3936 = vpop.f32.mrb[0].mxu0
        %v3937 = vadd.f32 0.0, %v3936
        %v3938 = vpop.f32.mrb[0].mxu0
        %3939 = vmatprep.mubr.f32.mxu0 0.0
        %3940 = vmatmul.mubr.f32.gmra.mrb[0].mxu0 %v3752
        %v3941 = vpop.f32.mrb[0].mxu0
        %v3942 = vadd.f32 0.0, %v3941
        %v3943 = vpop.f32.mrb[0].mxu0
        %3944 = vmatprep.mubr.f32.mxu0 0.0
        %3945 = vmatmul.mubr.f32.gmra.mrb[0].mxu0 %v3755
        %v3946 = vpop.f32.mrb[0].mxu0
        %v3947 = vadd.f32 0.0, %v3946
        %v3948 = vpop.f32.mrb[0].mxu0
        %3949 = vmatprep.mubr.f32.mxu0 0.0
        %3950 = vmatmul.mubr.f32.gmra.mrb[0].mxu0 %v3758
        %v3951 = vpop.f32.mrb[0].mxu0
        %v3952 = vadd.f32 0.0, %v3951
        %v3953 = vpop.f32.mrb[0].mxu0
        %3954 = vmatprep.mubr.f32.mxu0 0.0
        %3955 = vmatmul.mubr.f32.gmra.mrb[0].mxu0 %v3761
        %v3956 = vpop.f32.mrb[0].mxu0
        %v3957 = vadd.f32 0.0, %v3956
        %v3958 = vpop.f32.mrb[0].mxu0
        %3959 = vmatprep.mubr.f32.mxu0 0.0
        %3960 = vmatmul.mubr.f32.gmra.mrb[0].mxu0 %v3764
        %v3961 = vpop.f32.mrb[0].mxu0
        %v3962 = vadd.f32 0.0, %v3961
        %v3963 = vpop.f32.mrb[0].mxu0
        %3964 = vmatprep.mubr.f32.mxu0 0.0
        %3965 = vmatmul.mubr.f32.gmra.mrb[0].mxu0 %v3767
        %v3966 = vpop.f32.mrb[0].mxu0
        %v3967 = vadd.f32 0.0, %v3966
        %v3968 = vpop.f32.mrb[0].mxu0
        %3969 = vmatprep.mubr.f32.mxu0 0.0
        %3970 = vmatmul.mubr.f32.gmra.mrb[0].mxu0 %v3770
        %v3971 = vpop.f32.mrb[0].mxu0
        %v3972 = vadd.f32 0.0, %v3971
        %v3973 = vpop.f32.mrb[0].mxu0
        %3974 = vmatprep.mubr.f32.mxu0 0.0
        %3975 = vmatmul.mubr.f32.gmra.mrb[0].mxu0 %v3773
        %v3976 = vpop.f32.mrb[0].mxu0
        %v3977 = vadd.f32 0.0, %v3976
        %v3978 = vpop.f32.mrb[0].mxu0
        %3979 = vmatprep.mubr.f32.mxu0 0.0
        %3980 = vmatmul.mubr.f32.gmra.mrb[0].mxu0 %v3776
        %v3981 = vpop.f32.mrb[0].mxu0
        %v3982 = vadd.f32 0.0, %v3981
        %v3983 = vpop.f32.mrb[0].mxu0
        %3984 = vmatprep.mubr.f32.mxu0 0.0
        %3985 = vmatmul.mubr.f32.gmra.mrb[0].mxu0 %v3779
        %v3986 = vpop.f32.mrb[0].mxu0
        %v3987 = vadd.f32 0.0, %v3986
        %v3988 = vpop.f32.mrb[0].mxu0
        %3989 = vmatprep.mubr.f32.mxu0 0.0
        %3990 = vmatmul.mubr.f32.gmra.mrb[0].mxu0 %v3782
        %v3991 = vpop.f32.mrb[0].mxu0
        %v3992 = vadd.f32 0.0, %v3991
        %v3993 = vpop.f32.mrb[0].mxu0
        %3994 = vmatprep.mubr.f32.mxu0 0.0
        %3995 = vmatmul.mubr.f32.gmra.mrb[0].mxu0 %v3785
        %v3996 = vpop.f32.mrb[0].mxu0
        %v3997 = vadd.f32 0.0, %v3996
        %v3998 = vpop.f32.mrb[0].mxu0
        %3999 = vmatprep.mubr.f32.mxu0 0.0
        %4000 = vmatmul.mubr.f32.gmra.mrb[0].mxu0 %v3788
        %v4001 = vpop.f32.mrb[0].mxu0
        %v4002 = vadd.f32 0.0, %v4001
        %v4003 = vpop.f32.mrb[0].mxu0
        %4004 = vdwg.mxu0
        %v4006 = vsel %vm1095, %v3574, 0
        %v4009 = vsel %vm1095, %v3575, 0
        %v4012 = vsel %vm1095, %v3576, 0
        %v4015 = vsel %vm1095, %v3577, 0
        %v4018 = vsel %vm1095, %v3578, 0
        %v4021 = vsel %vm1095, %v3579, 0
        %v4024 = vsel %vm1095, %v3580, 0
        %v4027 = vsel %vm1095, %v3581, 0
        %v4030 = vsel %vm1095, %v3582, 0
        %v4033 = vsel %vm1095, %v3583, 0
        %v4036 = vsel %vm1095, %v3584, 0
        %v4039 = vsel %vm1095, %v3585, 0
        %v4042 = vsel %vm1095, %v3586, 0
        %v4045 = vsel %vm1095, %v3587, 0
        %v4048 = vsel %vm1095, %v3588, 0
        %v4051 = vsel %vm1095, %v3589, 0
        %v4054 = vsel %vm1095, %v3590, 0
        %v4057 = vsel %vm1095, %v3591, 0
        %v4060 = vsel %vm1095, %v3592, 0
        %v4063 = vsel %vm1095, %v3593, 0
        %v4066 = vsel %vm1095, %v3594, 0
        %v4069 = vsel %vm1095, %v3595, 0
        %v4072 = vsel %vm1095, %v3596, 0
        %v4075 = vsel %vm1095, %v3597, 0
        %v4078 = vsel %vm1095, %v3598, 0
        %v4081 = vsel %vm1095, %v3599, 0
        %v4084 = vsel %vm1095, %v3600, 0
        %v4087 = vsel %vm1095, %v3601, 0
        %v4090 = vsel %vm1095, %v3602, 0
        %v4093 = vsel %vm1095, %v3603, 0
        %4095 = vmatprep.subr.mxu0 0.0
        %4096 = vmatpush1.msra.mxu0 %v3695
        %4097 = vmatprep.subr.mxu0 0.0
        %4098 = vmatpush1.msra.mxu0 %v3696
        %4099 = vmatprep.subr.mxu0 0.0
        %4100 = vmatpush1.msra.mxu0 0.0
        %4101 = vmatprep.subr.mxu0 0.0
        %4102 = vmatpush1.msra.mxu0 0.0
        %4103 = vmatprep.subr.mxu0 0.0
        %4104 = vmatpush1.msra.mxu0 0.0
        %4105 = vmatprep.subr.mxu0 0.0
        %4106 = vmatpush1.msra.mxu0 0.0
        %4107 = vmatprep.subr.mxu0 0.0
        %4108 = vmatpush1.msra.mxu0 0.0
        %4109 = vmatprep.subr.mxu0 0.0
        %4110 = vmatpush1.msra.mxu0 0.0
        %4111 = vmatprep.subr.mxu0 0.0
        %4112 = vmatpush1.msra.mxu0 0.0
        %4113 = vmatprep.subr.mxu0 0.0
        %4114 = vmatpush1.msra.mxu0 0.0
        %4115 = vmatprep.subr.mxu0 0.0
        %4116 = vmatpush1.msra.mxu0 0.0
        %4117 = vmatprep.subr.mxu0 0.0
        %4118 = vmatpush1.msra.mxu0 0.0
        %4119 = vmatprep.subr.mxu0 0.0
        %4120 = vmatpush1.msra.mxu0 0.0
        %4121 = vmatprep.subr.mxu0 0.0
        %4122 = vmatpush1.msra.mxu0 0.0
        %4123 = vmatprep.subr.mxu0 0.0
        %4124 = vmatpush1.msra.mxu0 0.0
        %4125 = vmatprep.subr.mxu0 0.0
        %4126 = vmatpush1.msra.mxu0 0.0
        %4127 = vmatprep.subr.mxu0 0.0
        %4128 = vmatpush1.msra.mxu0 0.0
        %4129 = vmatprep.subr.mxu0 0.0
        %4130 = vmatpush1.msra.mxu0 0.0
        %4131 = vmatprep.subr.mxu0 0.0
        %4132 = vmatpush1.msra.mxu0 0.0
        %4133 = vmatprep.subr.mxu0 0.0
        %4134 = vmatpush1.msra.mxu0 0.0
        %4135 = vmatprep.subr.mxu0 0.0
        %4136 = vmatpush1.msra.mxu0 0.0
        %4137 = vmatprep.subr.mxu0 0.0
        %4138 = vmatpush1.msra.mxu0 0.0
        %4139 = vmatprep.subr.mxu0 0.0
        %4140 = vmatpush1.msra.mxu0 0.0
        %4141 = vmatprep.subr.mxu0 0.0
        %4142 = vmatpush1.msra.mxu0 0.0
        %4143 = vmatprep.subr.mxu0 0.0
        %4144 = vmatpush1.msra.mxu0 0.0
        %4145 = vmatprep.subr.mxu0 0.0
        %4146 = vmatpush1.msra.mxu0 0.0
        %4147 = vmatprep.subr.mxu0 0.0
        %4148 = vmatpush1.msra.mxu0 0.0
        %4149 = vmatprep.subr.mxu0 0.0
        %4150 = vmatpush1.msra.mxu0 0.0
        %4151 = vmatprep.subr.mxu0 0.0
        %4152 = vmatpush1.msra.mxu0 0.0
        %4153 = vmatprep.subr.mxu0 0.0
        %4154 = vmatpush1.msra.mxu0 0.0
        %4155 = vmatprep.subr.mxu0 0.0
        %4156 = vmatpush1.msra.mxu0 0.0
        %4157 = vmatprep.subr.mxu0 0.0
        %4158 = vmatpush1.msra.mxu0 0.0
        %4159 = vmatprep.mubr.f32.mxu0 0.0
        %4160 = vmatmul.mubr.f32.gmra.mrb[0].mxu0 %v4006
        %v4161 = vpop.f32.mrb[0].mxu0
        %v4162 = vadd.f32 %v3857, %v4161
        %v4163 = vpop.f32.mrb[0].mxu0
        %4164 = vmatprep.mubr.f32.mxu0 0.0
        %4165 = vmatmul.mubr.f32.gmra.mrb[0].mxu0 %v4009
        %v4166 = vpop.f32.mrb[0].mxu0
        %v4167 = vadd.f32 %v3862, %v4166
        %v4168 = vpop.f32.mrb[0].mxu0
        %4169 = vmatprep.mubr.f32.mxu0 0.0
        %4170 = vmatmul.mubr.f32.gmra.mrb[0].mxu0 %v4012
        %v4171 = vpop.f32.mrb[0].mxu0
        %v4172 = vadd.f32 %v3867, %v4171
        %v4173 = vpop.f32.mrb[0].mxu0
        %4174 = vmatprep.mubr.f32.mxu0 0.0
        %4175 = vmatmul.mubr.f32.gmra.mrb[0].mxu0 %v4015
        %v4176 = vpop.f32.mrb[0].mxu0
        %v4177 = vadd.f32 %v3872, %v4176
        %v4178 = vpop.f32.mrb[0].mxu0
        %4179 = vmatprep.mubr.f32.mxu0 0.0
        %4180 = vmatmul.mubr.f32.gmra.mrb[0].mxu0 %v4018
        %v4181 = vpop.f32.mrb[0].mxu0
        %v4182 = vadd.f32 %v3877, %v4181
        %v4183 = vpop.f32.mrb[0].mxu0
        %4184 = vmatprep.mubr.f32.mxu0 0.0
        %4185 = vmatmul.mubr.f32.gmra.mrb[0].mxu0 %v4021
        %v4186 = vpop.f32.mrb[0].mxu0
        %v4187 = vadd.f32 %v3882, %v4186
        %v4188 = vpop.f32.mrb[0].mxu0
        %4189 = vmatprep.mubr.f32.mxu0 0.0
        %4190 = vmatmul.mubr.f32.gmra.mrb[0].mxu0 %v4024
        %v4191 = vpop.f32.mrb[0].mxu0
        %v4192 = vadd.f32 %v3887, %v4191
        %v4193 = vpop.f32.mrb[0].mxu0
        %4194 = vmatprep.mubr.f32.mxu0 0.0
        %4195 = vmatmul.mubr.f32.gmra.mrb[0].mxu0 %v4027
        %v4196 = vpop.f32.mrb[0].mxu0
        %v4197 = vadd.f32 %v3892, %v4196
        %v4198 = vpop.f32.mrb[0].mxu0
        %4199 = vmatprep.mubr.f32.mxu0 0.0
        %4200 = vmatmul.mubr.f32.gmra.mrb[0].mxu0 %v4030
        %v4201 = vpop.f32.mrb[0].mxu0
        %v4202 = vadd.f32 %v3897, %v4201
        %v4203 = vpop.f32.mrb[0].mxu0
        %4204 = vmatprep.mubr.f32.mxu0 0.0
        %4205 = vmatmul.mubr.f32.gmra.mrb[0].mxu0 %v4033
        %v4206 = vpop.f32.mrb[0].mxu0
        %v4207 = vadd.f32 %v3902, %v4206
        %v4208 = vpop.f32.mrb[0].mxu0
        %4209 = vmatprep.mubr.f32.mxu0 0.0
        %4210 = vmatmul.mubr.f32.gmra.mrb[0].mxu0 %v4036
        %v4211 = vpop.f32.mrb[0].mxu0
        %v4212 = vadd.f32 %v3907, %v4211
        %v4213 = vpop.f32.mrb[0].mxu0
        %4214 = vmatprep.mubr.f32.mxu0 0.0
        %4215 = vmatmul.mubr.f32.gmra.mrb[0].mxu0 %v4039
        %v4216 = vpop.f32.mrb[0].mxu0
        %v4217 = vadd.f32 %v3912, %v4216
        %v4218 = vpop.f32.mrb[0].mxu0
        %4219 = vmatprep.mubr.f32.mxu0 0.0
        %4220 = vmatmul.mubr.f32.gmra.mrb[0].mxu0 %v4042
        %v4221 = vpop.f32.mrb[0].mxu0
        %v4222 = vadd.f32 %v3917, %v4221
        %v4223 = vpop.f32.mrb[0].mxu0
        %4224 = vmatprep.mubr.f32.mxu0 0.0
        %4225 = vmatmul.mubr.f32.gmra.mrb[0].mxu0 %v4045
        %v4226 = vpop.f32.mrb[0].mxu0
        %v4227 = vadd.f32 %v3922, %v4226
        %v4228 = vpop.f32.mrb[0].mxu0
        %4229 = vmatprep.mubr.f32.mxu0 0.0
        %4230 = vmatmul.mubr.f32.gmra.mrb[0].mxu0 %v4048
        %v4231 = vpop.f32.mrb[0].mxu0
        %v4232 = vadd.f32 %v3927, %v4231
        %v4233 = vpop.f32.mrb[0].mxu0
        %4234 = vmatprep.mubr.f32.mxu0 0.0
        %4235 = vmatmul.mubr.f32.gmra.mrb[0].mxu0 %v4051
        %v4236 = vpop.f32.mrb[0].mxu0
        %v4237 = vadd.f32 %v3932, %v4236
        %v4238 = vpop.f32.mrb[0].mxu0
        %4239 = vmatprep.mubr.f32.mxu0 0.0
        %4240 = vmatmul.mubr.f32.gmra.mrb[0].mxu0 %v4054
        %v4241 = vpop.f32.mrb[0].mxu0
        %v4242 = vadd.f32 %v3937, %v4241
        %v4243 = vpop.f32.mrb[0].mxu0
        %4244 = vmatprep.mubr.f32.mxu0 0.0
        %4245 = vmatmul.mubr.f32.gmra.mrb[0].mxu0 %v4057
        %v4246 = vpop.f32.mrb[0].mxu0
        %v4247 = vadd.f32 %v3942, %v4246
        %v4248 = vpop.f32.mrb[0].mxu0
        %4249 = vmatprep.mubr.f32.mxu0 0.0
        %4250 = vmatmul.mubr.f32.gmra.mrb[0].mxu0 %v4060
        %v4251 = vpop.f32.mrb[0].mxu0
        %v4252 = vadd.f32 %v3947, %v4251
        %v4253 = vpop.f32.mrb[0].mxu0
        %4254 = vmatprep.mubr.f32.mxu0 0.0
        %4255 = vmatmul.mubr.f32.gmra.mrb[0].mxu0 %v4063
        %v4256 = vpop.f32.mrb[0].mxu0
        %v4257 = vadd.f32 %v3952, %v4256
        %v4258 = vpop.f32.mrb[0].mxu0
        %4259 = vmatprep.mubr.f32.mxu0 0.0
        %4260 = vmatmul.mubr.f32.gmra.mrb[0].mxu0 %v4066
        %v4261 = vpop.f32.mrb[0].mxu0
        %v4262 = vadd.f32 %v3957, %v4261
        %v4263 = vpop.f32.mrb[0].mxu0
        %4264 = vmatprep.mubr.f32.mxu0 0.0
        %4265 = vmatmul.mubr.f32.gmra.mrb[0].mxu0 %v4069
        %v4266 = vpop.f32.mrb[0].mxu0
        %v4267 = vadd.f32 %v3962, %v4266
        %v4268 = vpop.f32.mrb[0].mxu0
        %4269 = vmatprep.mubr.f32.mxu0 0.0
        %4270 = vmatmul.mubr.f32.gmra.mrb[0].mxu0 %v4072
        %v4271 = vpop.f32.mrb[0].mxu0
        %v4272 = vadd.f32 %v3967, %v4271
        %v4273 = vpop.f32.mrb[0].mxu0
        %4274 = vmatprep.mubr.f32.mxu0 0.0
        %4275 = vmatmul.mubr.f32.gmra.mrb[0].mxu0 %v4075
        %v4276 = vpop.f32.mrb[0].mxu0
        %v4277 = vadd.f32 %v3972, %v4276
        %v4278 = vpop.f32.mrb[0].mxu0
        %4279 = vmatprep.mubr.f32.mxu0 0.0
        %4280 = vmatmul.mubr.f32.gmra.mrb[0].mxu0 %v4078
        %v4281 = vpop.f32.mrb[0].mxu0
        %v4282 = vadd.f32 %v3977, %v4281
        %v4283 = vpop.f32.mrb[0].mxu0
        %4284 = vmatprep.mubr.f32.mxu0 0.0
        %4285 = vmatmul.mubr.f32.gmra.mrb[0].mxu0 %v4081
        %v4286 = vpop.f32.mrb[0].mxu0
        %v4287 = vadd.f32 %v3982, %v4286
        %v4288 = vpop.f32.mrb[0].mxu0
        %4289 = vmatprep.mubr.f32.mxu0 0.0
        %4290 = vmatmul.mubr.f32.gmra.mrb[0].mxu0 %v4084
        %v4291 = vpop.f32.mrb[0].mxu0
        %v4292 = vadd.f32 %v3987, %v4291
        %v4293 = vpop.f32.mrb[0].mxu0
        %4294 = vmatprep.mubr.f32.mxu0 0.0
        %4295 = vmatmul.mubr.f32.gmra.mrb[0].mxu0 %v4087
        %v4296 = vpop.f32.mrb[0].mxu0
        %v4297 = vadd.f32 %v3992, %v4296
        %v4298 = vpop.f32.mrb[0].mxu0
        %4299 = vmatprep.mubr.f32.mxu0 0.0
        %4300 = vmatmul.mubr.f32.gmra.mrb[0].mxu0 %v4090
        %v4301 = vpop.f32.mrb[0].mxu0
        %v4302 = vadd.f32 %v3997, %v4301
        %v4303 = vpop.f32.mrb[0].mxu0
        %4304 = vmatprep.mubr.f32.mxu0 0.0
        %4305 = vmatmul.mubr.f32.gmra.mrb[0].mxu0 %v4093
        %v4306 = vpop.f32.mrb[0].mxu0
        %v4307 = vadd.f32 %v4002, %v4306
        %v4308 = vpop.f32.mrb[0].mxu0
        %4309 = vdwg.mxu0
        %s4310 = scalar_lea.vmem [#allocation6], 128
        %v4311 = vld [vmem:[%s4310] sm:$0xff]
        %v4312 = vld [vmem:[%s4310 + $0x8] sm:$0xff]
        %v4314 = vsel %vm1095, %v3664, 0
        %v4317 = vsel %vm1095, %v3665, 0
        %v4320 = vsel %vm1095, %v3666, 0
        %v4323 = vsel %vm1095, %v3667, 0
        %v4326 = vsel %vm1095, %v3668, 0
        %v4329 = vsel %vm1095, %v3669, 0
        %v4332 = vsel %vm1095, %v3670, 0
        %v4335 = vsel %vm1095, %v3671, 0
        %v4338 = vsel %vm1095, %v3672, 0
        %v4341 = vsel %vm1095, %v3673, 0
        %v4344 = vsel %vm1095, %v3674, 0
        %v4347 = vsel %vm1095, %v3675, 0
        %v4350 = vsel %vm1095, %v3676, 0
        %v4353 = vsel %vm1095, %v3677, 0
        %v4356 = vsel %vm1095, %v3678, 0
        %v4359 = vsel %vm1095, %v3679, 0
        %v4362 = vsel %vm1095, %v3680, 0
        %v4365 = vsel %vm1095, %v3681, 0
        %v4368 = vsel %vm1095, %v3682, 0
        %v4371 = vsel %vm1095, %v3683, 0
        %v4374 = vsel %vm1095, %v3684, 0
        %v4377 = vsel %vm1095, %v3685, 0
        %v4380 = vsel %vm1095, %v3686, 0
        %v4383 = vsel %vm1095, %v3687, 0
        %v4386 = vsel %vm1095, %v3688, 0
        %v4389 = vsel %vm1095, %v3689, 0
        %v4392 = vsel %vm1095, %v3690, 0
        %v4395 = vsel %vm1095, %v3691, 0
        %v4398 = vsel %vm1095, %v3692, 0
        %v4401 = vsel %vm1095, %v3693, 0
        %4403 = vmatprep.subr.mxu0 0.0
        %4404 = vmatpush1.msra.mxu0 %v4311
        %4405 = vmatprep.subr.mxu0 0.0
        %4406 = vmatpush1.msra.mxu0 %v4312
        %4407 = vmatprep.subr.mxu0 0.0
        %4408 = vmatpush1.msra.mxu0 0.0
        %4409 = vmatprep.subr.mxu0 0.0
        %4410 = vmatpush1.msra.mxu0 0.0
        %4411 = vmatprep.subr.mxu0 0.0
        %4412 = vmatpush1.msra.mxu0 0.0
        %4413 = vmatprep.subr.mxu0 0.0
        %4414 = vmatpush1.msra.mxu0 0.0
        %4415 = vmatprep.subr.mxu0 0.0
        %4416 = vmatpush1.msra.mxu0 0.0
        %4417 = vmatprep.subr.mxu0 0.0
        %4418 = vmatpush1.msra.mxu0 0.0
        %4419 = vmatprep.subr.mxu0 0.0
        %4420 = vmatpush1.msra.mxu0 0.0
        %4421 = vmatprep.subr.mxu0 0.0
        %4422 = vmatpush1.msra.mxu0 0.0
        %4423 = vmatprep.subr.mxu0 0.0
        %4424 = vmatpush1.msra.mxu0 0.0
        %4425 = vmatprep.subr.mxu0 0.0
        %4426 = vmatpush1.msra.mxu0 0.0
        %4427 = vmatprep.subr.mxu0 0.0
        %4428 = vmatpush1.msra.mxu0 0.0
        %4429 = vmatprep.subr.mxu0 0.0
        %4430 = vmatpush1.msra.mxu0 0.0
        %4431 = vmatprep.subr.mxu0 0.0
        %4432 = vmatpush1.msra.mxu0 0.0
        %4433 = vmatprep.subr.mxu0 0.0
        %4434 = vmatpush1.msra.mxu0 0.0
        %4435 = vmatprep.subr.mxu0 0.0
        %4436 = vmatpush1.msra.mxu0 0.0
        %4437 = vmatprep.subr.mxu0 0.0
        %4438 = vmatpush1.msra.mxu0 0.0
        %4439 = vmatprep.subr.mxu0 0.0
        %4440 = vmatpush1.msra.mxu0 0.0
        %4441 = vmatprep.subr.mxu0 0.0
        %4442 = vmatpush1.msra.mxu0 0.0
        %4443 = vmatprep.subr.mxu0 0.0
        %4444 = vmatpush1.msra.mxu0 0.0
        %4445 = vmatprep.subr.mxu0 0.0
        %4446 = vmatpush1.msra.mxu0 0.0
        %4447 = vmatprep.subr.mxu0 0.0
        %4448 = vmatpush1.msra.mxu0 0.0
        %4449 = vmatprep.subr.mxu0 0.0
        %4450 = vmatpush1.msra.mxu0 0.0
        %4451 = vmatprep.subr.mxu0 0.0
        %4452 = vmatpush1.msra.mxu0 0.0
        %4453 = vmatprep.subr.mxu0 0.0
        %4454 = vmatpush1.msra.mxu0 0.0
        %4455 = vmatprep.subr.mxu0 0.0
        %4456 = vmatpush1.msra.mxu0 0.0
        %4457 = vmatprep.subr.mxu0 0.0
        %4458 = vmatpush1.msra.mxu0 0.0
        %4459 = vmatprep.subr.mxu0 0.0
        %4460 = vmatpush1.msra.mxu0 0.0
        %4461 = vmatprep.subr.mxu0 0.0
        %4462 = vmatpush1.msra.mxu0 0.0
        %4463 = vmatprep.subr.mxu0 0.0
        %4464 = vmatpush1.msra.mxu0 0.0
        %4465 = vmatprep.subr.mxu0 0.0
        %4466 = vmatpush1.msra.mxu0 0.0
        %4467 = vmatprep.mubr.f32.mxu0 0.0
        %4468 = vmatmul.mubr.f32.gmra.mrb[0].mxu0 %v4314
        %v4469 = vpop.f32.mrb[0].mxu0
        %v4470 = vadd.f32 0.0, %v4469
        %v4471 = vpop.f32.mrb[0].mxu0
        %4472 = vmatprep.mubr.f32.mxu0 0.0
        %4473 = vmatmul.mubr.f32.gmra.mrb[0].mxu0 %v4317
        %v4474 = vpop.f32.mrb[0].mxu0
        %v4475 = vadd.f32 0.0, %v4474
        %v4476 = vpop.f32.mrb[0].mxu0
        %4477 = vmatprep.mubr.f32.mxu0 0.0
        %4478 = vmatmul.mubr.f32.gmra.mrb[0].mxu0 %v4320
        %v4479 = vpop.f32.mrb[0].mxu0
        %v4480 = vadd.f32 0.0, %v4479
        %v4481 = vpop.f32.mrb[0].mxu0
        %4482 = vmatprep.mubr.f32.mxu0 0.0
        %4483 = vmatmul.mubr.f32.gmra.mrb[0].mxu0 %v4323
        %v4484 = vpop.f32.mrb[0].mxu0
        %v4485 = vadd.f32 0.0, %v4484
        %v4486 = vpop.f32.mrb[0].mxu0
        %4487 = vmatprep.mubr.f32.mxu0 0.0
        %4488 = vmatmul.mubr.f32.gmra.mrb[0].mxu0 %v4326
        %v4489 = vpop.f32.mrb[0].mxu0
        %v4490 = vadd.f32 0.0, %v4489
        %v4491 = vpop.f32.mrb[0].mxu0
        %4492 = vmatprep.mubr.f32.mxu0 0.0
        %4493 = vmatmul.mubr.f32.gmra.mrb[0].mxu0 %v4329
        %v4494 = vpop.f32.mrb[0].mxu0
        %v4495 = vadd.f32 0.0, %v4494
        %v4496 = vpop.f32.mrb[0].mxu0
        %4497 = vmatprep.mubr.f32.mxu0 0.0
        %4498 = vmatmul.mubr.f32.gmra.mrb[0].mxu0 %v4332
        %v4499 = vpop.f32.mrb[0].mxu0
        %v4500 = vadd.f32 0.0, %v4499
        %v4501 = vpop.f32.mrb[0].mxu0
        %4502 = vmatprep.mubr.f32.mxu0 0.0
        %4503 = vmatmul.mubr.f32.gmra.mrb[0].mxu0 %v4335
        %v4504 = vpop.f32.mrb[0].mxu0
        %v4505 = vadd.f32 0.0, %v4504
        %v4506 = vpop.f32.mrb[0].mxu0
        %4507 = vmatprep.mubr.f32.mxu0 0.0
        %4508 = vmatmul.mubr.f32.gmra.mrb[0].mxu0 %v4338
        %v4509 = vpop.f32.mrb[0].mxu0
        %v4510 = vadd.f32 0.0, %v4509
        %v4511 = vpop.f32.mrb[0].mxu0
        %4512 = vmatprep.mubr.f32.mxu0 0.0
        %4513 = vmatmul.mubr.f32.gmra.mrb[0].mxu0 %v4341
        %v4514 = vpop.f32.mrb[0].mxu0
        %v4515 = vadd.f32 0.0, %v4514
        %v4516 = vpop.f32.mrb[0].mxu0
        %4517 = vmatprep.mubr.f32.mxu0 0.0
        %4518 = vmatmul.mubr.f32.gmra.mrb[0].mxu0 %v4344
        %v4519 = vpop.f32.mrb[0].mxu0
        %v4520 = vadd.f32 0.0, %v4519
        %v4521 = vpop.f32.mrb[0].mxu0
        %4522 = vmatprep.mubr.f32.mxu0 0.0
        %4523 = vmatmul.mubr.f32.gmra.mrb[0].mxu0 %v4347
        %v4524 = vpop.f32.mrb[0].mxu0
        %v4525 = vadd.f32 0.0, %v4524
        %v4526 = vpop.f32.mrb[0].mxu0
        %4527 = vmatprep.mubr.f32.mxu0 0.0
        %4528 = vmatmul.mubr.f32.gmra.mrb[0].mxu0 %v4350
        %v4529 = vpop.f32.mrb[0].mxu0
        %v4530 = vadd.f32 0.0, %v4529
        %v4531 = vpop.f32.mrb[0].mxu0
        %4532 = vmatprep.mubr.f32.mxu0 0.0
        %4533 = vmatmul.mubr.f32.gmra.mrb[0].mxu0 %v4353
        %v4534 = vpop.f32.mrb[0].mxu0
        %v4535 = vadd.f32 0.0, %v4534
        %v4536 = vpop.f32.mrb[0].mxu0
        %4537 = vmatprep.mubr.f32.mxu0 0.0
        %4538 = vmatmul.mubr.f32.gmra.mrb[0].mxu0 %v4356
        %v4539 = vpop.f32.mrb[0].mxu0
        %v4540 = vadd.f32 0.0, %v4539
        %v4541 = vpop.f32.mrb[0].mxu0
        %4542 = vmatprep.mubr.f32.mxu0 0.0
        %4543 = vmatmul.mubr.f32.gmra.mrb[0].mxu0 %v4359
        %v4544 = vpop.f32.mrb[0].mxu0
        %v4545 = vadd.f32 0.0, %v4544
        %v4546 = vpop.f32.mrb[0].mxu0
        %4547 = vmatprep.mubr.f32.mxu0 0.0
        %4548 = vmatmul.mubr.f32.gmra.mrb[0].mxu0 %v4362
        %v4549 = vpop.f32.mrb[0].mxu0
        %v4550 = vadd.f32 0.0, %v4549
        %v4551 = vpop.f32.mrb[0].mxu0
        %4552 = vmatprep.mubr.f32.mxu0 0.0
        %4553 = vmatmul.mubr.f32.gmra.mrb[0].mxu0 %v4365
        %v4554 = vpop.f32.mrb[0].mxu0
        %v4555 = vadd.f32 0.0, %v4554
        %v4556 = vpop.f32.mrb[0].mxu0
        %4557 = vmatprep.mubr.f32.mxu0 0.0
        %4558 = vmatmul.mubr.f32.gmra.mrb[0].mxu0 %v4368
        %v4559 = vpop.f32.mrb[0].mxu0
        %v4560 = vadd.f32 0.0, %v4559
        %v4561 = vpop.f32.mrb[0].mxu0
        %4562 = vmatprep.mubr.f32.mxu0 0.0
        %4563 = vmatmul.mubr.f32.gmra.mrb[0].mxu0 %v4371
        %v4564 = vpop.f32.mrb[0].mxu0
        %v4565 = vadd.f32 0.0, %v4564
        %v4566 = vpop.f32.mrb[0].mxu0
        %4567 = vmatprep.mubr.f32.mxu0 0.0
        %4568 = vmatmul.mubr.f32.gmra.mrb[0].mxu0 %v4374
        %v4569 = vpop.f32.mrb[0].mxu0
        %v4570 = vadd.f32 0.0, %v4569
        %v4571 = vpop.f32.mrb[0].mxu0
        %4572 = vmatprep.mubr.f32.mxu0 0.0
        %4573 = vmatmul.mubr.f32.gmra.mrb[0].mxu0 %v4377
        %v4574 = vpop.f32.mrb[0].mxu0
        %v4575 = vadd.f32 0.0, %v4574
        %v4576 = vpop.f32.mrb[0].mxu0
        %4577 = vmatprep.mubr.f32.mxu0 0.0
        %4578 = vmatmul.mubr.f32.gmra.mrb[0].mxu0 %v4380
        %v4579 = vpop.f32.mrb[0].mxu0
        %v4580 = vadd.f32 0.0, %v4579
        %v4581 = vpop.f32.mrb[0].mxu0
        %4582 = vmatprep.mubr.f32.mxu0 0.0
        %4583 = vmatmul.mubr.f32.gmra.mrb[0].mxu0 %v4383
        %v4584 = vpop.f32.mrb[0].mxu0
        %v4585 = vadd.f32 0.0, %v4584
        %v4586 = vpop.f32.mrb[0].mxu0
        %4587 = vmatprep.mubr.f32.mxu0 0.0
        %4588 = vmatmul.mubr.f32.gmra.mrb[0].mxu0 %v4386
        %v4589 = vpop.f32.mrb[0].mxu0
        %v4590 = vadd.f32 0.0, %v4589
        %v4591 = vpop.f32.mrb[0].mxu0
        %4592 = vmatprep.mubr.f32.mxu0 0.0
        %4593 = vmatmul.mubr.f32.gmra.mrb[0].mxu0 %v4389
        %v4594 = vpop.f32.mrb[0].mxu0
        %v4595 = vadd.f32 0.0, %v4594
        %v4596 = vpop.f32.mrb[0].mxu0
        %4597 = vmatprep.mubr.f32.mxu0 0.0
        %4598 = vmatmul.mubr.f32.gmra.mrb[0].mxu0 %v4392
        %v4599 = vpop.f32.mrb[0].mxu0
        %v4600 = vadd.f32 0.0, %v4599
        %v4601 = vpop.f32.mrb[0].mxu0
        %4602 = vmatprep.mubr.f32.mxu0 0.0
        %4603 = vmatmul.mubr.f32.gmra.mrb[0].mxu0 %v4395
        %v4604 = vpop.f32.mrb[0].mxu0
        %v4605 = vadd.f32 0.0, %v4604
        %v4606 = vpop.f32.mrb[0].mxu0
        %4607 = vmatprep.mubr.f32.mxu0 0.0
        %4608 = vmatmul.mubr.f32.gmra.mrb[0].mxu0 %v4398
        %v4609 = vpop.f32.mrb[0].mxu0
        %v4610 = vadd.f32 0.0, %v4609
        %v4611 = vpop.f32.mrb[0].mxu0
        %4612 = vmatprep.mubr.f32.mxu0 0.0
        %4613 = vmatmul.mubr.f32.gmra.mrb[0].mxu0 %v4401
        %v4614 = vpop.f32.mrb[0].mxu0
        %v4615 = vadd.f32 0.0, %v4614
        %v4616 = vpop.f32.mrb[0].mxu0
        %4617 = vdwg.mxu0
        %v4618 = vadd.f32 %v4162, %v4470
        %v4619 = vadd.f32 %v4167, %v4475
        %v4620 = vadd.f32 %v4172, %v4480
        %v4621 = vadd.f32 %v4177, %v4485
        %v4622 = vadd.f32 %v4182, %v4490
        %v4623 = vadd.f32 %v4187, %v4495
        %v4624 = vadd.f32 %v4192, %v4500
        %v4625 = vadd.f32 %v4197, %v4505
        %v4626 = vadd.f32 %v4202, %v4510
        %v4627 = vadd.f32 %v4207, %v4515
        %v4628 = vadd.f32 %v4212, %v4520
        %v4629 = vadd.f32 %v4217, %v4525
        %v4630 = vadd.f32 %v4222, %v4530
        %v4631 = vadd.f32 %v4227, %v4535
        %v4632 = vadd.f32 %v4232, %v4540
        %v4633 = vadd.f32 %v4237, %v4545
        %v4634 = vadd.f32 %v4242, %v4550
        %v4635 = vadd.f32 %v4247, %v4555
        %v4636 = vadd.f32 %v4252, %v4560
        %v4637 = vadd.f32 %v4257, %v4565
        %v4638 = vadd.f32 %v4262, %v4570
        %v4639 = vadd.f32 %v4267, %v4575
        %v4640 = vadd.f32 %v4272, %v4580
        %v4641 = vadd.f32 %v4277, %v4585
        %v4642 = vadd.f32 %v4282, %v4590
        %v4643 = vadd.f32 %v4287, %v4595
        %v4644 = vadd.f32 %v4292, %v4600
        %v4645 = vadd.f32 %v4297, %v4605
        %v4646 = vadd.f32 %v4302, %v4610
        %v4647 = vadd.f32 %v4307, %v4615
        %v4648 = vld [vmem:[#allocation2] sm:$0xff]
        %v4649 = vld [vmem:[#allocation2 + $0x8] sm:$0xff]
        %v4650 = vld [vmem:[#allocation2 + $0x10] sm:$0xff]
        %v4651 = vld [vmem:[#allocation2 + $0x18] sm:$0xff]
        %v4652 = vld [vmem:[#allocation2 + $0x20] sm:$0xff]
        %v4653 = vld [vmem:[#allocation2 + $0x28] sm:$0xff]
        %v4654 = vld [vmem:[#allocation2 + $0x30] sm:$0xff]
        %v4655 = vld [vmem:[#allocation2 + $0x38] sm:$0xff]
        %v4656 = vld [vmem:[#allocation2 + $0x40] sm:$0xff]
        %v4657 = vld [vmem:[#allocation2 + $0x48] sm:$0xff]
        %v4658 = vld [vmem:[#allocation2 + $0x50] sm:$0xff]
        %v4659 = vld [vmem:[#allocation2 + $0x58] sm:$0xff]
        %v4660 = vld [vmem:[#allocation2 + $0x60] sm:$0xff]
        %v4661 = vld [vmem:[#allocation2 + $0x68] sm:$0xff]
        %v4662 = vld [vmem:[#allocation2 + $0x70] sm:$0xff]
        %v4663 = vld [vmem:[#allocation2 + $0x78] sm:$0xff]
        %v4664 = vld [vmem:[#allocation2 + $0x80] sm:$0xff]
        %v4665 = vld [vmem:[#allocation2 + $0x88] sm:$0xff]
        %v4666 = vld [vmem:[#allocation2 + $0x90] sm:$0xff]
        %v4667 = vld [vmem:[#allocation2 + $0x98] sm:$0xff]
        %v4668 = vld [vmem:[#allocation2 + $0xa0] sm:$0xff]
        %v4669 = vld [vmem:[#allocation2 + $0xa8] sm:$0xff]
        %v4670 = vld [vmem:[#allocation2 + $0xb0] sm:$0xff]
        %v4671 = vld [vmem:[#allocation2 + $0xb8] sm:$0xff]
        %v4672 = vld [vmem:[#allocation2 + $0xc0] sm:$0xff]
        %v4673 = vld [vmem:[#allocation2 + $0xc8] sm:$0xff]
        %v4674 = vld [vmem:[#allocation2 + $0xd0] sm:$0xff]
        %v4675 = vld [vmem:[#allocation2 + $0xd8] sm:$0xff]
        %v4676 = vld [vmem:[#allocation2 + $0xe0] sm:$0xff]
        %v4677 = vld [vmem:[#allocation2 + $0xe8] sm:$0xff]
        %v4678 = vadd.f32 %v4648, %v4618
        %v4679 = vadd.f32 %v4649, %v4619
        %v4680 = vadd.f32 %v4650, %v4620
        %v4681 = vadd.f32 %v4651, %v4621
        %v4682 = vadd.f32 %v4652, %v4622
        %v4683 = vadd.f32 %v4653, %v4623
        %v4684 = vadd.f32 %v4654, %v4624
        %v4685 = vadd.f32 %v4655, %v4625
        %v4686 = vadd.f32 %v4656, %v4626
        %v4687 = vadd.f32 %v4657, %v4627
        %v4688 = vadd.f32 %v4658, %v4628
        %v4689 = vadd.f32 %v4659, %v4629
        %v4690 = vadd.f32 %v4660, %v4630
        %v4691 = vadd.f32 %v4661, %v4631
        %v4692 = vadd.f32 %v4662, %v4632
        %v4693 = vadd.f32 %v4663, %v4633
        %v4694 = vadd.f32 %v4664, %v4634
        %v4695 = vadd.f32 %v4665, %v4635
        %v4696 = vadd.f32 %v4666, %v4636
        %v4697 = vadd.f32 %v4667, %v4637
        %v4698 = vadd.f32 %v4668, %v4638
        %v4699 = vadd.f32 %v4669, %v4639
        %v4700 = vadd.f32 %v4670, %v4640
        %v4701 = vadd.f32 %v4671, %v4641
        %v4702 = vadd.f32 %v4672, %v4642
        %v4703 = vadd.f32 %v4673, %v4643
        %v4704 = vadd.f32 %v4674, %v4644
        %v4705 = vadd.f32 %v4675, %v4645
        %v4706 = vadd.f32 %v4676, %v4646
        %v4707 = vadd.f32 %v4677, %v4647
        %4708 = vst [vmem:[#allocation2] sm:$0xff] %v4678
        %4709 = vst [vmem:[#allocation2 + $0x8] sm:$0xff] %v4679
        %4710 = vst [vmem:[#allocation2 + $0x10] sm:$0xff] %v4680
        %4711 = vst [vmem:[#allocation2 + $0x18] sm:$0xff] %v4681
        %4712 = vst [vmem:[#allocation2 + $0x20] sm:$0xff] %v4682
        %4713 = vst [vmem:[#allocation2 + $0x28] sm:$0xff] %v4683
        %4714 = vst [vmem:[#allocation2 + $0x30] sm:$0xff] %v4684
        %4715 = vst [vmem:[#allocation2 + $0x38] sm:$0xff] %v4685
        %4716 = vst [vmem:[#allocation2 + $0x40] sm:$0xff] %v4686
        %4717 = vst [vmem:[#allocation2 + $0x48] sm:$0xff] %v4687
        %4718 = vst [vmem:[#allocation2 + $0x50] sm:$0xff] %v4688
        %4719 = vst [vmem:[#allocation2 + $0x58] sm:$0xff] %v4689
        %4720 = vst [vmem:[#allocation2 + $0x60] sm:$0xff] %v4690
        %4721 = vst [vmem:[#allocation2 + $0x68] sm:$0xff] %v4691
        %4722 = vst [vmem:[#allocation2 + $0x70] sm:$0xff] %v4692
        %4723 = vst [vmem:[#allocation2 + $0x78] sm:$0xff] %v4693
        %4724 = vst [vmem:[#allocation2 + $0x80] sm:$0xff] %v4694
        %4725 = vst [vmem:[#allocation2 + $0x88] sm:$0xff] %v4695
        %4726 = vst [vmem:[#allocation2 + $0x90] sm:$0xff] %v4696
        %4727 = vst [vmem:[#allocation2 + $0x98] sm:$0xff] %v4697
        %4728 = vst [vmem:[#allocation2 + $0xa0] sm:$0xff] %v4698
        %4729 = vst [vmem:[#allocation2 + $0xa8] sm:$0xff] %v4699
        %4730 = vst [vmem:[#allocation2 + $0xb0] sm:$0xff] %v4700
        %4731 = vst [vmem:[#allocation2 + $0xb8] sm:$0xff] %v4701
        %4732 = vst [vmem:[#allocation2 + $0xc0] sm:$0xff] %v4702
        %4733 = vst [vmem:[#allocation2 + $0xc8] sm:$0xff] %v4703
        %4734 = vst [vmem:[#allocation2 + $0xd0] sm:$0xff] %v4704
        %4735 = vst [vmem:[#allocation2 + $0xd8] sm:$0xff] %v4705
        %4736 = vst [vmem:[#allocation2 + $0xe0] sm:$0xff] %v4706
        %4737 = vst [vmem:[#allocation2 + $0xe8] sm:$0xff] %v4707
        // Predicated region
        $region49: #{tpu_custom_call.1} parent=31 // pred_check
          %p4738 = pneg %p2094
        $region50: #{tpu_custom_call.1} parent=31 // pred_check_branch
          %4740 = sbr.rel (%p4738) target = $region52
        $region51: #{tpu_custom_call.1} parent=31 // pred_region
          %v4741 = vld [vmem:[#allocation2] sm:$0xff]
          %v4742 = vld [vmem:[#allocation2 + $0x8] sm:$0xff]
          %v4743 = vld [vmem:[#allocation2 + $0x10] sm:$0xff]
          %v4744 = vld [vmem:[#allocation2 + $0x18] sm:$0xff]
          %v4745 = vld [vmem:[#allocation2 + $0x20] sm:$0xff]
          %v4746 = vld [vmem:[#allocation2 + $0x28] sm:$0xff]
          %v4747 = vld [vmem:[#allocation2 + $0x30] sm:$0xff]
          %v4748 = vld [vmem:[#allocation2 + $0x38] sm:$0xff]
          %v4749 = vld [vmem:[#allocation2 + $0x40] sm:$0xff]
          %v4750 = vld [vmem:[#allocation2 + $0x48] sm:$0xff]
          %v4751 = vld [vmem:[#allocation2 + $0x50] sm:$0xff]
          %v4752 = vld [vmem:[#allocation2 + $0x58] sm:$0xff]
          %v4753 = vld [vmem:[#allocation2 + $0x60] sm:$0xff]
          %v4754 = vld [vmem:[#allocation2 + $0x68] sm:$0xff]
          %v4755 = vld [vmem:[#allocation2 + $0x70] sm:$0xff]
          %v4756 = vld [vmem:[#allocation2 + $0x78] sm:$0xff]
          %v4757 = vld [vmem:[#allocation2 + $0x80] sm:$0xff]
          %v4758 = vld [vmem:[#allocation2 + $0x88] sm:$0xff]
          %v4759 = vld [vmem:[#allocation2 + $0x90] sm:$0xff]
          %v4760 = vld [vmem:[#allocation2 + $0x98] sm:$0xff]
          %v4761 = vld [vmem:[#allocation2 + $0xa0] sm:$0xff]
          %v4762 = vld [vmem:[#allocation2 + $0xa8] sm:$0xff]
          %v4763 = vld [vmem:[#allocation2 + $0xb0] sm:$0xff]
          %v4764 = vld [vmem:[#allocation2 + $0xb8] sm:$0xff]
          %v4765 = vld [vmem:[#allocation2 + $0xc0] sm:$0xff]
          %v4766 = vld [vmem:[#allocation2 + $0xc8] sm:$0xff]
          %v4767 = vld [vmem:[#allocation2 + $0xd0] sm:$0xff]
          %v4768 = vld [vmem:[#allocation2 + $0xd8] sm:$0xff]
          %v4769 = vld [vmem:[#allocation2 + $0xe0] sm:$0xff]
          %v4770 = vld [vmem:[#allocation2 + $0xe8] sm:$0xff]
          %v4771 = vld [vmem:[#allocation2 + $0xf0] sm:$0xff]
          %v4772 = vld [vmem:[#allocation2 + $0xf8] sm:$0xff]
          %v4773 = vld [vmem:[%s253] sm:$0x1]
          %v4775 = vlaneseq
          %v4776 = vshrl.u32 %v4775, 7
          %v4777 = vsub.s32 0, %v4776
          %v4778 = vrot.slane %v4773, %v4777
          %v4780 = vadd.f32 %v4741, %v4778
          %v4781 = vadd.f32 %v4742, %v4778
          %v4782 = vadd.f32 %v4743, %v4778
          %v4783 = vadd.f32 %v4744, %v4778
          %v4784 = vadd.f32 %v4745, %v4778
          %v4785 = vadd.f32 %v4746, %v4778
          %v4786 = vadd.f32 %v4747, %v4778
          %v4787 = vadd.f32 %v4748, %v4778
          %v4788 = vadd.f32 %v4749, %v4778
          %v4789 = vadd.f32 %v4750, %v4778
          %v4790 = vadd.f32 %v4751, %v4778
          %v4791 = vadd.f32 %v4752, %v4778
          %v4792 = vadd.f32 %v4753, %v4778
          %v4793 = vadd.f32 %v4754, %v4778
          %v4794 = vadd.f32 %v4755, %v4778
          %v4795 = vadd.f32 %v4756, %v4778
          %v4796 = vadd.f32 %v4757, %v4778
          %v4797 = vadd.f32 %v4758, %v4778
          %v4798 = vadd.f32 %v4759, %v4778
          %v4799 = vadd.f32 %v4760, %v4778
          %v4800 = vadd.f32 %v4761, %v4778
          %v4801 = vadd.f32 %v4762, %v4778
          %v4802 = vadd.f32 %v4763, %v4778
          %v4803 = vadd.f32 %v4764, %v4778
          %v4804 = vadd.f32 %v4765, %v4778
          %v4805 = vadd.f32 %v4766, %v4778
          %v4806 = vadd.f32 %v4767, %v4778
          %v4807 = vadd.f32 %v4768, %v4778
          %v4808 = vadd.f32 %v4769, %v4778
          %v4809 = vadd.f32 %v4770, %v4778
          %v4810 = vadd.f32 %v4771, %v4778
          %v4811 = vadd.f32 %v4772, %v4778
          %v4812 = vmax.f32 %v4780, 0.0
          %v4813 = vmax.f32 %v4781, 0.0
          %v4814 = vmax.f32 %v4782, 0.0
          %v4815 = vmax.f32 %v4783, 0.0
          %v4816 = vmax.f32 %v4784, 0.0
          %v4817 = vmax.f32 %v4785, 0.0
          %v4818 = vmax.f32 %v4786, 0.0
          %v4819 = vmax.f32 %v4787, 0.0
          %v4820 = vmax.f32 %v4788, 0.0
          %v4821 = vmax.f32 %v4789, 0.0
          %v4822 = vmax.f32 %v4790, 0.0
          %v4823 = vmax.f32 %v4791, 0.0
          %v4824 = vmax.f32 %v4792, 0.0
          %v4825 = vmax.f32 %v4793, 0.0
          %v4826 = vmax.f32 %v4794, 0.0
          %v4827 = vmax.f32 %v4795, 0.0
          %v4828 = vmax.f32 %v4796, 0.0
          %v4829 = vmax.f32 %v4797, 0.0
          %v4830 = vmax.f32 %v4798, 0.0
          %v4831 = vmax.f32 %v4799, 0.0
          %v4832 = vmax.f32 %v4800, 0.0
          %v4833 = vmax.f32 %v4801, 0.0
          %v4834 = vmax.f32 %v4802, 0.0
          %v4835 = vmax.f32 %v4803, 0.0
          %v4836 = vmax.f32 %v4804, 0.0
          %v4837 = vmax.f32 %v4805, 0.0
          %v4838 = vmax.f32 %v4806, 0.0
          %v4839 = vmax.f32 %v4807, 0.0
          %v4840 = vmax.f32 %v4808, 0.0
          %v4841 = vmax.f32 %v4809, 0.0
          %v4842 = vmax.f32 %v4810, 0.0
          %v4843 = vmax.f32 %v4811, 0.0
          %4844 = vst [vmem:[%s249] sm:$0xff] %v4812
          %4845 = vst [vmem:[%s249 + $0x8] sm:$0xff] %v4813
          %4846 = vst [vmem:[%s249 + $0x10] sm:$0xff] %v4814
          %4847 = vst [vmem:[%s249 + $0x18] sm:$0xff] %v4815
          %4848 = vst [vmem:[%s249 + $0x20] sm:$0xff] %v4816
          %4849 = vst [vmem:[%s249 + $0x28] sm:$0xff] %v4817
          %4850 = vst [vmem:[%s249 + $0x30] sm:$0xff] %v4818
          %4851 = vst [vmem:[%s249 + $0x38] sm:$0xff] %v4819
          %4852 = vst [vmem:[%s249 + $0x40] sm:$0xff] %v4820
          %4853 = vst [vmem:[%s249 + $0x48] sm:$0xff] %v4821
          %4854 = vst [vmem:[%s249 + $0x50] sm:$0xff] %v4822
          %4855 = vst [vmem:[%s249 + $0x58] sm:$0xff] %v4823
          %4856 = vst [vmem:[%s249 + $0x60] sm:$0xff] %v4824
          %4857 = vst [vmem:[%s249 + $0x68] sm:$0xff] %v4825
          %4858 = vst [vmem:[%s249 + $0x70] sm:$0xff] %v4826
          %4859 = vst [vmem:[%s249 + $0x78] sm:$0xff] %v4827
          %4860 = vst [vmem:[%s249 + $0x80] sm:$0xff] %v4828
          %4861 = vst [vmem:[%s249 + $0x88] sm:$0xff] %v4829
          %4862 = vst [vmem:[%s249 + $0x90] sm:$0xff] %v4830
          %4863 = vst [vmem:[%s249 + $0x98] sm:$0xff] %v4831
          %4864 = vst [vmem:[%s249 + $0xa0] sm:$0xff] %v4832
          %4865 = vst [vmem:[%s249 + $0xa8] sm:$0xff] %v4833
          %4866 = vst [vmem:[%s249 + $0xb0] sm:$0xff] %v4834
          %4867 = vst [vmem:[%s249 + $0xb8] sm:$0xff] %v4835
          %4868 = vst [vmem:[%s249 + $0xc0] sm:$0xff] %v4836
          %4869 = vst [vmem:[%s249 + $0xc8] sm:$0xff] %v4837
          %4870 = vst [vmem:[%s249 + $0xd0] sm:$0xff] %v4838
          %4871 = vst [vmem:[%s249 + $0xd8] sm:$0xff] %v4839
          %4872 = vst [vmem:[%s249 + $0xe0] sm:$0xff] %v4840
          %4873 = vst [vmem:[%s249 + $0xe8] sm:$0xff] %v4841
          %4874 = vst [vmem:[%s249 + $0xf0] sm:$0xff] %v4842
          %4875 = vst [vmem:[%s249 + $0xf8] sm:$0xff] %v4843
        $region52: #{tpu_custom_call.1} parent=31 // pred_fallthru
          _
        %s4876 = sand.u32 %s132, 1
        %s4877 = scalar_lea.sflag [#allocation5], %s4876
        %s4878 = sand.u32 %s132, 1
        %s4879 = smul.addr %s4878, 256
        %s4880 = scalar_lea.vmem [#allocation8], %s4879
        // Predicated region
        $region53: #{tpu_custom_call.1} parent=31 // pred_check
          %p4881 = pneg %p142
        $region54: #{tpu_custom_call.1} parent=31 // pred_check_branch
          %4883 = sbr.rel (%p4881) target = $region56
        $region55: #{tpu_custom_call.1} parent=31 // pred_region
          %s4885 = ssub.s32 4096, 4096
          %4886 = vsyncadd %s4877, %s4885
          %s4887 = smul.addr %s26, 32
          %s4888 = sadd.s32 %s27, %s4887
          %s4889 = smul.addr %s4888, 128
          %s4890 = scalar_lea.hbm %s3, %s4889
          %s4891 = sshll.u32 %s4880, 4
          %s4892 = int_to_ptr.vmem [resolvable:$true] %s4891
          %4897 = dma.vmem_to_hbm [thread:$0]  %s4892, 4096, %s4890, %s4877, 128, 128, 8
        $region56: #{tpu_custom_call.1} parent=31 // pred_fallthru
          _
      $region32: #{tpu_custom_call.1} parent=5 // pred_fallthru
        _
      %p4898 = scmp.le.s32.totalorder 2, %s16
      // Predicated region
      $region57: #{tpu_custom_call.1} parent=5 // pred_check
        %p4899 = pneg %p4898
      $region58: #{tpu_custom_call.1} parent=5 // pred_check_branch
        %4901 = sbr.rel (%p4899) target = $region60
      $region59: #{tpu_custom_call.1} parent=5 // pred_region
        %s4902 = ssub.s32 %s16, 2
        // Predicated region
        $region61: #{tpu_custom_call.1} parent=59 // pred_check
          %p4903 = pneg %p148
        $region62: #{tpu_custom_call.1} parent=59 // pred_check_branch
          %4905 = sbr.rel (%p4903) target = $region64
        $region63: #{tpu_custom_call.1} parent=59 // pred_region
          %s4906 = sand.u32 %s133, 1
          %s4907 = scalar_lea.sflag [#allocation5], %s4906
          %s4908 = sand.u32 %s133, 1
          %s4909 = smul.addr %s4908, 256
          %s4910 = scalar_lea.vmem [#allocation8], %s4909
          %4911 = dma.done %s4907, 4096
        $region64: #{tpu_custom_call.1} parent=59 // pred_fallthru
          _
      $region60: #{tpu_custom_call.1} parent=5 // pred_fallthru
        _
    $region6: #{tpu_custom_call.1} parent=1 // loop_footer
      %s20 = sadd.s32 1, %s16
    $region7: #{tpu_custom_call.1} parent=1 // loop_footer_branch
      %15 = sbr.rel target = $region3
    $region8: #{tpu_custom_call.1} parent=1 // loop_exit
      _
    %4912 = vsyncpa [#allocation4], 1
    %s4913 = scalar_lea.sflag [#allocation4], 1
    %4914 = vsyncpa %s4913, 1
    %4915 = vsyncpa [#allocation7], 1
    %4916 = vsyncpa [#allocation5], 1
    %s4917 = scalar_lea.sflag [#allocation5], 1
    %4918 = vsyncpa %s4917, 1

</llo_original>
